<compile_context>
chip_gen: v5e
topology: v5e:2x2
jax: 0.10.0
libtpu: 0.0.40
codegen_flags: <defaults>
</compile_context>

<pallas_src>
import functools

import numpy as np
import jax
import jax.numpy as jnp
from jax import lax
from jax.experimental import pallas as pl
from jax.experimental.pallas import tpu as pltpu

EPS = 1e-5
LANE = 128


# --------------------------------------------------------------------------- #
# helpers
# --------------------------------------------------------------------------- #
def _round_up(x, m):
    return (x + m - 1) // m * m


def _choose_row_tile(r_pad):
    """Largest multiple-of-128 row tile that divides r_pad, keeps >=2 grid steps
    (so v7x megacore can shard the 'parallel' axis) and stays VMEM friendly."""
    for t in (2048, 1024, 512, 256, 128):
        if t <= r_pad // 2 and r_pad % t == 0:
            return t
    return r_pad  # tiny inputs: single step


# --------------------------------------------------------------------------- #
# fused dense-stage Pallas kernel
#   out[f, r] = [bias_f] + [x0[f, r]] + sum_i  W_i @ relu(x_i * scale_i + shift_i)
# optional side output: per-channel (sum, sum of squares) of `out` per grid step
# --------------------------------------------------------------------------- #
def _make_stage_kernel(n_pieces, has_bias, add_residual, emit_stats,
                       r_true, r_pad, tile_r):
    def kernel(*refs):
        xs = refs[0:n_pieces]
        scs = refs[n_pieces:2 * n_pieces]
        shs = refs[2 * n_pieces:3 * n_pieces]
        wts = refs[3 * n_pieces:4 * n_pieces]
        pos = 4 * n_pieces
        bias_ref = None
        if has_bias:
            bias_ref = refs[pos]
            pos += 1
        out_ref = refs[pos]
        pos += 1
        stats_ref = refs[pos] if emit_stats else None

        acc = None
        for i in range(n_pieces):
            # BN (per-channel affine) + ReLU, fused with the MXU matmul.
            a = jnp.maximum(xs[i][...] * scs[i][...] + shs[i][...], 0.0)
            part = jnp.dot(wts[i][...], a, preferred_element_type=jnp.float32)
            acc = part if acc is None else acc + part
        if has_bias:
            acc = acc + bias_ref[...]
        if add_residual:
            acc = acc + xs[0][...]          # EncoderBlock skip connection (C == F)
        out_ref[...] = acc                   # lane-dense store (rows on lanes)

        if emit_stats:
            y = acc
            if r_pad != r_true:              # mask zero-padded tail columns
                col = (pl.program_id(0) * tile_r
                       + lax.broadcasted_iota(jnp.int32, y.shape, 1))
                y = jnp.where(col < r_true, y, 0.0)
            s1 = jnp.sum(y, axis=1, keepdims=True)       # (F, 1)
            s2 = jnp.sum(y * y, axis=1, keepdims=True)   # (F, 1)
            st = jnp.concatenate([s1, s2], axis=1)       # (F, 2)
            stats_ref[...] = jnp.reshape(st, (1,) + st.shape)
    return kernel


def pallas_dense_stage(pieces, scales, shifts, wts, bias, *, r_true,
                       add_residual=False, emit_stats=False):
    """Run one fused dense-block stage over the row grid."""
    n_pieces = len(pieces)
    rp = pieces[0].shape[1]
    out_ch = wts[0].shape[0]
    tr = _choose_row_tile(rp)
    grid_r = rp // tr

    in_specs, args = [], []
    for x in pieces:                                             # (Ci, Rp)
        in_specs.append(pl.BlockSpec((x.shape[0], tr), lambda rb: (0, rb)))
        args.append(x)
    for s in scales:                                             # (Ci, 1)
        in_specs.append(pl.BlockSpec((s.shape[0], 1), lambda rb: (0, 0)))
        args.append(s)
    for s in shifts:                                             # (Ci, 1)
        in_specs.append(pl.BlockSpec((s.shape[0], 1), lambda rb: (0, 0)))
        args.append(s)
    for w_ in wts:                                               # (OutCh, Ci)
        in_specs.append(pl.BlockSpec(w_.shape, lambda rb: (0, 0)))
        args.append(w_)
    if bias is not None:                                         # (OutCh, 1)
        in_specs.append(pl.BlockSpec((out_ch, 1), lambda rb: (0, 0)))
        args.append(bias.reshape(out_ch, 1))

    kernel = _make_stage_kernel(n_pieces, bias is not None, add_residual,
                                emit_stats, r_true, rp, tr)

    if emit_stats:
        out_shape = (jax.ShapeDtypeStruct((out_ch, rp), jnp.float32),
                     jax.ShapeDtypeStruct((grid_r, out_ch, 2), jnp.float32))
        out_specs = (pl.BlockSpec((out_ch, tr), lambda rb: (0, rb)),
                     pl.BlockSpec((1, out_ch, 2), lambda rb: (rb, 0, 0)))
    else:
        out_shape = jax.ShapeDtypeStruct((out_ch, rp), jnp.float32)
        out_specs = pl.BlockSpec((out_ch, tr), lambda rb: (0, rb))

    return pl.pallas_call(
        kernel,
        out_shape=out_shape,
        grid=(grid_r,),
        in_specs=in_specs,
        out_specs=out_specs,
        compiler_params=pltpu.CompilerParams(dimension_semantics=("parallel",)),
    )(*args)


# --------------------------------------------------------------------------- #
# XLA glue (cheap, operates on small tensors)
# --------------------------------------------------------------------------- #
def _taps_to_conv(z, bias, n, h, w, kh, kw, ph, pw, f):
    """Fold per-tap matmul results Z[(dh*kw+dw)*F+f, r] into the padded conv output."""
    # TODO(synk): the tap shift-and-add could also be moved in-kernel with halo row
    # blocks; kept as thin XLA glue on the small (kh*kw*F, N*H*W) slab.
    zr = z.reshape(kh, kw, f, n, h, w)
    zp = jnp.pad(zr, ((0, 0), (0, 0), (0, 0), (0, 0), (ph, ph), (pw, pw)))
    out = bias.reshape(f, 1, 1, 1)
    for dh in range(kh):
        for dw in range(kw):
            out = out + zp[dh, dw, :, :, dh:dh + h, dw:dw + w]
    return out  # (F, N, H, W)


def _maxpool_with_indices(x, k):
    """MaxPool2d(kernel=k, stride=k, return_indices=True) for divisible H, W."""
    # TODO(synk): maxpool-with-indices kept as XLA glue (indices are int32, PyTorch
    # returns int64); stride_pool != pool / floor-mode tails not handled.
    n, c, h, w = x.shape
    ho, wo = h // k, w // k
    xr = x.reshape(n, c, ho, k, wo, k)
    xr = jnp.transpose(xr, (0, 1, 2, 4, 3, 5)).reshape(n, c, ho, wo, k * k)
    vals = jnp.max(xr, axis=-1)
    arg = jnp.argmax(xr, axis=-1).astype(jnp.int32)
    dy, dx = arg // k, arg % k
    base_h = jnp.arange(ho, dtype=jnp.int32).reshape(1, 1, ho, 1) * k
    base_w = jnp.arange(wo, dtype=jnp.int32).reshape(1, 1, 1, wo) * k
    idx = (base_h + dy) * w + (base_w + dx)
    return vals, idx


# --------------------------------------------------------------------------- #
# EncoderBlock forward (Pallas path)
# --------------------------------------------------------------------------- #
def encoder_block_forward(x_nchw, P, *, kh, kw, num_filters, pool):
    n, c, h, w = x_nchw.shape
    f = num_filters
    ph, pw = (kh - 1) // 2, (kw - 1) // 2
    r = n * h * w
    rp = _round_up(r, LANE)

    def pad_rows(t):
        return t if rp == r else jnp.pad(t, ((0, 0), (0, rp - r)))

    # transposed layout: channels on sublanes, N*H*W rows on lanes
    x_t = jnp.transpose(x_nchw, (1, 0, 2, 3)).reshape(c, r)
    mean_x = jnp.mean(x_t, axis=1)
    var_x = jnp.mean((x_t - mean_x[:, None]) ** 2, axis=1)

    pieces = [pad_rows(x_t)]            # per-piece (Ci, Rp) slabs; never concatenated
    stats = [(mean_x, var_x)]           # per-piece BN statistics

    def affines(stage):
        scs, shs = [], []
        for g, b, (m, v) in zip(stage["gamma"], stage["beta"], stats):
            sc = g / jnp.sqrt(v + EPS)
            sh = b - m * sc
            scs.append(sc.reshape(-1, 1))
            shs.append(sh.reshape(-1, 1))
        return scs, shs

    def run_3x3(stage):
        scs, shs = affines(stage)
        z = pallas_dense_stage(pieces, scs, shs, stage["wt"], None, r_true=r)
        o = _taps_to_conv(z[:, :r], stage["bias"], n, h, w, kh, kw, ph, pw, f)
        m = jnp.mean(o, axis=(1, 2, 3))
        v = jnp.mean((o - m[:, None, None, None]) ** 2, axis=(1, 2, 3))
        pieces.append(pad_rows(o.reshape(f, r)))
        stats.append((m, v))

    def run_1x1(stage, *, emit_stats, add_residual=False):
        scs, shs = affines(stage)
        out = pallas_dense_stage(pieces, scs, shs, stage["wt"], stage["bias"],
                                 r_true=r, add_residual=add_residual,
                                 emit_stats=emit_stats)
        if emit_stats:
            y, st = out
            st = jnp.sum(st, axis=0)                      # (F, 2) partials -> totals
            m = st[:, 0] / r
            v = jnp.maximum(st[:, 1] / r - m * m, 0.0)    # biased variance
            pieces.append(y)
            stats.append((m, v))
            return y
        return out

    run_3x3(P[0])                                   # conv1 (kh x kw)
    run_3x3(P[1])                                   # conv2 (kh x kw)
    run_1x1(P[2], emit_stats=True)                  # conv3 (1x1)
    run_1x1(P[3], emit_stats=True)                  # conv4 (1x1)
    out_p = run_1x1(P[4], emit_stats=False,
                    add_residual=(c == f))          # conv5 (1x1) + skip

    out_block = jnp.transpose(out_p[:, :r].reshape(f, n, h, w), (1, 0, 2, 3))
    out_enc, indices = _maxpool_with_indices(out_block, pool)
    return out_enc, out_block, indices


# --------------------------------------------------------------------------- #
# pure-JAX reference (NCHW, lax.conv) for verification
# --------------------------------------------------------------------------- #
def _ref_bn(x, gamma, beta):
    mean = jnp.mean(x, axis=(0, 2, 3), keepdims=True)
    var = jnp.mean((x - mean) ** 2, axis=(0, 2, 3), keepdims=True)
    return ((x - mean) / jnp.sqrt(var + EPS) * gamma.reshape(1, -1, 1, 1)
            + beta.reshape(1, -1, 1, 1))


def _ref_conv(x, w_oihw, b, pad):
    y = lax.conv_general_dilated(
        x, w_oihw, window_strides=(1, 1),
        padding=[(pad[0], pad[0]), (pad[1], pad[1])],
        dimension_numbers=("NCHW", "OIHW", "NCHW"))
    return y + b.reshape(1, -1, 1, 1)


def encoder_block_reference(x, R, kh, kw, pool):
    ph, pw = (kh - 1) // 2, (kw - 1) // 2
    relu = lambda t: jnp.maximum(t, 0.0)
    o3 = _ref_conv(relu(_ref_bn(x, R["g1"], R["be1"])), R["w1"], R["b1"], (ph, pw))
    c1 = jnp.concatenate([x, o3], axis=1)
    o7 = _ref_conv(relu(_ref_bn(c1, R["g2"], R["be2"])), R["w2"], R["b2"], (ph, pw))
    c2 = jnp.concatenate([x, o3, o7], axis=1)
    o11 = _ref_conv(relu(_ref_bn(c2, R["g3"], R["be3"])), R["w3"], R["b3"], (0, 0))
    c3 = jnp.concatenate([x, o3, o7, o11], axis=1)
    o15 = _ref_conv(relu(_ref_bn(c3, R["g4"], R["be4"])), R["w4"], R["b4"], (0, 0))
    c4 = jnp.concatenate([x, o3, o7, o11, o15], axis=1)
    out_block = _ref_conv(relu(_ref_bn(c4, R["g5"], R["be5"])), R["w5"], R["b5"], (0, 0))
    if x.shape[1] == out_block.shape[1]:
        out_block = out_block + x
    out_enc, idx = _maxpool_with_indices(out_block, pool)
    return out_enc, out_block, idx


# --------------------------------------------------------------------------- #
# parameter construction (per-piece split for Pallas, OIHW for reference)
# --------------------------------------------------------------------------- #
def make_params(key, c, f, kh, kw):
    piece_counts = [[c], [c, f], [c, f, f], [c, f, f, f], [c, f, f, f, f]]
    ksizes = [(kh, kw), (kh, kw), (1, 1), (1, 1), (1, 1)]
    keys = jax.random.split(key, 4 * 5)
    P, R = [], {}
    for s in range(5):
        cin = sum(piece_counts[s])
        khs, kws = ksizes[s]
        k_w, k_b, k_g, k_be = keys[4 * s:4 * s + 4]
        w_oihw = 0.1 * jax.random.normal(k_w, (f, cin, khs, kws), jnp.float32)
        bias = 0.1 * jax.random.normal(k_b, (f,), jnp.float32)
        gamma = 1.0 + 0.1 * jax.random.normal(k_g, (cin,), jnp.float32)
        beta = 0.1 * jax.random.normal(k_be, (cin,), jnp.float32)

        splits = np.cumsum(piece_counts[s])[:-1].tolist()
        w_pieces = jnp.split(w_oihw, splits, axis=1)
        g_pieces = jnp.split(gamma, splits)
        b_pieces = jnp.split(beta, splits)
        wts = []
        for wp in w_pieces:
            if khs == 1 and kws == 1:
                wts.append(wp.reshape(f, wp.shape[1]))                       # (F, Ci)
            else:
                # (F, Ci, kh, kw) -> (kh, kw, F, Ci) -> (kh*kw*F, Ci)  (per-tap rows)
                wts.append(jnp.transpose(wp, (2, 3, 0, 1)).reshape(khs * kws * f,
                                                                   wp.shape[1]))
        P.append({"wt": wts, "gamma": list(g_pieces), "beta": list(b_pieces),
                  "bias": bias})
        R[f"w{s + 1}"], R[f"b{s + 1}"] = w_oihw, bias
        R[f"g{s + 1}"], R[f"be{s + 1}"] = gamma, beta
    return P, R


# --------------------------------------------------------------------------- #
# main
# --------------------------------------------------------------------------- #
if __name__ == "__main__":
    params = dict(num_channels=4, num_filters=4, kernel_h=3, kernel_w=3,
                  stride_conv=1, drop_out=0, pool=2, stride_pool=2)
    N, H, W = 2, 16, 16
    assert params["pool"] == params["stride_pool"]
    assert H % params["pool"] == 0 and W % params["pool"] == 0

    key = jax.random.PRNGKey(0)
    kx, kp = jax.random.split(key)
    x = jax.random.normal(kx, (N, params["num_channels"], H, W), jnp.float32)
    P, R = make_params(kp, params["num_channels"], params["num_filters"],
                       params["kernel_h"], params["kernel_w"])

    fwd = jax.jit(functools.partial(
        encoder_block_forward,
        kh=params["kernel_h"], kw=params["kernel_w"],
        num_filters=params["num_filters"], pool=params["pool"]))
    out_enc, out_block, indices = jax.block_until_ready(fwd(x, P))

    ref_enc, ref_block, ref_idx = encoder_block_reference(
        x, R, params["kernel_h"], params["kernel_w"], params["pool"])

    np.testing.assert_allclose(np.asarray(out_block), np.asarray(ref_block),
                               rtol=5e-4, atol=5e-4)
    np.testing.assert_allclose(np.asarray(out_enc), np.asarray(ref_enc),
                               rtol=5e-4, atol=5e-4)
    assert np.array_equal(np.asarray(indices), np.asarray(ref_idx))
    assert out_enc.shape == (N, params["num_filters"],
                             H // params["pool"], W // params["pool"])
    assert out_block.shape == (N, params["num_filters"], H, W)
    print("KERNEL_OK")
</pallas_src>

<mosaic_0001>
module attributes {stable_mosaic.version = 11 : i64} {
  func.func @kernel(%arg0: i32, %arg1: memref<4x256xf32, #tpu.memory_space<vmem>>, %arg2: memref<4x1xf32, #tpu.memory_space<vmem>>, %arg3: memref<4x1xf32, #tpu.memory_space<vmem>>, %arg4: memref<36x4xf32, #tpu.memory_space<vmem>>, %arg5: memref<36x256xf32, #tpu.memory_space<vmem>>) attributes {dimension_semantics = [#tpu.dimension_semantics<parallel>], iteration_bounds = array<i64: 2>, scalar_prefetch = 0 : i64, scratch_operands = 0 : i64, tpu.core_type = #tpu.core_type<tc>, window_params = [{transform_indices = @transform_0, window_bounds = array<i64: 4, 256>}, {pipeline_mode = #tpu.pipeline_mode<synchronous>, transform_indices = @transform_1, window_bounds = array<i64: 4, 1>}, {pipeline_mode = #tpu.pipeline_mode<synchronous>, transform_indices = @transform_2, window_bounds = array<i64: 4, 1>}, {pipeline_mode = #tpu.pipeline_mode<synchronous>, transform_indices = @transform_3, window_bounds = array<i64: 36, 4>}, {transform_indices = @transform_4, window_bounds = array<i64: 36, 256>}]} {
    %c0 = arith.constant 0 : index
    %c0_0 = arith.constant 0 : index
    %0 = vector.load %arg1[%c0, %c0_0] : memref<4x256xf32, #tpu.memory_space<vmem>>, vector<4x256xf32>
    %c0_1 = arith.constant 0 : index
    %c0_2 = arith.constant 0 : index
    %1 = vector.load %arg2[%c0_1, %c0_2] : memref<4x1xf32, #tpu.memory_space<vmem>>, vector<4x1xf32>
    %2 = vector.broadcast %1 : vector<4x1xf32> to vector<4x256xf32>
    %3 = arith.mulf %0, %2 : vector<4x256xf32>
    %c0_3 = arith.constant 0 : index
    %c0_4 = arith.constant 0 : index
    %4 = vector.load %arg3[%c0_3, %c0_4] : memref<4x1xf32, #tpu.memory_space<vmem>>, vector<4x1xf32>
    %5 = vector.broadcast %4 : vector<4x1xf32> to vector<4x256xf32>
    %6 = arith.addf %3, %5 : vector<4x256xf32>
    %cst = arith.constant 0.000000e+00 : f32
    %7 = vector.broadcast %cst : f32 to vector<4x256xf32>
    %8 = arith.maximumf %6, %7 : vector<4x256xf32>
    %c0_5 = arith.constant 0 : index
    %c0_6 = arith.constant 0 : index
    %9 = vector.load %arg4[%c0_5, %c0_6] : memref<36x4xf32, #tpu.memory_space<vmem>>, vector<36x4xf32>
    %cst_7 = arith.constant dense<0.000000e+00> : vector<36x256xf32>
    %10 = tpu.matmul %9, %8, %cst_7 {dimension_numbers = #tpu.dot_dimension_numbers<[1], [0], [0], [1], [0, 0, 1, 1], [], []>} : vector<36x4xf32>, vector<4x256xf32>, vector<36x256xf32> -> vector<36x256xf32>
    %c0_8 = arith.constant 0 : index
    %c0_9 = arith.constant 0 : index
    %11 = vector.load %arg5[%c0_8, %c0_9] : memref<36x256xf32, #tpu.memory_space<vmem>>, vector<36x256xf32>
    tpu.vector_store %arg5[%c0_8, %c0_9], %10 {strides = array<i32>} : memref<36x256xf32, #tpu.memory_space<vmem>>, vector<36x256xf32>,
    return
  }
  func.func @transform_0(%arg0: i32) -> (i32, i32) {
    %c0_i32 = arith.constant 0 : i32
    %c0_i32_0 = arith.constant 0 : i32
    return %c0_i32, %arg0 : i32, i32
  }
  func.func @transform_1(%arg0: i32) -> (i32, i32) {
    %c0_i32 = arith.constant 0 : i32
    %c0_i32_0 = arith.constant 0 : i32
    %c0_i32_1 = arith.constant 0 : i32
    return %c0_i32, %c0_i32_0 : i32, i32
  }
  func.func @transform_2(%arg0: i32) -> (i32, i32) {
    %c0_i32 = arith.constant 0 : i32
    %c0_i32_0 = arith.constant 0 : i32
    %c0_i32_1 = arith.constant 0 : i32
    return %c0_i32, %c0_i32_0 : i32, i32
  }
  func.func @transform_3(%arg0: i32) -> (i32, i32) {
    %c0_i32 = arith.constant 0 : i32
    %c0_i32_0 = arith.constant 0 : i32
    %c0_i32_1 = arith.constant 0 : i32
    return %c0_i32, %c0_i32_0 : i32, i32
  }
  func.func @transform_4(%arg0: i32) -> (i32, i32) {
    %c0_i32 = arith.constant 0 : i32
    %c0_i32_0 = arith.constant 0 : i32
    return %c0_i32, %arg0 : i32, i32
  }
}

module attributes {stable_mosaic.version = 11 : i64} {
  func.func @kernel(%arg0: i32, %arg1: memref<4x256xf32, #tpu.memory_space<vmem>>, %arg2: memref<4x256xf32, #tpu.memory_space<vmem>>, %arg3: memref<4x1xf32, #tpu.memory_space<vmem>>, %arg4: memref<4x1xf32, #tpu.memory_space<vmem>>, %arg5: memref<4x1xf32, #tpu.memory_space<vmem>>, %arg6: memref<4x1xf32, #tpu.memory_space<vmem>>, %arg7: memref<36x4xf32, #tpu.memory_space<vmem>>, %arg8: memref<36x4xf32, #tpu.memory_space<vmem>>, %arg9: memref<36x256xf32, #tpu.memory_space<vmem>>) attributes {dimension_semantics = [#tpu.dimension_semantics<parallel>], iteration_bounds = array<i64: 2>, scalar_prefetch = 0 : i64, scratch_operands = 0 : i64, tpu.core_type = #tpu.core_type<tc>, window_params = [{transform_indices = @transform_0, window_bounds = array<i64: 4, 256>}, {transform_indices = @transform_1, window_bounds = array<i64: 4, 256>}, {pipeline_mode = #tpu.pipeline_mode<synchronous>, transform_indices = @transform_2, window_bounds = array<i64: 4, 1>}, {pipeline_mode = #tpu.pipeline_mode<synchronous>, transform_indices = @transform_3, window_bounds = array<i64: 4, 1>}, {pipeline_mode = #tpu.pipeline_mode<synchronous>, transform_indices = @transform_4, window_bounds = array<i64: 4, 1>}, {pipeline_mode = #tpu.pipeline_mode<synchronous>, transform_indices = @transform_5, window_bounds = array<i64: 4, 1>}, {pipeline_mode = #tpu.pipeline_mode<synchronous>, transform_indices = @transform_6, window_bounds = array<i64: 36, 4>}, {pipeline_mode = #tpu.pipeline_mode<synchronous>, transform_indices = @transform_7, window_bounds = array<i64: 36, 4>}, {transform_indices = @transform_8, window_bounds = array<i64: 36, 256>}]} {
    %c0 = arith.constant 0 : index
    %c0_0 = arith.constant 0 : index
    %0 = vector.load %arg1[%c0, %c0_0] : memref<4x256xf32, #tpu.memory_space<vmem>>, vector<4x256xf32>
    %c0_1 = arith.constant 0 : index
    %c0_2 = arith.constant 0 : index
    %1 = vector.load %arg3[%c0_1, %c0_2] : memref<4x1xf32, #tpu.memory_space<vmem>>, vector<4x1xf32>
    %2 = vector.broadcast %1 : vector<4x1xf32> to vector<4x256xf32>
    %3 = arith.mulf %0, %2 : vector<4x256xf32>
    %c0_3 = arith.constant 0 : index
    %c0_4 = arith.constant 0 : index
    %4 = vector.load %arg5[%c0_3, %c0_4] : memref<4x1xf32, #tpu.memory_space<vmem>>, vector<4x1xf32>
    %5 = vector.broadcast %4 : vector<4x1xf32> to vector<4x256xf32>
    %6 = arith.addf %3, %5 : vector<4x256xf32>
    %cst = arith.constant 0.000000e+00 : f32
    %7 = vector.broadcast %cst : f32 to vector<4x256xf32>
    %8 = arith.maximumf %6, %7 : vector<4x256xf32>
    %c0_5 = arith.constant 0 : index
    %c0_6 = arith.constant 0 : index
    %9 = vector.load %arg7[%c0_5, %c0_6] : memref<36x4xf32, #tpu.memory_space<vmem>>, vector<36x4xf32>
    %cst_7 = arith.constant dense<0.000000e+00> : vector<36x256xf32>
    %10 = tpu.matmul %9, %8, %cst_7 {dimension_numbers = #tpu.dot_dimension_numbers<[1], [0], [0], [1], [0, 0, 1, 1], [], []>} : vector<36x4xf32>, vector<4x256xf32>, vector<36x256xf32> -> vector<36x256xf32>
    %c0_8 = arith.constant 0 : index
    %c0_9 = arith.constant 0 : index
    %11 = vector.load %arg2[%c0_8, %c0_9] : memref<4x256xf32, #tpu.memory_space<vmem>>, vector<4x256xf32>
    %c0_10 = arith.constant 0 : index
    %c0_11 = arith.constant 0 : index
    %12 = vector.load %arg4[%c0_10, %c0_11] : memref<4x1xf32, #tpu.memory_space<vmem>>, vector<4x1xf32>
    %13 = vector.broadcast %12 : vector<4x1xf32> to vector<4x256xf32>
    %14 = arith.mulf %11, %13 : vector<4x256xf32>
    %c0_12 = arith.constant 0 : index
    %c0_13 = arith.constant 0 : index
    %15 = vector.load %arg6[%c0_12, %c0_13] : memref<4x1xf32, #tpu.memory_space<vmem>>, vector<4x1xf32>
    %16 = vector.broadcast %15 : vector<4x1xf32> to vector<4x256xf32>
    %17 = arith.addf %14, %16 : vector<4x256xf32>
    %cst_14 = arith.constant 0.000000e+00 : f32
    %18 = vector.broadcast %cst_14 : f32 to vector<4x256xf32>
    %19 = arith.maximumf %17, %18 : vector<4x256xf32>
    %c0_15 = arith.constant 0 : index
    %c0_16 = arith.constant 0 : index
    %20 = vector.load %arg8[%c0_15, %c0_16] : memref<36x4xf32, #tpu.memory_space<vmem>>, vector<36x4xf32>
    %cst_17 = arith.constant dense<0.000000e+00> : vector<36x256xf32>
    %21 = tpu.matmul %20, %19, %cst_17 {dimension_numbers = #tpu.dot_dimension_numbers<[1], [0], [0], [1], [0, 0, 1, 1], [], []>} : vector<36x4xf32>, vector<4x256xf32>, vector<36x256xf32> -> vector<36x256xf32>
    %22 = arith.addf %10, %21 : vector<36x256xf32>
    %c0_18 = arith.constant 0 : index
    %c0_19 = arith.constant 0 : index
    %23 = vector.load %arg9[%c0_18, %c0_19] : memref<36x256xf32, #tpu.memory_space<vmem>>, vector<36x256xf32>
    tpu.vector_store %arg9[%c0_18, %c0_19], %22 {strides = array<i32>} : memref<36x256xf32, #tpu.memory_space<vmem>>, vector<36x256xf32>,
    return
  }
  func.func @transform_0(%arg0: i32) -> (i32, i32) {
    %c0_i32 = arith.constant 0 : i32
    %c0_i32_0 = arith.constant 0 : i32
    return %c0_i32, %arg0 : i32, i32
  }
  func.func @transform_1(%arg0: i32) -> (i32, i32) {
    %c0_i32 = arith.constant 0 : i32
    %c0_i32_0 = arith.constant 0 : i32
    return %c0_i32, %arg0 : i32, i32
  }
  func.func @transform_2(%arg0: i32) -> (i32, i32) {
    %c0_i32 = arith.constant 0 : i32
    %c0_i32_0 = arith.constant 0 : i32
    %c0_i32_1 = arith.constant 0 : i32
    return %c0_i32, %c0_i32_0 : i32, i32
  }
  func.func @transform_3(%arg0: i32) -> (i32, i32) {
    %c0_i32 = arith.constant 0 : i32
    %c0_i32_0 = arith.constant 0 : i32
    %c0_i32_1 = arith.constant 0 : i32
    return %c0_i32, %c0_i32_0 : i32, i32
  }
  func.func @transform_4(%arg0: i32) -> (i32, i32) {
    %c0_i32 = arith.constant 0 : i32
    %c0_i32_0 = arith.constant 0 : i32
    %c0_i32_1 = arith.constant 0 : i32
    return %c0_i32, %c0_i32_0 : i32, i32
  }
  func.func @transform_5(%arg0: i32) -> (i32, i32) {
    %c0_i32 = arith.constant 0 : i32
    %c0_i32_0 = arith.constant 0 : i32
    %c0_i32_1 = arith.constant 0 : i32
    return %c0_i32, %c0_i32_0 : i32, i32
  }
  func.func @transform_6(%arg0: i32) -> (i32, i32) {
    %c0_i32 = arith.constant 0 : i32
    %c0_i32_0 = arith.constant 0 : i32
    %c0_i32_1 = arith.constant 0 : i32
    return %c0_i32, %c0_i32_0 : i32, i32
  }
  func.func @transform_7(%arg0: i32) -> (i32, i32) {
    %c0_i32 = arith.constant 0 : i32
    %c0_i32_0 = arith.constant 0 : i32
    %c0_i32_1 = arith.constant 0 : i32
    return %c0_i32, %c0_i32_0 : i32, i32
  }
  func.func @transform_8(%arg0: i32) -> (i32, i32) {
    %c0_i32 = arith.constant 0 : i32
    %c0_i32_0 = arith.constant 0 : i32
    return %c0_i32, %arg0 : i32, i32
  }
}

module attributes {stable_mosaic.version = 11 : i64} {
  func.func @kernel(%arg0: i32, %arg1: memref<4x256xf32, #tpu.memory_space<vmem>>, %arg2: memref<4x256xf32, #tpu.memory_space<vmem>>, %arg3: memref<4x256xf32, #tpu.memory_space<vmem>>, %arg4: memref<4x1xf32, #tpu.memory_space<vmem>>, %arg5: memref<4x1xf32, #tpu.memory_space<vmem>>, %arg6: memref<4x1xf32, #tpu.memory_space<vmem>>, %arg7: memref<4x1xf32, #tpu.memory_space<vmem>>, %arg8: memref<4x1xf32, #tpu.memory_space<vmem>>, %arg9: memref<4x1xf32, #tpu.memory_space<vmem>>, %arg10: memref<4x4xf32, #tpu.memory_space<vmem>>, %arg11: memref<4x4xf32, #tpu.memory_space<vmem>>, %arg12: memref<4x4xf32, #tpu.memory_space<vmem>>, %arg13: memref<4x1xf32, #tpu.memory_space<vmem>>, %arg14: memref<4x256xf32, #tpu.memory_space<vmem>>, %arg15: memref<1x4x2xf32, #tpu.memory_space<vmem>>) attributes {dimension_semantics = [#tpu.dimension_semantics<parallel>], iteration_bounds = array<i64: 2>, scalar_prefetch = 0 : i64, scratch_operands = 0 : i64, tpu.core_type = #tpu.core_type<tc>, window_params = [{transform_indices = @transform_0, window_bounds = array<i64: 4, 256>}, {transform_indices = @transform_1, window_bounds = array<i64: 4, 256>}, {transform_indices = @transform_2, window_bounds = array<i64: 4, 256>}, {pipeline_mode = #tpu.pipeline_mode<synchronous>, transform_indices = @transform_3, window_bounds = array<i64: 4, 1>}, {pipeline_mode = #tpu.pipeline_mode<synchronous>, transform_indices = @transform_4, window_bounds = array<i64: 4, 1>}, {pipeline_mode = #tpu.pipeline_mode<synchronous>, transform_indices = @transform_5, window_bounds = array<i64: 4, 1>}, {pipeline_mode = #tpu.pipeline_mode<synchronous>, transform_indices = @transform_6, window_bounds = array<i64: 4, 1>}, {pipeline_mode = #tpu.pipeline_mode<synchronous>, transform_indices = @transform_7, window_bounds = array<i64: 4, 1>}, {pipeline_mode = #tpu.pipeline_mode<synchronous>, transform_indices = @transform_8, window_bounds = array<i64: 4, 1>}, {pipeline_mode = #tpu.pipeline_mode<synchronous>, transform_indices = @transform_9, window_bounds = array<i64: 4, 4>}, {pipeline_mode = #tpu.pipeline_mode<synchronous>, transform_indices = @transform_10, window_bounds = array<i64: 4, 4>}, {pipeline_mode = #tpu.pipeline_mode<synchronous>, transform_indices = @transform_11, window_bounds = array<i64: 4, 4>}, {pipeline_mode = #tpu.pipeline_mode<synchronous>, transform_indices = @transform_12, window_bounds = array<i64: 4, 1>}, {transform_indices = @transform_13, window_bounds = array<i64: 4, 256>}, {transform_indices = @transform_14, window_bounds = array<i64: 1, 4, 2>}]} {
    %c0 = arith.constant 0 : index
    %c0_0 = arith.constant 0 : index
    %0 = vector.load %arg1[%c0, %c0_0] : memref<4x256xf32, #tpu.memory_space<vmem>>, vector<4x256xf32>
    %c0_1 = arith.constant 0 : index
    %c0_2 = arith.constant 0 : index
    %1 = vector.load %arg4[%c0_1, %c0_2] : memref<4x1xf32, #tpu.memory_space<vmem>>, vector<4x1xf32>
    %2 = vector.broadcast %1 : vector<4x1xf32> to vector<4x256xf32>
    %3 = arith.mulf %0, %2 : vector<4x256xf32>
    %c0_3 = arith.constant 0 : index
    %c0_4 = arith.constant 0 : index
    %4 = vector.load %arg7[%c0_3, %c0_4] : memref<4x1xf32, #tpu.memory_space<vmem>>, vector<4x1xf32>
    %5 = vector.broadcast %4 : vector<4x1xf32> to vector<4x256xf32>
    %6 = arith.addf %3, %5 : vector<4x256xf32>
    %cst = arith.constant 0.000000e+00 : f32
    %7 = vector.broadcast %cst : f32 to vector<4x256xf32>
    %8 = arith.maximumf %6, %7 : vector<4x256xf32>
    %c0_5 = arith.constant 0 : index
    %c0_6 = arith.constant 0 : index
    %9 = vector.load %arg10[%c0_5, %c0_6] : memref<4x4xf32, #tpu.memory_space<vmem>>, vector<4x4xf32>
    %cst_7 = arith.constant dense<0.000000e+00> : vector<4x256xf32>
    %10 = tpu.matmul %9, %8, %cst_7 {dimension_numbers = #tpu.dot_dimension_numbers<[1], [0], [0], [1], [0, 0, 1, 1], [], []>} : vector<4x4xf32>, vector<4x256xf32>, vector<4x256xf32> -> vector<4x256xf32>
    %c0_8 = arith.constant 0 : index
    %c0_9 = arith.constant 0 : index
    %11 = vector.load %arg2[%c0_8, %c0_9] : memref<4x256xf32, #tpu.memory_space<vmem>>, vector<4x256xf32>
    %c0_10 = arith.constant 0 : index
    %c0_11 = arith.constant 0 : index
    %12 = vector.load %arg5[%c0_10, %c0_11] : memref<4x1xf32, #tpu.memory_space<vmem>>, vector<4x1xf32>
    %13 = vector.broadcast %12 : vector<4x1xf32> to vector<4x256xf32>
    %14 = arith.mulf %11, %13 : vector<4x256xf32>
    %c0_12 = arith.constant 0 : index
    %c0_13 = arith.constant 0 : index
    %15 = vector.load %arg8[%c0_12, %c0_13] : memref<4x1xf32, #tpu.memory_space<vmem>>, vector<4x1xf32>
    %16 = vector.broadcast %15 : vector<4x1xf32> to vector<4x256xf32>
    %17 = arith.addf %14, %16 : vector<4x256xf32>
    %cst_14 = arith.constant 0.000000e+00 : f32
    %18 = vector.broadcast %cst_14 : f32 to vector<4x256xf32>
    %19 = arith.maximumf %17, %18 : vector<4x256xf32>
    %c0_15 = arith.constant 0 : index
    %c0_16 = arith.constant 0 : index
    %20 = vector.load %arg11[%c0_15, %c0_16] : memref<4x4xf32, #tpu.memory_space<vmem>>, vector<4x4xf32>
    %cst_17 = arith.constant dense<0.000000e+00> : vector<4x256xf32>
    %21 = tpu.matmul %20, %19, %cst_17 {dimension_numbers = #tpu.dot_dimension_numbers<[1], [0], [0], [1], [0, 0, 1, 1], [], []>} : vector<4x4xf32>, vector<4x256xf32>, vector<4x256xf32> -> vector<4x256xf32>
    %22 = arith.addf %10, %21 : vector<4x256xf32>
    %c0_18 = arith.constant 0 : index
    %c0_19 = arith.constant 0 : index
    %23 = vector.load %arg3[%c0_18, %c0_19] : memref<4x256xf32, #tpu.memory_space<vmem>>, vector<4x256xf32>
    %c0_20 = arith.constant 0 : index
    %c0_21 = arith.constant 0 : index
    %24 = vector.load %arg6[%c0_20, %c0_21] : memref<4x1xf32, #tpu.memory_space<vmem>>, vector<4x1xf32>
    %25 = vector.broadcast %24 : vector<4x1xf32> to vector<4x256xf32>
    %26 = arith.mulf %23, %25 : vector<4x256xf32>
    %c0_22 = arith.constant 0 : index
    %c0_23 = arith.constant 0 : index
    %27 = vector.load %arg9[%c0_22, %c0_23] : memref<4x1xf32, #tpu.memory_space<vmem>>, vector<4x1xf32>
    %28 = vector.broadcast %27 : vector<4x1xf32> to vector<4x256xf32>
    %29 = arith.addf %26, %28 : vector<4x256xf32>
    %cst_24 = arith.constant 0.000000e+00 : f32
    %30 = vector.broadcast %cst_24 : f32 to vector<4x256xf32>
    %31 = arith.maximumf %29, %30 : vector<4x256xf32>
    %c0_25 = arith.constant 0 : index
    %c0_26 = arith.constant 0 : index
    %32 = vector.load %arg12[%c0_25, %c0_26] : memref<4x4xf32, #tpu.memory_space<vmem>>, vector<4x4xf32>
    %cst_27 = arith.constant dense<0.000000e+00> : vector<4x256xf32>
    %33 = tpu.matmul %32, %31, %cst_27 {dimension_numbers = #tpu.dot_dimension_numbers<[1], [0], [0], [1], [0, 0, 1, 1], [], []>} : vector<4x4xf32>, vector<4x256xf32>, vector<4x256xf32> -> vector<4x256xf32>
    %34 = arith.addf %22, %33 : vector<4x256xf32>
    %c0_28 = arith.constant 0 : index
    %c0_29 = arith.constant 0 : index
    %35 = vector.load %arg13[%c0_28, %c0_29] : memref<4x1xf32, #tpu.memory_space<vmem>>, vector<4x1xf32>
    %36 = vector.broadcast %35 : vector<4x1xf32> to vector<4x256xf32>
    %37 = arith.addf %34, %36 : vector<4x256xf32>
    %c0_30 = arith.constant 0 : index
    %c0_31 = arith.constant 0 : index
    %38 = vector.load %arg14[%c0_30, %c0_31] : memref<4x256xf32, #tpu.memory_space<vmem>>, vector<4x256xf32>
    tpu.vector_store %arg14[%c0_30, %c0_31], %37 {strides = array<i32>} : memref<4x256xf32, #tpu.memory_space<vmem>>, vector<4x256xf32>,
    %cst_32 = arith.constant dense<0.000000e+00> : vector<4xf32>
    %39 = vector.multi_reduction <add>, %37, %cst_32 [1] : vector<4x256xf32> to vector<4xf32>
    %40 = vector.shape_cast %39 : vector<4xf32> to vector<4x1xf32>
    %41 = arith.mulf %37, %37 : vector<4x256xf32>
    %cst_33 = arith.constant dense<0.000000e+00> : vector<4xf32>
    %42 = vector.multi_reduction <add>, %41, %cst_33 [1] : vector<4x256xf32> to vector<4xf32>
    %43 = vector.shape_cast %42 : vector<4xf32> to vector<4x1xf32>
    %44 = tpu.concatenate %40, %43 in 1 : vector<4x1xf32>, vector<4x1xf32> -> vector<4x2xf32>
    %45 = vector.shape_cast %44 : vector<4x2xf32> to vector<1x4x2xf32>
    %c0_34 = arith.constant 0 : index
    %c0_35 = arith.constant 0 : index
    %c0_36 = arith.constant 0 : index
    %46 = vector.load %arg15[%c0_34, %c0_35, %c0_36] : memref<1x4x2xf32, #tpu.memory_space<vmem>>, vector<1x4x2xf32>
    tpu.vector_store %arg15[%c0_34, %c0_35, %c0_36], %45 {strides = array<i32>} : memref<1x4x2xf32, #tpu.memory_space<vmem>>, vector<1x4x2xf32>,
    return
  }
  func.func @transform_0(%arg0: i32) -> (i32, i32) {
    %c0_i32 = arith.constant 0 : i32
    %c0_i32_0 = arith.constant 0 : i32
    return %c0_i32, %arg0 : i32, i32
  }
  func.func @transform_1(%arg0: i32) -> (i32, i32) {
    %c0_i32 = arith.constant 0 : i32
    %c0_i32_0 = arith.constant 0 : i32
    return %c0_i32, %arg0 : i32, i32
  }
  func.func @transform_2(%arg0: i32) -> (i32, i32) {
    %c0_i32 = arith.constant 0 : i32
    %c0_i32_0 = arith.constant 0 : i32
    return %c0_i32, %arg0 : i32, i32
  }
  func.func @transform_3(%arg0: i32) -> (i32, i32) {
    %c0_i32 = arith.constant 0 : i32
    %c0_i32_0 = arith.constant 0 : i32
    %c0_i32_1 = arith.constant 0 : i32
    return %c0_i32, %c0_i32_0 : i32, i32
  }
  func.func @transform_4(%arg0: i32) -> (i32, i32) {
    %c0_i32 = arith.constant 0 : i32
    %c0_i32_0 = arith.constant 0 : i32
    %c0_i32_1 = arith.constant 0 : i32
    return %c0_i32, %c0_i32_0 : i32, i32
  }
  func.func @transform_5(%arg0: i32) -> (i32, i32) {
    %c0_i32 = arith.constant 0 : i32
    %c0_i32_0 = arith.constant 0 : i32
    %c0_i32_1 = arith.constant 0 : i32
    return %c0_i32, %c0_i32_0 : i32, i32
  }
  func.func @transform_6(%arg0: i32) -> (i32, i32) {
    %c0_i32 = arith.constant 0 : i32
    %c0_i32_0 = arith.constant 0 : i32
    %c0_i32_1 = arith.constant 0 : i32
    return %c0_i32, %c0_i32_0 : i32, i32
  }
  func.func @transform_7(%arg0: i32) -> (i32, i32) {
    %c0_i32 = arith.constant 0 : i32
    %c0_i32_0 = arith.constant 0 : i32
    %c0_i32_1 = arith.constant 0 : i32
    return %c0_i32, %c0_i32_0 : i32, i32
  }
  func.func @transform_8(%arg0: i32) -> (i32, i32) {
    %c0_i32 = arith.constant 0 : i32
    %c0_i32_0 = arith.constant 0 : i32
    %c0_i32_1 = arith.constant 0 : i32
    return %c0_i32, %c0_i32_0 : i32, i32
  }
  func.func @transform_9(%arg0: i32) -> (i32, i32) {
    %c0_i32 = arith.constant 0 : i32
    %c0_i32_0 = arith.constant 0 : i32
    %c0_i32_1 = arith.constant 0 : i32
    return %c0_i32, %c0_i32_0 : i32, i32
  }
  func.func @transform_10(%arg0: i32) -> (i32, i32) {
    %c0_i32 = arith.constant 0 : i32
    %c0_i32_0 = arith.constant 0 : i32
    %c0_i32_1 = arith.constant 0 : i32
    return %c0_i32, %c0_i32_0 : i32, i32
  }
  func.func @transform_11(%arg0: i32) -> (i32, i32) {
    %c0_i32 = arith.constant 0 : i32
    %c0_i32_0 = arith.constant 0 : i32
    %c0_i32_1 = arith.constant 0 : i32
    return %c0_i32, %c0_i32_0 : i32, i32
  }
  func.func @transform_12(%arg0: i32) -> (i32, i32) {
    %c0_i32 = arith.constant 0 : i32
    %c0_i32_0 = arith.constant 0 : i32
    %c0_i32_1 = arith.constant 0 : i32
    return %c0_i32, %c0_i32_0 : i32, i32
  }
  func.func @transform_13(%arg0: i32) -> (i32, i32) {
    %c0_i32 = arith.constant 0 : i32
    %c0_i32_0 = arith.constant 0 : i32
    return %c0_i32, %arg0 : i32, i32
  }
  func.func @transform_14(%arg0: i32) -> (i32, i32, i32) {
    %c0_i32 = arith.constant 0 : i32
    %c0_i32_0 = arith.constant 0 : i32
    %c0_i32_1 = arith.constant 0 : i32
    return %arg0, %c0_i32, %c0_i32_0 : i32, i32, i32
  }
}

module attributes {stable_mosaic.version = 11 : i64} {
  func.func @kernel(%arg0: i32, %arg1: memref<4x256xf32, #tpu.memory_space<vmem>>, %arg2: memref<4x256xf32, #tpu.memory_space<vmem>>, %arg3: memref<4x256xf32, #tpu.memory_space<vmem>>, %arg4: memref<4x256xf32, #tpu.memory_space<vmem>>, %arg5: memref<4x1xf32, #tpu.memory_space<vmem>>, %arg6: memref<4x1xf32, #tpu.memory_space<vmem>>, %arg7: memref<4x1xf32, #tpu.memory_space<vmem>>, %arg8: memref<4x1xf32, #tpu.memory_space<vmem>>, %arg9: memref<4x1xf32, #tpu.memory_space<vmem>>, %arg10: memref<4x1xf32, #tpu.memory_space<vmem>>, %arg11: memref<4x1xf32, #tpu.memory_space<vmem>>, %arg12: memref<4x1xf32, #tpu.memory_space<vmem>>, %arg13: memref<4x4xf32, #tpu.memory_space<vmem>>, %arg14: memref<4x4xf32, #tpu.memory_space<vmem>>, %arg15: memref<4x4xf32, #tpu.memory_space<vmem>>, %arg16: memref<4x4xf32, #tpu.memory_space<vmem>>, %arg17: memref<4x1xf32, #tpu.memory_space<vmem>>, %arg18: memref<4x256xf32, #tpu.memory_space<vmem>>, %arg19: memref<1x4x2xf32, #tpu.memory_space<vmem>>) attributes {dimension_semantics = [#tpu.dimension_semantics<parallel>], iteration_bounds = array<i64: 2>, scalar_prefetch = 0 : i64, scratch_operands = 0 : i64, tpu.core_type = #tpu.core_type<tc>, window_params = [{transform_indices = @transform_0, window_bounds = array<i64: 4, 256>}, {transform_indices = @transform_1, window_bounds = array<i64: 4, 256>}, {transform_indices = @transform_2, window_bounds = array<i64: 4, 256>}, {transform_indices = @transform_3, window_bounds = array<i64: 4, 256>}, {pipeline_mode = #tpu.pipeline_mode<synchronous>, transform_indices = @transform_4, window_bounds = array<i64: 4, 1>}, {pipeline_mode = #tpu.pipeline_mode<synchronous>, transform_indices = @transform_5, window_bounds = array<i64: 4, 1>}, {pipeline_mode = #tpu.pipeline_mode<synchronous>, transform_indices = @transform_6, window_bounds = array<i64: 4, 1>}, {pipeline_mode = #tpu.pipeline_mode<synchronous>, transform_indices = @transform_7, window_bounds = array<i64: 4, 1>}, {pipeline_mode = #tpu.pipeline_mode<synchronous>, transform_indices = @transform_8, window_bounds = array<i64: 4, 1>}, {pipeline_mode = #tpu.pipeline_mode<synchronous>, transform_indices = @transform_9, window_bounds = array<i64: 4, 1>}, {pipeline_mode = #tpu.pipeline_mode<synchronous>, transform_indices = @transform_10, window_bounds = array<i64: 4, 1>}, {pipeline_mode = #tpu.pipeline_mode<synchronous>, transform_indices = @transform_11, window_bounds = array<i64: 4, 1>}, {pipeline_mode = #tpu.pipeline_mode<synchronous>, transform_indices = @transform_12, window_bounds = array<i64: 4, 4>}, {pipeline_mode = #tpu.pipeline_mode<synchronous>, transform_indices = @transform_13, window_bounds = array<i64: 4, 4>}, {pipeline_mode = #tpu.pipeline_mode<synchronous>, transform_indices = @transform_14, window_bounds = array<i64: 4, 4>}, {pipeline_mode = #tpu.pipeline_mode<synchronous>, transform_indices = @transform_15, window_bounds = array<i64: 4, 4>}, {pipeline_mode = #tpu.pipeline_mode<synchronous>, transform_indices = @transform_16, window_bounds = array<i64: 4, 1>}, {transform_indices = @transform_17, window_bounds = array<i64: 4, 256>}, {transform_indices = @transform_18, window_bounds = array<i64: 1, 4, 2>}]} {
    %c0 = arith.constant 0 : index
    %c0_0 = arith.constant 0 : index
    %0 = vector.load %arg1[%c0, %c0_0] : memref<4x256xf32, #tpu.memory_space<vmem>>, vector<4x256xf32>
    %c0_1 = arith.constant 0 : index
    %c0_2 = arith.constant 0 : index
    %1 = vector.load %arg5[%c0_1, %c0_2] : memref<4x1xf32, #tpu.memory_space<vmem>>, vector<4x1xf32>
    %2 = vector.broadcast %1 : vector<4x1xf32> to vector<4x256xf32>
    %3 = arith.mulf %0, %2 : vector<4x256xf32>
    %c0_3 = arith.constant 0 : index
    %c0_4 = arith.constant 0 : index
    %4 = vector.load %arg9[%c0_3, %c0_4] : memref<4x1xf32, #tpu.memory_space<vmem>>, vector<4x1xf32>
    %5 = vector.broadcast %4 : vector<4x1xf32> to vector<4x256xf32>
    %6 = arith.addf %3, %5 : vector<4x256xf32>
    %cst = arith.constant 0.000000e+00 : f32
    %7 = vector.broadcast %cst : f32 to vector<4x256xf32>
    %8 = arith.maximumf %6, %7 : vector<4x256xf32>
    %c0_5 = arith.constant 0 : index
    %c0_6 = arith.constant 0 : index
    %9 = vector.load %arg13[%c0_5, %c0_6] : memref<4x4xf32, #tpu.memory_space<vmem>>, vector<4x4xf32>
    %cst_7 = arith.constant dense<0.000000e+00> : vector<4x256xf32>
    %10 = tpu.matmul %9, %8, %cst_7 {dimension_numbers = #tpu.dot_dimension_numbers<[1], [0], [0], [1], [0, 0, 1, 1], [], []>} : vector<4x4xf32>, vector<4x256xf32>, vector<4x256xf32> -> vector<4x256xf32>
    %c0_8 = arith.constant 0 : index
    %c0_9 = arith.constant 0 : index
    %11 = vector.load %arg2[%c0_8, %c0_9] : memref<4x256xf32, #tpu.memory_space<vmem>>, vector<4x256xf32>
    %c0_10 = arith.constant 0 : index
    %c0_11 = arith.constant 0 : index
    %12 = vector.load %arg6[%c0_10, %c0_11] : memref<4x1xf32, #tpu.memory_space<vmem>>, vector<4x1xf32>
    %13 = vector.broadcast %12 : vector<4x1xf32> to vector<4x256xf32>
    %14 = arith.mulf %11, %13 : vector<4x256xf32>
    %c0_12 = arith.constant 0 : index
    %c0_13 = arith.constant 0 : index
    %15 = vector.load %arg10[%c0_12, %c0_13] : memref<4x1xf32, #tpu.memory_space<vmem>>, vector<4x1xf32>
    %16 = vector.broadcast %15 : vector<4x1xf32> to vector<4x256xf32>
    %17 = arith.addf %14, %16 : vector<4x256xf32>
    %cst_14 = arith.constant 0.000000e+00 : f32
    %18 = vector.broadcast %cst_14 : f32 to vector<4x256xf32>
    %19 = arith.maximumf %17, %18 : vector<4x256xf32>
    %c0_15 = arith.constant 0 : index
    %c0_16 = arith.constant 0 : index
    %20 = vector.load %arg14[%c0_15, %c0_16] : memref<4x4xf32, #tpu.memory_space<vmem>>, vector<4x4xf32>
    %cst_17 = arith.constant dense<0.000000e+00> : vector<4x256xf32>
    %21 = tpu.matmul %20, %19, %cst_17 {dimension_numbers = #tpu.dot_dimension_numbers<[1], [0], [0], [1], [0, 0, 1, 1], [], []>} : vector<4x4xf32>, vector<4x256xf32>, vector<4x256xf32> -> vector<4x256xf32>
    %22 = arith.addf %10, %21 : vector<4x256xf32>
    %c0_18 = arith.constant 0 : index
    %c0_19 = arith.constant 0 : index
    %23 = vector.load %arg3[%c0_18, %c0_19] : memref<4x256xf32, #tpu.memory_space<vmem>>, vector<4x256xf32>
    %c0_20 = arith.constant 0 : index
    %c0_21 = arith.constant 0 : index
    %24 = vector.load %arg7[%c0_20, %c0_21] : memref<4x1xf32, #tpu.memory_space<vmem>>, vector<4x1xf32>
    %25 = vector.broadcast %24 : vector<4x1xf32> to vector<4x256xf32>
    %26 = arith.mulf %23, %25 : vector<4x256xf32>
    %c0_22 = arith.constant 0 : index
    %c0_23 = arith.constant 0 : index
    %27 = vector.load %arg11[%c0_22, %c0_23] : memref<4x1xf32, #tpu.memory_space<vmem>>, vector<4x1xf32>
    %28 = vector.broadcast %27 : vector<4x1xf32> to vector<4x256xf32>
    %29 = arith.addf %26, %28 : vector<4x256xf32>
    %cst_24 = arith.constant 0.000000e+00 : f32
    %30 = vector.broadcast %cst_24 : f32 to vector<4x256xf32>
    %31 = arith.maximumf %29, %30 : vector<4x256xf32>
    %c0_25 = arith.constant 0 : index
    %c0_26 = arith.constant 0 : index
    %32 = vector.load %arg15[%c0_25, %c0_26] : memref<4x4xf32, #tpu.memory_space<vmem>>, vector<4x4xf32>
    %cst_27 = arith.constant dense<0.000000e+00> : vector<4x256xf32>
    %33 = tpu.matmul %32, %31, %cst_27 {dimension_numbers = #tpu.dot_dimension_numbers<[1], [0], [0], [1], [0, 0, 1, 1], [], []>} : vector<4x4xf32>, vector<4x256xf32>, vector<4x256xf32> -> vector<4x256xf32>
    %34 = arith.addf %22, %33 : vector<4x256xf32>
    %c0_28 = arith.constant 0 : index
    %c0_29 = arith.constant 0 : index
    %35 = vector.load %arg4[%c0_28, %c0_29] : memref<4x256xf32, #tpu.memory_space<vmem>>, vector<4x256xf32>
    %c0_30 = arith.constant 0 : index
    %c0_31 = arith.constant 0 : index
    %36 = vector.load %arg8[%c0_30, %c0_31] : memref<4x1xf32, #tpu.memory_space<vmem>>, vector<4x1xf32>
    %37 = vector.broadcast %36 : vector<4x1xf32> to vector<4x256xf32>
    %38 = arith.mulf %35, %37 : vector<4x256xf32>
    %c0_32 = arith.constant 0 : index
    %c0_33 = arith.constant 0 : index
    %39 = vector.load %arg12[%c0_32, %c0_33] : memref<4x1xf32, #tpu.memory_space<vmem>>, vector<4x1xf32>
    %40 = vector.broadcast %39 : vector<4x1xf32> to vector<4x256xf32>
    %41 = arith.addf %38, %40 : vector<4x256xf32>
    %cst_34 = arith.constant 0.000000e+00 : f32
    %42 = vector.broadcast %cst_34 : f32 to vector<4x256xf32>
    %43 = arith.maximumf %41, %42 : vector<4x256xf32>
    %c0_35 = arith.constant 0 : index
    %c0_36 = arith.constant 0 : index
    %44 = vector.load %arg16[%c0_35, %c0_36] : memref<4x4xf32, #tpu.memory_space<vmem>>, vector<4x4xf32>
    %cst_37 = arith.constant dense<0.000000e+00> : vector<4x256xf32>
    %45 = tpu.matmul %44, %43, %cst_37 {dimension_numbers = #tpu.dot_dimension_numbers<[1], [0], [0], [1], [0, 0, 1, 1], [], []>} : vector<4x4xf32>, vector<4x256xf32>, vector<4x256xf32> -> vector<4x256xf32>
    %46 = arith.addf %34, %45 : vector<4x256xf32>
    %c0_38 = arith.constant 0 : index
    %c0_39 = arith.constant 0 : index
    %47 = vector.load %arg17[%c0_38, %c0_39] : memref<4x1xf32, #tpu.memory_space<vmem>>, vector<4x1xf32>
    %48 = vector.broadcast %47 : vector<4x1xf32> to vector<4x256xf32>
    %49 = arith.addf %46, %48 : vector<4x256xf32>
    %c0_40 = arith.constant 0 : index
    %c0_41 = arith.constant 0 : index
    %50 = vector.load %arg18[%c0_40, %c0_41] : memref<4x256xf32, #tpu.memory_space<vmem>>, vector<4x256xf32>
    tpu.vector_store %arg18[%c0_40, %c0_41], %49 {strides = array<i32>} : memref<4x256xf32, #tpu.memory_space<vmem>>, vector<4x256xf32>,
    %cst_42 = arith.constant dense<0.000000e+00> : vector<4xf32>
    %51 = vector.multi_reduction <add>, %49, %cst_42 [1] : vector<4x256xf32> to vector<4xf32>
    %52 = vector.shape_cast %51 : vector<4xf32> to vector<4x1xf32>
    %53 = arith.mulf %49, %49 : vector<4x256xf32>
    %cst_43 = arith.constant dense<0.000000e+00> : vector<4xf32>
    %54 = vector.multi_reduction <add>, %53, %cst_43 [1] : vector<4x256xf32> to vector<4xf32>
    %55 = vector.shape_cast %54 : vector<4xf32> to vector<4x1xf32>
    %56 = tpu.concatenate %52, %55 in 1 : vector<4x1xf32>, vector<4x1xf32> -> vector<4x2xf32>
    %57 = vector.shape_cast %56 : vector<4x2xf32> to vector<1x4x2xf32>
    %c0_44 = arith.constant 0 : index
    %c0_45 = arith.constant 0 : index
    %c0_46 = arith.constant 0 : index
    %58 = vector.load %arg19[%c0_44, %c0_45, %c0_46] : memref<1x4x2xf32, #tpu.memory_space<vmem>>, vector<1x4x2xf32>
    tpu.vector_store %arg19[%c0_44, %c0_45, %c0_46], %57 {strides = array<i32>} : memref<1x4x2xf32, #tpu.memory_space<vmem>>, vector<1x4x2xf32>,
    return
  }
  func.func @transform_0(%arg0: i32) -> (i32, i32) {
    %c0_i32 = arith.constant 0 : i32
    %c0_i32_0 = arith.constant 0 : i32
    return %c0_i32, %arg0 : i32, i32
  }
  func.func @transform_1(%arg0: i32) -> (i32, i32) {
    %c0_i32 = arith.constant 0 : i32
    %c0_i32_0 = arith.constant 0 : i32
    return %c0_i32, %arg0 : i32, i32
  }
  func.func @transform_2(%arg0: i32) -> (i32, i32) {
    %c0_i32 = arith.constant 0 : i32
    %c0_i32_0 = arith.constant 0 : i32
    return %c0_i32, %arg0 : i32, i32
  }
  func.func @transform_3(%arg0: i32) -> (i32, i32) {
    %c0_i32 = arith.constant 0 : i32
    %c0_i32_0 = arith.constant 0 : i32
    return %c0_i32, %arg0 : i32, i32
  }
  func.func @transform_4(%arg0: i32) -> (i32, i32) {
    %c0_i32 = arith.constant 0 : i32
    %c0_i32_0 = arith.constant 0 : i32
    %c0_i32_1 = arith.constant 0 : i32
    return %c0_i32, %c0_i32_0 : i32, i32
  }
  func.func @transform_5(%arg0: i32) -> (i32, i32) {
    %c0_i32 = arith.constant 0 : i32
    %c0_i32_0 = arith.constant 0 : i32
    %c0_i32_1 = arith.constant 0 : i32
    return %c0_i32, %c0_i32_0 : i32, i32
  }
  func.func @transform_6(%arg0: i32) -> (i32, i32) {
    %c0_i32 = arith.constant 0 : i32
    %c0_i32_0 = arith.constant 0 : i32
    %c0_i32_1 = arith.constant 0 : i32
    return %c0_i32, %c0_i32_0 : i32, i32
  }
  func.func @transform_7(%arg0: i32) -> (i32, i32) {
    %c0_i32 = arith.constant 0 : i32
    %c0_i32_0 = arith.constant 0 : i32
    %c0_i32_1 = arith.constant 0 : i32
    return %c0_i32, %c0_i32_0 : i32, i32
  }
  func.func @transform_8(%arg0: i32) -> (i32, i32) {
    %c0_i32 = arith.constant 0 : i32
    %c0_i32_0 = arith.constant 0 : i32
    %c0_i32_1 = arith.constant 0 : i32
    return %c0_i32, %c0_i32_0 : i32, i32
  }
  func.func @transform_9(%arg0: i32) -> (i32, i32) {
    %c0_i32 = arith.constant 0 : i32
    %c0_i32_0 = arith.constant 0 : i32
    %c0_i32_1 = arith.constant 0 : i32
    return %c0_i32, %c0_i32_0 : i32, i32
  }
  func.func @transform_10(%arg0: i32) -> (i32, i32) {
    %c0_i32 = arith.constant 0 : i32
    %c0_i32_0 = arith.constant 0 : i32
    %c0_i32_1 = arith.constant 0 : i32
    return %c0_i32, %c0_i32_0 : i32, i32
  }
  func.func @transform_11(%arg0: i32) -> (i32, i32) {
    %c0_i32 = arith.constant 0 : i32
    %c0_i32_0 = arith.constant 0 : i32
    %c0_i32_1 = arith.constant 0 : i32
    return %c0_i32, %c0_i32_0 : i32, i32
  }
  func.func @transform_12(%arg0: i32) -> (i32, i32) {
    %c0_i32 = arith.constant 0 : i32
    %c0_i32_0 = arith.constant 0 : i32
    %c0_i32_1 = arith.constant 0 : i32
    return %c0_i32, %c0_i32_0 : i32, i32
  }
  func.func @transform_13(%arg0: i32) -> (i32, i32) {
    %c0_i32 = arith.constant 0 : i32
    %c0_i32_0 = arith.constant 0 : i32
    %c0_i32_1 = arith.constant 0 : i32
    return %c0_i32, %c0_i32_0 : i32, i32
  }
  func.func @transform_14(%arg0: i32) -> (i32, i32) {
    %c0_i32 = arith.constant 0 : i32
    %c0_i32_0 = arith.constant 0 : i32
    %c0_i32_1 = arith.constant 0 : i32
    return %c0_i32, %c0_i32_0 : i32, i32
  }
  func.func @transform_15(%arg0: i32) -> (i32, i32) {
    %c0_i32 = arith.constant 0 : i32
    %c0_i32_0 = arith.constant 0 : i32
    %c0_i32_1 = arith.constant 0 : i32
    return %c0_i32, %c0_i32_0 : i32, i32
  }
  func.func @transform_16(%arg0: i32) -> (i32, i32) {
    %c0_i32 = arith.constant 0 : i32
    %c0_i32_0 = arith.constant 0 : i32
    %c0_i32_1 = arith.constant 0 : i32
    return %c0_i32, %c0_i32_0 : i32, i32
  }
  func.func @transform_17(%arg0: i32) -> (i32, i32) {
    %c0_i32 = arith.constant 0 : i32
    %c0_i32_0 = arith.constant 0 : i32
    return %c0_i32, %arg0 : i32, i32
  }
  func.func @transform_18(%arg0: i32) -> (i32, i32, i32) {
    %c0_i32 = arith.constant 0 : i32
    %c0_i32_0 = arith.constant 0 : i32
    %c0_i32_1 = arith.constant 0 : i32
    return %arg0, %c0_i32, %c0_i32_0 : i32, i32, i32
  }
}

module attributes {stable_mosaic.version = 11 : i64} {
  func.func @kernel(%arg0: i32, %arg1: memref<4x256xf32, #tpu.memory_space<vmem>>, %arg2: memref<4x256xf32, #tpu.memory_space<vmem>>, %arg3: memref<4x256xf32, #tpu.memory_space<vmem>>, %arg4: memref<4x256xf32, #tpu.memory_space<vmem>>, %arg5: memref<4x256xf32, #tpu.memory_space<vmem>>, %arg6: memref<4x1xf32, #tpu.memory_space<vmem>>, %arg7: memref<4x1xf32, #tpu.memory_space<vmem>>, %arg8: memref<4x1xf32, #tpu.memory_space<vmem>>, %arg9: memref<4x1xf32, #tpu.memory_space<vmem>>, %arg10: memref<4x1xf32, #tpu.memory_space<vmem>>, %arg11: memref<4x1xf32, #tpu.memory_space<vmem>>, %arg12: memref<4x1xf32, #tpu.memory_space<vmem>>, %arg13: memref<4x1xf32, #tpu.memory_space<vmem>>, %arg14: memref<4x1xf32, #tpu.memory_space<vmem>>, %arg15: memref<4x1xf32, #tpu.memory_space<vmem>>, %arg16: memref<4x4xf32, #tpu.memory_space<vmem>>, %arg17: memref<4x4xf32, #tpu.memory_space<vmem>>, %arg18: memref<4x4xf32, #tpu.memory_space<vmem>>, %arg19: memref<4x4xf32, #tpu.memory_space<vmem>>, %arg20: memref<4x4xf32, #tpu.memory_space<vmem>>, %arg21: memref<4x1xf32, #tpu.memory_space<vmem>>, %arg22: memref<4x256xf32, #tpu.memory_space<vmem>>) attributes {dimension_semantics = [#tpu.dimension_semantics<parallel>], iteration_bounds = array<i64: 2>, scalar_prefetch = 0 : i64, scratch_operands = 0 : i64, tpu.core_type = #tpu.core_type<tc>, window_params = [{transform_indices = @transform_0, window_bounds = array<i64: 4, 256>}, {transform_indices = @transform_1, window_bounds = array<i64: 4, 256>}, {transform_indices = @transform_2, window_bounds = array<i64: 4, 256>}, {transform_indices = @transform_3, window_bounds = array<i64: 4, 256>}, {transform_indices = @transform_4, window_bounds = array<i64: 4, 256>}, {pipeline_mode = #tpu.pipeline_mode<synchronous>, transform_indices = @transform_5, window_bounds = array<i64: 4, 1>}, {pipeline_mode = #tpu.pipeline_mode<synchronous>, transform_indices = @transform_6, window_bounds = array<i64: 4, 1>}, {pipeline_mode = #tpu.pipeline_mode<synchronous>, transform_indices = @transform_7, window_bounds = array<i64: 4, 1>}, {pipeline_mode = #tpu.pipeline_mode<synchronous>, transform_indices = @transform_8, window_bounds = array<i64: 4, 1>}, {pipeline_mode = #tpu.pipeline_mode<synchronous>, transform_indices = @transform_9, window_bounds = array<i64: 4, 1>}, {pipeline_mode = #tpu.pipeline_mode<synchronous>, transform_indices = @transform_10, window_bounds = array<i64: 4, 1>}, {pipeline_mode = #tpu.pipeline_mode<synchronous>, transform_indices = @transform_11, window_bounds = array<i64: 4, 1>}, {pipeline_mode = #tpu.pipeline_mode<synchronous>, transform_indices = @transform_12, window_bounds = array<i64: 4, 1>}, {pipeline_mode = #tpu.pipeline_mode<synchronous>, transform_indices = @transform_13, window_bounds = array<i64: 4, 1>}, {pipeline_mode = #tpu.pipeline_mode<synchronous>, transform_indices = @transform_14, window_bounds = array<i64: 4, 1>}, {pipeline_mode = #tpu.pipeline_mode<synchronous>, transform_indices = @transform_15, window_bounds = array<i64: 4, 4>}, {pipeline_mode = #tpu.pipeline_mode<synchronous>, transform_indices = @transform_16, window_bounds = array<i64: 4, 4>}, {pipeline_mode = #tpu.pipeline_mode<synchronous>, transform_indices = @transform_17, window_bounds = array<i64: 4, 4>}, {pipeline_mode = #tpu.pipeline_mode<synchronous>, transform_indices = @transform_18, window_bounds = array<i64: 4, 4>}, {pipeline_mode = #tpu.pipeline_mode<synchronous>, transform_indices = @transform_19, window_bounds = array<i64: 4, 4>}, {pipeline_mode = #tpu.pipeline_mode<synchronous>, transform_indices = @transform_20, window_bounds = array<i64: 4, 1>}, {transform_indices = @transform_21, window_bounds = array<i64: 4, 256>}]} {
    %c0 = arith.constant 0 : index
    %c0_0 = arith.constant 0 : index
    %0 = vector.load %arg1[%c0, %c0_0] : memref<4x256xf32, #tpu.memory_space<vmem>>, vector<4x256xf32>
    %c0_1 = arith.constant 0 : index
    %c0_2 = arith.constant 0 : index
    %1 = vector.load %arg6[%c0_1, %c0_2] : memref<4x1xf32, #tpu.memory_space<vmem>>, vector<4x1xf32>
    %2 = vector.broadcast %1 : vector<4x1xf32> to vector<4x256xf32>
    %3 = arith.mulf %0, %2 : vector<4x256xf32>
    %c0_3 = arith.constant 0 : index
    %c0_4 = arith.constant 0 : index
    %4 = vector.load %arg11[%c0_3, %c0_4] : memref<4x1xf32, #tpu.memory_space<vmem>>, vector<4x1xf32>
    %5 = vector.broadcast %4 : vector<4x1xf32> to vector<4x256xf32>
    %6 = arith.addf %3, %5 : vector<4x256xf32>
    %cst = arith.constant 0.000000e+00 : f32
    %7 = vector.broadcast %cst : f32 to vector<4x256xf32>
    %8 = arith.maximumf %6, %7 : vector<4x256xf32>
    %c0_5 = arith.constant 0 : index
    %c0_6 = arith.constant 0 : index
    %9 = vector.load %arg16[%c0_5, %c0_6] : memref<4x4xf32, #tpu.memory_space<vmem>>, vector<4x4xf32>
    %cst_7 = arith.constant dense<0.000000e+00> : vector<4x256xf32>
    %10 = tpu.matmul %9, %8, %cst_7 {dimension_numbers = #tpu.dot_dimension_numbers<[1], [0], [0], [1], [0, 0, 1, 1], [], []>} : vector<4x4xf32>, vector<4x256xf32>, vector<4x256xf32> -> vector<4x256xf32>
    %c0_8 = arith.constant 0 : index
    %c0_9 = arith.constant 0 : index
    %11 = vector.load %arg2[%c0_8, %c0_9] : memref<4x256xf32, #tpu.memory_space<vmem>>, vector<4x256xf32>
    %c0_10 = arith.constant 0 : index
    %c0_11 = arith.constant 0 : index
    %12 = vector.load %arg7[%c0_10, %c0_11] : memref<4x1xf32, #tpu.memory_space<vmem>>, vector<4x1xf32>
    %13 = vector.broadcast %12 : vector<4x1xf32> to vector<4x256xf32>
    %14 = arith.mulf %11, %13 : vector<4x256xf32>
    %c0_12 = arith.constant 0 : index
    %c0_13 = arith.constant 0 : index
    %15 = vector.load %arg12[%c0_12, %c0_13] : memref<4x1xf32, #tpu.memory_space<vmem>>, vector<4x1xf32>
    %16 = vector.broadcast %15 : vector<4x1xf32> to vector<4x256xf32>
    %17 = arith.addf %14, %16 : vector<4x256xf32>
    %cst_14 = arith.constant 0.000000e+00 : f32
    %18 = vector.broadcast %cst_14 : f32 to vector<4x256xf32>
    %19 = arith.maximumf %17, %18 : vector<4x256xf32>
    %c0_15 = arith.constant 0 : index
    %c0_16 = arith.constant 0 : index
    %20 = vector.load %arg17[%c0_15, %c0_16] : memref<4x4xf32, #tpu.memory_space<vmem>>, vector<4x4xf32>
    %cst_17 = arith.constant dense<0.000000e+00> : vector<4x256xf32>
    %21 = tpu.matmul %20, %19, %cst_17 {dimension_numbers = #tpu.dot_dimension_numbers<[1], [0], [0], [1], [0, 0, 1, 1], [], []>} : vector<4x4xf32>, vector<4x256xf32>, vector<4x256xf32> -> vector<4x256xf32>
    %22 = arith.addf %10, %21 : vector<4x256xf32>
    %c0_18 = arith.constant 0 : index
    %c0_19 = arith.constant 0 : index
    %23 = vector.load %arg3[%c0_18, %c0_19] : memref<4x256xf32, #tpu.memory_space<vmem>>, vector<4x256xf32>
    %c0_20 = arith.constant 0 : index
    %c0_21 = arith.constant 0 : index
    %24 = vector.load %arg8[%c0_20, %c0_21] : memref<4x1xf32, #tpu.memory_space<vmem>>, vector<4x1xf32>
    %25 = vector.broadcast %24 : vector<4x1xf32> to vector<4x256xf32>
    %26 = arith.mulf %23, %25 : vector<4x256xf32>
    %c0_22 = arith.constant 0 : index
    %c0_23 = arith.constant 0 : index
    %27 = vector.load %arg13[%c0_22, %c0_23] : memref<4x1xf32, #tpu.memory_space<vmem>>, vector<4x1xf32>
    %28 = vector.broadcast %27 : vector<4x1xf32> to vector<4x256xf32>
    %29 = arith.addf %26, %28 : vector<4x256xf32>
    %cst_24 = arith.constant 0.000000e+00 : f32
    %30 = vector.broadcast %cst_24 : f32 to vector<4x256xf32>
    %31 = arith.maximumf %29, %30 : vector<4x256xf32>
    %c0_25 = arith.constant 0 : index
    %c0_26 = arith.constant 0 : index
    %32 = vector.load %arg18[%c0_25, %c0_26] : memref<4x4xf32, #tpu.memory_space<vmem>>, vector<4x4xf32>
    %cst_27 = arith.constant dense<0.000000e+00> : vector<4x256xf32>
    %33 = tpu.matmul %32, %31, %cst_27 {dimension_numbers = #tpu.dot_dimension_numbers<[1], [0], [0], [1], [0, 0, 1, 1], [], []>} : vector<4x4xf32>, vector<4x256xf32>, vector<4x256xf32> -> vector<4x256xf32>
    %34 = arith.addf %22, %33 : vector<4x256xf32>
    %c0_28 = arith.constant 0 : index
    %c0_29 = arith.constant 0 : index
    %35 = vector.load %arg4[%c0_28, %c0_29] : memref<4x256xf32, #tpu.memory_space<vmem>>, vector<4x256xf32>
    %c0_30 = arith.constant 0 : index
    %c0_31 = arith.constant 0 : index
    %36 = vector.load %arg9[%c0_30, %c0_31] : memref<4x1xf32, #tpu.memory_space<vmem>>, vector<4x1xf32>
    %37 = vector.broadcast %36 : vector<4x1xf32> to vector<4x256xf32>
    %38 = arith.mulf %35, %37 : vector<4x256xf32>
    %c0_32 = arith.constant 0 : index
    %c0_33 = arith.constant 0 : index
    %39 = vector.load %arg14[%c0_32, %c0_33] : memref<4x1xf32, #tpu.memory_space<vmem>>, vector<4x1xf32>
    %40 = vector.broadcast %39 : vector<4x1xf32> to vector<4x256xf32>
    %41 = arith.addf %38, %40 : vector<4x256xf32>
    %cst_34 = arith.constant 0.000000e+00 : f32
    %42 = vector.broadcast %cst_34 : f32 to vector<4x256xf32>
    %43 = arith.maximumf %41, %42 : vector<4x256xf32>
    %c0_35 = arith.constant 0 : index
    %c0_36 = arith.constant 0 : index
    %44 = vector.load %arg19[%c0_35, %c0_36] : memref<4x4xf32, #tpu.memory_space<vmem>>, vector<4x4xf32>
    %cst_37 = arith.constant dense<0.000000e+00> : vector<4x256xf32>
    %45 = tpu.matmul %44, %43, %cst_37 {dimension_numbers = #tpu.dot_dimension_numbers<[1], [0], [0], [1], [0, 0, 1, 1], [], []>} : vector<4x4xf32>, vector<4x256xf32>, vector<4x256xf32> -> vector<4x256xf32>
    %46 = arith.addf %34, %45 : vector<4x256xf32>
    %c0_38 = arith.constant 0 : index
    %c0_39 = arith.constant 0 : index
    %47 = vector.load %arg5[%c0_38, %c0_39] : memref<4x256xf32, #tpu.memory_space<vmem>>, vector<4x256xf32>
    %c0_40 = arith.constant 0 : index
    %c0_41 = arith.constant 0 : index
    %48 = vector.load %arg10[%c0_40, %c0_41] : memref<4x1xf32, #tpu.memory_space<vmem>>, vector<4x1xf32>
    %49 = vector.broadcast %48 : vector<4x1xf32> to vector<4x256xf32>
    %50 = arith.mulf %47, %49 : vector<4x256xf32>
    %c0_42 = arith.constant 0 : index
    %c0_43 = arith.constant 0 : index
    %51 = vector.load %arg15[%c0_42, %c0_43] : memref<4x1xf32, #tpu.memory_space<vmem>>, vector<4x1xf32>
    %52 = vector.broadcast %51 : vector<4x1xf32> to vector<4x256xf32>
    %53 = arith.addf %50, %52 : vector<4x256xf32>
    %cst_44 = arith.constant 0.000000e+00 : f32
    %54 = vector.broadcast %cst_44 : f32 to vector<4x256xf32>
    %55 = arith.maximumf %53, %54 : vector<4x256xf32>
    %c0_45 = arith.constant 0 : index
    %c0_46 = arith.constant 0 : index
    %56 = vector.load %arg20[%c0_45, %c0_46] : memref<4x4xf32, #tpu.memory_space<vmem>>, vector<4x4xf32>
    %cst_47 = arith.constant dense<0.000000e+00> : vector<4x256xf32>
    %57 = tpu.matmul %56, %55, %cst_47 {dimension_numbers = #tpu.dot_dimension_numbers<[1], [0], [0], [1], [0, 0, 1, 1], [], []>} : vector<4x4xf32>, vector<4x256xf32>, vector<4x256xf32> -> vector<4x256xf32>
    %58 = arith.addf %46, %57 : vector<4x256xf32>
    %c0_48 = arith.constant 0 : index
    %c0_49 = arith.constant 0 : index
    %59 = vector.load %arg21[%c0_48, %c0_49] : memref<4x1xf32, #tpu.memory_space<vmem>>, vector<4x1xf32>
    %60 = vector.broadcast %59 : vector<4x1xf32> to vector<4x256xf32>
    %61 = arith.addf %58, %60 : vector<4x256xf32>
    %c0_50 = arith.constant 0 : index
    %c0_51 = arith.constant 0 : index
    %62 = vector.load %arg1[%c0_50, %c0_51] : memref<4x256xf32, #tpu.memory_space<vmem>>, vector<4x256xf32>
    %63 = arith.addf %61, %62 : vector<4x256xf32>
    %c0_52 = arith.constant 0 : index
    %c0_53 = arith.constant 0 : index
    %64 = vector.load %arg22[%c0_52, %c0_53] : memref<4x256xf32, #tpu.memory_space<vmem>>, vector<4x256xf32>
    tpu.vector_store %arg22[%c0_52, %c0_53], %63 {strides = array<i32>} : memref<4x256xf32, #tpu.memory_space<vmem>>, vector<4x256xf32>,
    return
  }
  func.func @transform_0(%arg0: i32) -> (i32, i32) {
    %c0_i32 = arith.constant 0 : i32
    %c0_i32_0 = arith.constant 0 : i32
    return %c0_i32, %arg0 : i32, i32
  }
  func.func @transform_1(%arg0: i32) -> (i32, i32) {
    %c0_i32 = arith.constant 0 : i32
    %c0_i32_0 = arith.constant 0 : i32
    return %c0_i32, %arg0 : i32, i32
  }
  func.func @transform_2(%arg0: i32) -> (i32, i32) {
    %c0_i32 = arith.constant 0 : i32
    %c0_i32_0 = arith.constant 0 : i32
    return %c0_i32, %arg0 : i32, i32
  }
  func.func @transform_3(%arg0: i32) -> (i32, i32) {
    %c0_i32 = arith.constant 0 : i32
    %c0_i32_0 = arith.constant 0 : i32
    return %c0_i32, %arg0 : i32, i32
  }
  func.func @transform_4(%arg0: i32) -> (i32, i32) {
    %c0_i32 = arith.constant 0 : i32
    %c0_i32_0 = arith.constant 0 : i32
    return %c0_i32, %arg0 : i32, i32
  }
  func.func @transform_5(%arg0: i32) -> (i32, i32) {
    %c0_i32 = arith.constant 0 : i32
    %c0_i32_0 = arith.constant 0 : i32
    %c0_i32_1 = arith.constant 0 : i32
    return %c0_i32, %c0_i32_0 : i32, i32
  }
  func.func @transform_6(%arg0: i32) -> (i32, i32) {
    %c0_i32 = arith.constant 0 : i32
    %c0_i32_0 = arith.constant 0 : i32
    %c0_i32_1 = arith.constant 0 : i32
    return %c0_i32, %c0_i32_0 : i32, i32
  }
  func.func @transform_7(%arg0: i32) -> (i32, i32) {
    %c0_i32 = arith.constant 0 : i32
    %c0_i32_0 = arith.constant 0 : i32
    %c0_i32_1 = arith.constant 0 : i32
    return %c0_i32, %c0_i32_0 : i32, i32
  }
  func.func @transform_8(%arg0: i32) -> (i32, i32) {
    %c0_i32 = arith.constant 0 : i32
    %c0_i32_0 = arith.constant 0 : i32
    %c0_i32_1 = arith.constant 0 : i32
    return %c0_i32, %c0_i32_0 : i32, i32
  }
  func.func @transform_9(%arg0: i32) -> (i32, i32) {
    %c0_i32 = arith.constant 0 : i32
    %c0_i32_0 = arith.constant 0 : i32
    %c0_i32_1 = arith.constant 0 : i32
    return %c0_i32, %c0_i32_0 : i32, i32
  }
  func.func @transform_10(%arg0: i32) -> (i32, i32) {
    %c0_i32 = arith.constant 0 : i32
    %c0_i32_0 = arith.constant 0 : i32
    %c0_i32_1 = arith.constant 0 : i32
    return %c0_i32, %c0_i32_0 : i32, i32
  }
  func.func @transform_11(%arg0: i32) -> (i32, i32) {
    %c0_i32 = arith.constant 0 : i32
    %c0_i32_0 = arith.constant 0 : i32
    %c0_i32_1 = arith.constant 0 : i32
    return %c0_i32, %c0_i32_0 : i32, i32
  }
  func.func @transform_12(%arg0: i32) -> (i32, i32) {
    %c0_i32 = arith.constant 0 : i32
    %c0_i32_0 = arith.constant 0 : i32
    %c0_i32_1 = arith.constant 0 : i32
    return %c0_i32, %c0_i32_0 : i32, i32
  }
  func.func @transform_13(%arg0: i32) -> (i32, i32) {
    %c0_i32 = arith.constant 0 : i32
    %c0_i32_0 = arith.constant 0 : i32
    %c0_i32_1 = arith.constant 0 : i32
    return %c0_i32, %c0_i32_0 : i32, i32
  }
  func.func @transform_14(%arg0: i32) -> (i32, i32) {
    %c0_i32 = arith.constant 0 : i32
    %c0_i32_0 = arith.constant 0 : i32
    %c0_i32_1 = arith.constant 0 : i32
    return %c0_i32, %c0_i32_0 : i32, i32
  }
  func.func @transform_15(%arg0: i32) -> (i32, i32) {
    %c0_i32 = arith.constant 0 : i32
    %c0_i32_0 = arith.constant 0 : i32
    %c0_i32_1 = arith.constant 0 : i32
    return %c0_i32, %c0_i32_0 : i32, i32
  }
  func.func @transform_16(%arg0: i32) -> (i32, i32) {
    %c0_i32 = arith.constant 0 : i32
    %c0_i32_0 = arith.constant 0 : i32
    %c0_i32_1 = arith.constant 0 : i32
    return %c0_i32, %c0_i32_0 : i32, i32
  }
  func.func @transform_17(%arg0: i32) -> (i32, i32) {
    %c0_i32 = arith.constant 0 : i32
    %c0_i32_0 = arith.constant 0 : i32
    %c0_i32_1 = arith.constant 0 : i32
    return %c0_i32, %c0_i32_0 : i32, i32
  }
  func.func @transform_18(%arg0: i32) -> (i32, i32) {
    %c0_i32 = arith.constant 0 : i32
    %c0_i32_0 = arith.constant 0 : i32
    %c0_i32_1 = arith.constant 0 : i32
    return %c0_i32, %c0_i32_0 : i32, i32
  }
  func.func @transform_19(%arg0: i32) -> (i32, i32) {
    %c0_i32 = arith.constant 0 : i32
    %c0_i32_0 = arith.constant 0 : i32
    %c0_i32_1 = arith.constant 0 : i32
    return %c0_i32, %c0_i32_0 : i32, i32
  }
  func.func @transform_20(%arg0: i32) -> (i32, i32) {
    %c0_i32 = arith.constant 0 : i32
    %c0_i32_0 = arith.constant 0 : i32
    %c0_i32_1 = arith.constant 0 : i32
    return %c0_i32, %c0_i32_0 : i32, i32
  }
  func.func @transform_21(%arg0: i32) -> (i32, i32) {
    %c0_i32 = arith.constant 0 : i32
    %c0_i32_0 = arith.constant 0 : i32
    return %c0_i32, %arg0 : i32, i32
  }
}

</mosaic_0001>

<llo_original>
// kernel: encoder_block_forward.5
$region0: #{encoder_block_forward.5}
  #allocation0 [shape = 'u32[]', space=smem, size = 0x4, offset = 0x4, fixed_abs, tag = 'smem constant byte address 0x4 - core index']
  #allocation1 [shape = 'u32[72,128]{1,0:T(1,128)}', space=vmem, size = 0x9000, scoped, tag = 'internal scratch']
  %s0 = inlined_call_operand.vmem [shape: f32[4,512], index: 0, kind: input, shape index: {}]
  %s1 = inlined_call_operand.vmem [shape: f32[4,1], index: 1, kind: input, shape index: {}]
  %s2 = inlined_call_operand.vmem [shape: f32[4,1], index: 2, kind: input, shape index: {}]
  %s3 = inlined_call_operand.vmem [shape: f32[36,4], index: 3, kind: input, shape index: {}]
  %s4 = inlined_call_operand.vmem [shape: f32[36,512], index: 4, kind: output, shape index: {}]
  %s5 = sld [smem:[#allocation0]]
  $region68: #{encoder_block_forward.5} parent=0
    _
  %s7 = ssub.s32 1, %s5
  %s8 = scalar_select 0, %s7, %s5
  $region1: #{encoder_block_forward.5} parent=0
    #allocation2 [shape = 'u8[81920]{0}', space=vmem, size = 0x14000, scoped, tag = 'output window, operand 0']
    loop: start=0, step=1, limit=4
    $region2: #{encoder_block_forward.5} parent=1 // loop_pre_header
      _
    $region3: #{encoder_block_forward.5} parent=1 // loop_header
      %s10 = sphi 0, %s14
      %p11 = scmp.ge.s32.totalorder %s10, 4
      %s20 = sphi 0, %s22
      %s23 = sphi 0, %s20
      %s24 = sphi 0, %s23
      %s40 = sphi 0, %s24
      %s44 = sphi 0, %s44
      %s46 = sphi 0, %s44
      %s47 = sphi 0, %s46
      %s61 = sphi 0, %s47
      %s65 = sphi 0, %s65
      %s67 = sphi 0, %s65
      %s68 = sphi 0, %s67
      %s82 = sphi 0, %s68
      %s86 = sphi 0, %s86
      %s88 = sphi 0, %s86
      %s89 = sphi 0, %s88
      %s103 = sphi 0, %s89
      %s109 = sphi 0, %s111
      %s112 = sphi 0, %s109
      %s113 = sphi 0, %s112
      %s129 = sphi 0, %s113
    $region4: #{encoder_block_forward.5} parent=1 // loop_header_branch
      %13 = sbr.rel (%p11) target = $region8
    $region5: #{encoder_block_forward.5} parent=1 // loop_body
      %s15 = ssub.s32 %s10, 1
      %s16 = ssub.s32 %s10, 2
      %s17 = sadd.s32 %s10, 1
      %s18 = ssub.s32 %s10, %s17
      %p19 = scmp.eq.s32.totalorder %s18, 0
      %s21 = sadd.s32 %s20, 1
      %s22 = scalar_select %p19, %s20, %s21
      %p25 = pneg %p19
      %p26 = scmp.eq.s32.totalorder %s10, 1
      %p27 = por %p25, %p26
      %p28 = scmp.ne.s32.totalorder %s20, %s23
      %p29 = scmp.eq.s32.totalorder %s10, 0
      %p30 = por %p28, %p29
      %p31 = scmp.ne.s32.totalorder %s20, %s23
      %p32 = scmp.eq.s32.totalorder %s15, 1
      %p33 = por %p31, %p32
      %p34 = scmp.ne.s32.totalorder %s23, %s24
      %p35 = scmp.eq.s32.totalorder %s15, 0
      %p36 = por %p34, %p35
      %p37 = scmp.ne.s32.totalorder %s23, %s24
      %p38 = scmp.eq.s32.totalorder %s16, 1
      %p39 = por %p37, %p38
      %p41 = scmp.ne.s32.totalorder %s24, %s40
      %p42 = scmp.eq.s32.totalorder %s16, 0
      %p43 = por %p41, %p42
      %s45 = sadd.s32 %s44, 1
      %p48 = scmp.eq.s32.totalorder %s10, 1
      %p49 = scmp.ne.s32.totalorder %s44, %s46
      %p50 = scmp.eq.s32.totalorder %s10, 0
      %p51 = por %p49, %p50
      %p52 = scmp.ne.s32.totalorder %s44, %s46
      %p53 = scmp.eq.s32.totalorder %s15, 1
      %p54 = por %p52, %p53
      %p55 = scmp.ne.s32.totalorder %s46, %s47
      %p56 = scmp.eq.s32.totalorder %s15, 0
      %p57 = por %p55, %p56
      %p58 = scmp.ne.s32.totalorder %s46, %s47
      %p59 = scmp.eq.s32.totalorder %s16, 1
      %p60 = por %p58, %p59
      %p62 = scmp.ne.s32.totalorder %s47, %s61
      %p63 = scmp.eq.s32.totalorder %s16, 0
      %p64 = por %p62, %p63
      %s66 = sadd.s32 %s65, 1
      %p69 = scmp.eq.s32.totalorder %s10, 1
      %p70 = scmp.ne.s32.totalorder %s65, %s67
      %p71 = scmp.eq.s32.totalorder %s10, 0
      %p72 = por %p70, %p71
      %p73 = scmp.ne.s32.totalorder %s65, %s67
      %p74 = scmp.eq.s32.totalorder %s15, 1
      %p75 = por %p73, %p74
      %p76 = scmp.ne.s32.totalorder %s67, %s68
      %p77 = scmp.eq.s32.totalorder %s15, 0
      %p78 = por %p76, %p77
      %p79 = scmp.ne.s32.totalorder %s67, %s68
      %p80 = scmp.eq.s32.totalorder %s16, 1
      %p81 = por %p79, %p80
      %p83 = scmp.ne.s32.totalorder %s68, %s82
      %p84 = scmp.eq.s32.totalorder %s16, 0
      %p85 = por %p83, %p84
      %s87 = sadd.s32 %s86, 1
      %p90 = scmp.eq.s32.totalorder %s10, 1
      %p91 = scmp.ne.s32.totalorder %s86, %s88
      %p92 = scmp.eq.s32.totalorder %s10, 0
      %p93 = por %p91, %p92
      %p94 = scmp.ne.s32.totalorder %s86, %s88
      %p95 = scmp.eq.s32.totalorder %s15, 1
      %p96 = por %p94, %p95
      %p97 = scmp.ne.s32.totalorder %s88, %s89
      %p98 = scmp.eq.s32.totalorder %s15, 0
      %p99 = por %p97, %p98
      %p100 = scmp.ne.s32.totalorder %s88, %s89
      %p101 = scmp.eq.s32.totalorder %s16, 1
      %p102 = por %p100, %p101
      %p104 = scmp.ne.s32.totalorder %s89, %s103
      %p105 = scmp.eq.s32.totalorder %s16, 0
      %p106 = por %p104, %p105
      %s107 = ssub.s32 %s10, %s17
      %p108 = scmp.eq.s32.totalorder %s107, 0
      %s110 = sadd.s32 %s109, 1
      %s111 = scalar_select %p108, %s109, %s110
      %p114 = pneg %p108
      %p115 = scmp.eq.s32.totalorder %s10, 1
      %p116 = por %p114, %p115
      %p117 = scmp.ne.s32.totalorder %s109, %s112
      %p118 = scmp.eq.s32.totalorder %s10, 0
      %p119 = por %p117, %p118
      %p120 = scmp.ne.s32.totalorder %s109, %s112
      %p121 = scmp.eq.s32.totalorder %s15, 1
      %p122 = por %p120, %p121
      %p123 = scmp.ne.s32.totalorder %s112, %s113
      %p124 = scmp.eq.s32.totalorder %s15, 0
      %p125 = por %p123, %p124
      %p126 = scmp.ne.s32.totalorder %s112, %s113
      %p127 = scmp.eq.s32.totalorder %s16, 1
      %p128 = por %p126, %p127
      %p130 = scmp.ne.s32.totalorder %s113, %s129
      %p131 = scmp.eq.s32.totalorder %s16, 0
      %p132 = por %p130, %p131
      %p133 = scmp.le.s32.totalorder 1, %s10
      %p134 = scmp.lt.s32.totalorder %s10, 3
      %p135 = pnand %p133, %p134
      %p136 = pneg %p135
      // Predicated region
      $region9: #{encoder_block_forward.5} parent=5 // pred_check
        _
      $region10: #{encoder_block_forward.5} parent=5 // pred_check_branch
        %138 = sbr.rel (%p135) target = $region12
      $region11: #{encoder_block_forward.5} parent=5 // pred_region
        %s139 = ssub.s32 %s10, 1
        // Predicated region
        $region13: #{encoder_block_forward.5} parent=11 // pred_check
          %p140 = pneg %p57
        $region14: #{encoder_block_forward.5} parent=11 // pred_check_branch
          %142 = sbr.rel (%p140) target = $region16
        $region15: #{encoder_block_forward.5} parent=11 // pred_region
          _
        $region16: #{encoder_block_forward.5} parent=11 // pred_fallthru
          _
        // Predicated region
        $region17: #{encoder_block_forward.5} parent=11 // pred_check
          %p143 = pneg %p78
        $region18: #{encoder_block_forward.5} parent=11 // pred_check_branch
          %145 = sbr.rel (%p143) target = $region20
        $region19: #{encoder_block_forward.5} parent=11 // pred_region
          _
        $region20: #{encoder_block_forward.5} parent=11 // pred_fallthru
          _
        // Predicated region
        $region21: #{encoder_block_forward.5} parent=11 // pred_check
          %p146 = pneg %p99
        $region22: #{encoder_block_forward.5} parent=11 // pred_check_branch
          %148 = sbr.rel (%p146) target = $region24
        $region23: #{encoder_block_forward.5} parent=11 // pred_region
          _
        $region24: #{encoder_block_forward.5} parent=11 // pred_fallthru
          _
      $region12: #{encoder_block_forward.5} parent=5 // pred_fallthru
        _
      %p149 = scmp.lt.s32.totalorder %s10, 2
      // Predicated region
      $region25: #{encoder_block_forward.5} parent=5 // pred_check
        %p150 = pneg %p149
      $region26: #{encoder_block_forward.5} parent=5 // pred_check_branch
        %152 = sbr.rel (%p150) target = $region28
      $region27: #{encoder_block_forward.5} parent=5 // pred_region
        // Predicated region
        $region29: #{encoder_block_forward.5} parent=27 // pred_check
          %p153 = pneg %p30
        $region30: #{encoder_block_forward.5} parent=27 // pred_check_branch
          %155 = sbr.rel (%p153) target = $region32
        $region31: #{encoder_block_forward.5} parent=27 // pred_region
          %s156 = smul.u32 2, %s10
          %p157 = scmp.lt.s32.totalorder %s156, 3
          %s158 = scalar_select %p157, %s156, 3
          %s159 = smul.addr %s158, 4
          %s160 = scalar_lea.vmem %s0, %s159
          %s161 = smul.u32 2, %s10
        $region32: #{encoder_block_forward.5} parent=27 // pred_fallthru
          _
      $region28: #{encoder_block_forward.5} parent=5 // pred_fallthru
        _
      %p162 = scmp.le.s32.totalorder 1, %s10
      %p163 = scmp.lt.s32.totalorder %s10, 3
      %p164 = pnand %p162, %p163
      %p165 = pneg %p164
      // Predicated region
      $region33: #{encoder_block_forward.5} parent=5 // pred_check
        _
      $region34: #{encoder_block_forward.5} parent=5 // pred_check_branch
        %167 = sbr.rel (%p164) target = $region36
      $region35: #{encoder_block_forward.5} parent=5 // pred_region
        %s168 = ssub.s32 %s10, 1
        %s169 = smul.u32 2, %s15
        %p170 = scmp.lt.s32.totalorder %s169, 3
        %s171 = scalar_select %p170, %s169, 3
        %s172 = smul.addr %s171, 4
        %s173 = scalar_lea.vmem %s0, %s172
        %p174 = pneg %p36
        %p175 = pneg %p33
        %p176 = pneg %p57
        %p177 = pneg %p54
        %p178 = pneg %p78
        %p179 = pneg %p75
        %p180 = pneg %p99
        %p181 = pneg %p96
        %p182 = pneg %p125
        %p183 = pneg %p122
        %s184 = sand.u32 %s112, 1
        %s185 = sand.u32 %s112, 1
        %s186 = smul.addr %s185, 80
        %s187 = scalar_lea.vmem [#allocation2], %s186
        %s188 = smul.u32 2, %s15
        %p189 = scmp.lt.s32.totalorder %s188, 3
        %s190 = scalar_select %p189, %s188, 3
        %s191 = smul.addr %s190, 4
        %s192 = scalar_lea.vmem %s0, %s191
        %s193 = smul.u32 2, %s15
        %s194 = smul.u32 2, %s15
        %v195 = vld [vmem:[%s192] sm:$0xff]
        %v196 = vld [vmem:[%s1] sm:$0xf]
        %198 = vset.pattern.permute.xlu0 0
        %199 = vperm.xlu0 %198, %v196
        %v200 = vpop.permute.xlu0 %199
        %v202 = vunpack.c.l.s4 839922192
        %v203 = vunpack.c.0.s8 %v202
        %v204 = vperm.slane %v200, %v203
        %v206 = vmul.f32 %v195, %v204
        %v207 = vld [vmem:[%s2] sm:$0xf]
        %209 = vset.pattern.permute.xlu0 0
        %210 = vperm.xlu0 %209, %v207
        %v211 = vpop.permute.xlu0 %210
        %v213 = vunpack.c.l.s4 839922192
        %v214 = vunpack.c.0.s8 %v213
        %v215 = vperm.slane %v211, %v214
        %v217 = vadd.f32 %v206, %v215
        %v218 = vmax.f32 %v217, 0.0
        %v219 = vld [vmem:[%s3] sm:$0xff]
        %v220 = vld [vmem:[%s3 + $0x8] sm:$0xff]
        %v221 = vld [vmem:[%s3 + $0x10] sm:$0xff]
        %v222 = vld [vmem:[%s3 + $0x18] sm:$0xff]
        %v223 = vld [vmem:[%s3 + $0x20] sm:$0xf]
        %225 = vst [vmem:[#allocation1] ss:$2 sm:$0xff] %v218
        %v226 = vld.sshfl [vmem:[#allocation1] sm:$0xff pattern:$0x75316420]
        %v227 = vld.sshfl [vmem:[#allocation1 + $0x8] sm:$0xff pattern:$0x75316420]
        %vm228 = vcmask 31744
        %v230 = vsel %vm228, %v219, 0
        %v233 = vsel %vm228, %v220, 0
        %v236 = vsel %vm228, %v221, 0
        %v239 = vsel %vm228, %v222, 0
        %v242 = vsel %vm228, %v223, 0
        %vm244 = vcmask 1043456
        %v245 = vsel %vm244, %v226, 0
        %v247 = vsel %vm244, %v227, 0
        %249 = vmatpush.msra.mxu0 0.0
        %250 = vmatpush.msra.mxu0 0.0
        %251 = vmatpush.msra.mxu0 0.0
        %252 = vmatpush.msra.mxu0 0.0
        %253 = vmatpush.msra.mxu0 0.0
        %254 = vmatpush.msra.mxu0 0.0
        %255 = vmatpush.msra.mxu0 0.0
        %256 = vmatpush.msra.mxu0 0.0
        %257 = vmatpush.msra.mxu0 0.0
        %258 = vmatpush.msra.mxu0 0.0
        %259 = vmatpush.msra.mxu0 0.0
        %260 = vmatpush.msra.mxu0 0.0
        %261 = vmatpush.msra.mxu0 0.0
        %262 = vmatpush.msra.mxu0 0.0
        %263 = vmatpush.msra.mxu0 0.0
        %264 = vmatpush.msra.mxu0 %v245
        %265 = vmatmul.f32.gmra.mxu0 %v230
        %v266 = vpop.f32.mrf.mxu0
        %v267 = vadd.f32 0.0, %v266
        %268 = vmatmul.f32.gmra.mxu0 %v233
        %v269 = vpop.f32.mrf.mxu0
        %v270 = vadd.f32 0.0, %v269
        %271 = vmatmul.f32.gmra.mxu0 %v236
        %v272 = vpop.f32.mrf.mxu0
        %v273 = vadd.f32 0.0, %v272
        %274 = vmatmul.f32.gmra.mxu0 %v239
        %v275 = vpop.f32.mrf.mxu0
        %v276 = vadd.f32 0.0, %v275
        %277 = vmatmul.f32.gmra.mxu0 %v242
        %v278 = vpop.f32.mrf.mxu0
        %v279 = vadd.f32 0.0, %v278
        %280 = vdwg.mxu0
        %281 = vmatpush.msra.mxu0 0.0
        %282 = vmatpush.msra.mxu0 0.0
        %283 = vmatpush.msra.mxu0 0.0
        %284 = vmatpush.msra.mxu0 0.0
        %285 = vmatpush.msra.mxu0 0.0
        %286 = vmatpush.msra.mxu0 0.0
        %287 = vmatpush.msra.mxu0 0.0
        %288 = vmatpush.msra.mxu0 0.0
        %289 = vmatpush.msra.mxu0 0.0
        %290 = vmatpush.msra.mxu0 0.0
        %291 = vmatpush.msra.mxu0 0.0
        %292 = vmatpush.msra.mxu0 0.0
        %293 = vmatpush.msra.mxu0 0.0
        %294 = vmatpush.msra.mxu0 0.0
        %295 = vmatpush.msra.mxu0 0.0
        %296 = vmatpush.msra.mxu0 %v247
        %297 = vmatmul.f32.gmra.mxu0 %v230
        %v298 = vpop.f32.mrf.mxu0
        %v299 = vadd.f32 0.0, %v298
        %300 = vmatmul.f32.gmra.mxu0 %v233
        %v301 = vpop.f32.mrf.mxu0
        %v302 = vadd.f32 0.0, %v301
        %303 = vmatmul.f32.gmra.mxu0 %v236
        %v304 = vpop.f32.mrf.mxu0
        %v305 = vadd.f32 0.0, %v304
        %306 = vmatmul.f32.gmra.mxu0 %v239
        %v307 = vpop.f32.mrf.mxu0
        %v308 = vadd.f32 0.0, %v307
        %309 = vmatmul.f32.gmra.mxu0 %v242
        %v310 = vpop.f32.mrf.mxu0
        %v311 = vadd.f32 0.0, %v310
        %312 = vdwg.mxu0
        %313 = vst [vmem:[%s187] sm:$0xff] %v267
        %314 = vst [vmem:[%s187 + $0x8] sm:$0xff] %v299
        %315 = vst [vmem:[%s187 + $0x10] sm:$0xff] %v270
        %316 = vst [vmem:[%s187 + $0x18] sm:$0xff] %v302
        %317 = vst [vmem:[%s187 + $0x20] sm:$0xff] %v273
        %318 = vst [vmem:[%s187 + $0x28] sm:$0xff] %v305
        %319 = vst [vmem:[%s187 + $0x30] sm:$0xff] %v276
        %320 = vst [vmem:[%s187 + $0x38] sm:$0xff] %v308
        %321 = vst [vmem:[%s187 + $0x40] sm:$0xf] %v279
        %322 = vst [vmem:[%s187 + $0x48] sm:$0xf] %v311
        %s323 = sand.u32 %s112, 1
        %s324 = sand.u32 %s112, 1
        %s325 = smul.addr %s324, 80
        %s326 = scalar_lea.vmem [#allocation2], %s325
        // Predicated region
        $region37: #{encoder_block_forward.5} parent=35 // pred_check
          %p327 = pneg %p122
        $region38: #{encoder_block_forward.5} parent=35 // pred_check_branch
          %329 = sbr.rel (%p327) target = $region40
        $region39: #{encoder_block_forward.5} parent=35 // pred_region
          %s330 = smul.u32 2, %s15
          %s331 = smul.addr %s330, 8
          %s332 = scalar_lea.vmem %s4, %s331
          // Predicated region
          $region41: #{encoder_block_forward.5} parent=39 // pred_check
            _
          $region42: #{encoder_block_forward.5} parent=39 // pred_check_branch
            %334 = sbr.rel (0) target = $region44
          $region43: #{encoder_block_forward.5} parent=39 // pred_region
            // Predicated region
            $region45: #{encoder_block_forward.5} parent=43 // pred_check
              _
            $region46: #{encoder_block_forward.5} parent=43 // pred_check_branch
              %336 = sbr.rel (0) target = $region48
            $region47: #{encoder_block_forward.5} parent=43 // pred_region
              loop: start=0, step=1, limit=1
              $region49: #{encoder_block_forward.5} parent=47 // loop_pre_header
                _
              $region50: #{encoder_block_forward.5} parent=47 // loop_header
                %s338 = sphi 0, %s342
                %p339 = scmp.ge.s32.totalorder %s338, 1
                %s343 = sphi %s326, %s326
                %s344 = sphi %s332, %s332
              $region51: #{encoder_block_forward.5} parent=47 // loop_header_branch
                %341 = sbr.rel (%p339) target = $region55
              $region52: #{encoder_block_forward.5} parent=47 // loop_body
                %v345 = vld [vmem:[%s343] sm:$0xff]
                %346 = vst [vmem:[%s344] sm:$0xff] %v345
                %v347 = vld [vmem:[%s343 + $0x8] sm:$0xff]
                %348 = vst [vmem:[%s344 + $0x8] sm:$0xff] %v347
                %v349 = vld [vmem:[%s343 + $0x10] sm:$0xff]
                %350 = vst [vmem:[%s344 + $0x20] sm:$0xff] %v349
                %v351 = vld [vmem:[%s343 + $0x18] sm:$0xff]
                %352 = vst [vmem:[%s344 + $0x28] sm:$0xff] %v351
                %v353 = vld [vmem:[%s343 + $0x20] sm:$0xff]
                %354 = vst [vmem:[%s344 + $0x40] sm:$0xff] %v353
                %v355 = vld [vmem:[%s343 + $0x28] sm:$0xff]
                %356 = vst [vmem:[%s344 + $0x48] sm:$0xff] %v355
                %v357 = vld [vmem:[%s343 + $0x30] sm:$0xff]
                %358 = vst [vmem:[%s344 + $0x60] sm:$0xff] %v357
                %v359 = vld [vmem:[%s343 + $0x38] sm:$0xff]
                %360 = vst [vmem:[%s344 + $0x68] sm:$0xff] %v359
                %v361 = vld [vmem:[%s343 + $0x40] sm:$0xff]
                %362 = vst [vmem:[%s344 + $0x80] sm:$0xff] %v361
                %v363 = vld [vmem:[%s343 + $0x48] sm:$0xff]
                %364 = vst [vmem:[%s344 + $0x88] sm:$0xff] %v363
              $region53: #{encoder_block_forward.5} parent=47 // loop_footer
                %s342 = sadd.s32 1, %s338
              $region54: #{encoder_block_forward.5} parent=47 // loop_footer_branch
                %337 = sbr.rel target = $region50
              $region55: #{encoder_block_forward.5} parent=47 // loop_exit
                _
            $region48: #{encoder_block_forward.5} parent=43 // pred_fallthru
              _
            // Predicated region
            $region56: #{encoder_block_forward.5} parent=43 // pred_check
              _
            $region57: #{encoder_block_forward.5} parent=43 // pred_check_branch
              %366 = sbr.rel target = $region59
            $region58: #{encoder_block_forward.5} parent=43 // pred_region
              _
            $region59: #{encoder_block_forward.5} parent=43 // pred_fallthru
              _
          $region44: #{encoder_block_forward.5} parent=39 // pred_fallthru
            _
          %367 = vnop
        $region40: #{encoder_block_forward.5} parent=35 // pred_fallthru
          _
      $region36: #{encoder_block_forward.5} parent=5 // pred_fallthru
        _
      %p368 = scmp.le.s32.totalorder 2, %s10
      // Predicated region
      $region60: #{encoder_block_forward.5} parent=5 // pred_check
        %p369 = pneg %p368
      $region61: #{encoder_block_forward.5} parent=5 // pred_check_branch
        %371 = sbr.rel (%p369) target = $region63
      $region62: #{encoder_block_forward.5} parent=5 // pred_region
        %s372 = ssub.s32 %s10, 2
        // Predicated region
        $region64: #{encoder_block_forward.5} parent=62 // pred_check
          %p373 = pneg %p128
        $region65: #{encoder_block_forward.5} parent=62 // pred_check_branch
          %375 = sbr.rel (%p373) target = $region67
        $region66: #{encoder_block_forward.5} parent=62 // pred_region
          %s376 = sand.u32 %s113, 1
          %s377 = sand.u32 %s113, 1
          %s378 = smul.addr %s377, 80
          %s379 = scalar_lea.vmem [#allocation2], %s378
        $region67: #{encoder_block_forward.5} parent=62 // pred_fallthru
          _
      $region63: #{encoder_block_forward.5} parent=5 // pred_fallthru
        _
    $region6: #{encoder_block_forward.5} parent=1 // loop_footer
      %s14 = sadd.s32 1, %s10
    $region7: #{encoder_block_forward.5} parent=1 // loop_footer_branch
      %9 = sbr.rel target = $region3
    $region8: #{encoder_block_forward.5} parent=1 // loop_exit
      _

// kernel: encoder_block_forward.6
$region0: #{encoder_block_forward.6}
  #allocation0 [shape = 'u32[]', space=smem, size = 0x4, offset = 0x4, fixed_abs, tag = 'smem constant byte address 0x4 - core index']
  #allocation1 [shape = 'u32[72,128]{1,0:T(1,128)}', space=vmem, size = 0x9000, scoped, tag = 'internal scratch']
  %s0 = inlined_call_operand.vmem [shape: f32[4,512], index: 0, kind: input, shape index: {}]
  %s1 = inlined_call_operand.vmem [shape: f32[4,512], index: 1, kind: input, shape index: {}]
  %s2 = inlined_call_operand.vmem [shape: f32[4,1], index: 2, kind: input, shape index: {}]
  %s3 = inlined_call_operand.vmem [shape: f32[4,1], index: 3, kind: input, shape index: {}]
  %s4 = inlined_call_operand.vmem [shape: f32[4,1], index: 4, kind: input, shape index: {}]
  %s5 = inlined_call_operand.vmem [shape: f32[4,1], index: 5, kind: input, shape index: {}]
  %s6 = inlined_call_operand.vmem [shape: f32[36,4], index: 6, kind: input, shape index: {}]
  %s7 = inlined_call_operand.vmem [shape: f32[36,4], index: 7, kind: input, shape index: {}]
  %s8 = inlined_call_operand.vmem [shape: f32[36,512], index: 8, kind: output, shape index: {}]
  %s9 = sld [smem:[#allocation0]]
  $region84: #{encoder_block_forward.6} parent=0
    _
  %s11 = ssub.s32 1, %s9
  %s12 = scalar_select 0, %s11, %s9
  $region1: #{encoder_block_forward.6} parent=0
    #allocation2 [shape = 'u8[81920]{0}', space=vmem, size = 0x14000, scoped, tag = 'output window, operand 0']
    loop: start=0, step=1, limit=4
    $region2: #{encoder_block_forward.6} parent=1 // loop_pre_header
      _
    $region3: #{encoder_block_forward.6} parent=1 // loop_header
      %s14 = sphi 0, %s18
      %p15 = scmp.ge.s32.totalorder %s14, 4
      %s24 = sphi 0, %s26
      %s27 = sphi 0, %s24
      %s28 = sphi 0, %s27
      %s44 = sphi 0, %s28
      %s50 = sphi 0, %s52
      %s53 = sphi 0, %s50
      %s54 = sphi 0, %s53
      %s70 = sphi 0, %s54
      %s74 = sphi 0, %s74
      %s76 = sphi 0, %s74
      %s77 = sphi 0, %s76
      %s91 = sphi 0, %s77
      %s95 = sphi 0, %s95
      %s97 = sphi 0, %s95
      %s98 = sphi 0, %s97
      %s112 = sphi 0, %s98
      %s116 = sphi 0, %s116
      %s118 = sphi 0, %s116
      %s119 = sphi 0, %s118
      %s133 = sphi 0, %s119
      %s137 = sphi 0, %s137
      %s139 = sphi 0, %s137
      %s140 = sphi 0, %s139
      %s154 = sphi 0, %s140
      %s158 = sphi 0, %s158
      %s160 = sphi 0, %s158
      %s161 = sphi 0, %s160
      %s175 = sphi 0, %s161
      %s179 = sphi 0, %s179
      %s181 = sphi 0, %s179
      %s182 = sphi 0, %s181
      %s196 = sphi 0, %s182
      %s202 = sphi 0, %s204
      %s205 = sphi 0, %s202
      %s206 = sphi 0, %s205
      %s222 = sphi 0, %s206
    $region4: #{encoder_block_forward.6} parent=1 // loop_header_branch
      %17 = sbr.rel (%p15) target = $region8
    $region5: #{encoder_block_forward.6} parent=1 // loop_body
      %s19 = ssub.s32 %s14, 1
      %s20 = ssub.s32 %s14, 2
      %s21 = sadd.s32 %s14, 1
      %s22 = ssub.s32 %s14, %s21
      %p23 = scmp.eq.s32.totalorder %s22, 0
      %s25 = sadd.s32 %s24, 1
      %s26 = scalar_select %p23, %s24, %s25
      %p29 = pneg %p23
      %p30 = scmp.eq.s32.totalorder %s14, 1
      %p31 = por %p29, %p30
      %p32 = scmp.ne.s32.totalorder %s24, %s27
      %p33 = scmp.eq.s32.totalorder %s14, 0
      %p34 = por %p32, %p33
      %p35 = scmp.ne.s32.totalorder %s24, %s27
      %p36 = scmp.eq.s32.totalorder %s19, 1
      %p37 = por %p35, %p36
      %p38 = scmp.ne.s32.totalorder %s27, %s28
      %p39 = scmp.eq.s32.totalorder %s19, 0
      %p40 = por %p38, %p39
      %p41 = scmp.ne.s32.totalorder %s27, %s28
      %p42 = scmp.eq.s32.totalorder %s20, 1
      %p43 = por %p41, %p42
      %p45 = scmp.ne.s32.totalorder %s28, %s44
      %p46 = scmp.eq.s32.totalorder %s20, 0
      %p47 = por %p45, %p46
      %s48 = ssub.s32 %s14, %s21
      %p49 = scmp.eq.s32.totalorder %s48, 0
      %s51 = sadd.s32 %s50, 1
      %s52 = scalar_select %p49, %s50, %s51
      %p55 = pneg %p49
      %p56 = scmp.eq.s32.totalorder %s14, 1
      %p57 = por %p55, %p56
      %p58 = scmp.ne.s32.totalorder %s50, %s53
      %p59 = scmp.eq.s32.totalorder %s14, 0
      %p60 = por %p58, %p59
      %p61 = scmp.ne.s32.totalorder %s50, %s53
      %p62 = scmp.eq.s32.totalorder %s19, 1
      %p63 = por %p61, %p62
      %p64 = scmp.ne.s32.totalorder %s53, %s54
      %p65 = scmp.eq.s32.totalorder %s19, 0
      %p66 = por %p64, %p65
      %p67 = scmp.ne.s32.totalorder %s53, %s54
      %p68 = scmp.eq.s32.totalorder %s20, 1
      %p69 = por %p67, %p68
      %p71 = scmp.ne.s32.totalorder %s54, %s70
      %p72 = scmp.eq.s32.totalorder %s20, 0
      %p73 = por %p71, %p72
      %s75 = sadd.s32 %s74, 1
      %p78 = scmp.eq.s32.totalorder %s14, 1
      %p79 = scmp.ne.s32.totalorder %s74, %s76
      %p80 = scmp.eq.s32.totalorder %s14, 0
      %p81 = por %p79, %p80
      %p82 = scmp.ne.s32.totalorder %s74, %s76
      %p83 = scmp.eq.s32.totalorder %s19, 1
      %p84 = por %p82, %p83
      %p85 = scmp.ne.s32.totalorder %s76, %s77
      %p86 = scmp.eq.s32.totalorder %s19, 0
      %p87 = por %p85, %p86
      %p88 = scmp.ne.s32.totalorder %s76, %s77
      %p89 = scmp.eq.s32.totalorder %s20, 1
      %p90 = por %p88, %p89
      %p92 = scmp.ne.s32.totalorder %s77, %s91
      %p93 = scmp.eq.s32.totalorder %s20, 0
      %p94 = por %p92, %p93
      %s96 = sadd.s32 %s95, 1
      %p99 = scmp.eq.s32.totalorder %s14, 1
      %p100 = scmp.ne.s32.totalorder %s95, %s97
      %p101 = scmp.eq.s32.totalorder %s14, 0
      %p102 = por %p100, %p101
      %p103 = scmp.ne.s32.totalorder %s95, %s97
      %p104 = scmp.eq.s32.totalorder %s19, 1
      %p105 = por %p103, %p104
      %p106 = scmp.ne.s32.totalorder %s97, %s98
      %p107 = scmp.eq.s32.totalorder %s19, 0
      %p108 = por %p106, %p107
      %p109 = scmp.ne.s32.totalorder %s97, %s98
      %p110 = scmp.eq.s32.totalorder %s20, 1
      %p111 = por %p109, %p110
      %p113 = scmp.ne.s32.totalorder %s98, %s112
      %p114 = scmp.eq.s32.totalorder %s20, 0
      %p115 = por %p113, %p114
      %s117 = sadd.s32 %s116, 1
      %p120 = scmp.eq.s32.totalorder %s14, 1
      %p121 = scmp.ne.s32.totalorder %s116, %s118
      %p122 = scmp.eq.s32.totalorder %s14, 0
      %p123 = por %p121, %p122
      %p124 = scmp.ne.s32.totalorder %s116, %s118
      %p125 = scmp.eq.s32.totalorder %s19, 1
      %p126 = por %p124, %p125
      %p127 = scmp.ne.s32.totalorder %s118, %s119
      %p128 = scmp.eq.s32.totalorder %s19, 0
      %p129 = por %p127, %p128
      %p130 = scmp.ne.s32.totalorder %s118, %s119
      %p131 = scmp.eq.s32.totalorder %s20, 1
      %p132 = por %p130, %p131
      %p134 = scmp.ne.s32.totalorder %s119, %s133
      %p135 = scmp.eq.s32.totalorder %s20, 0
      %p136 = por %p134, %p135
      %s138 = sadd.s32 %s137, 1
      %p141 = scmp.eq.s32.totalorder %s14, 1
      %p142 = scmp.ne.s32.totalorder %s137, %s139
      %p143 = scmp.eq.s32.totalorder %s14, 0
      %p144 = por %p142, %p143
      %p145 = scmp.ne.s32.totalorder %s137, %s139
      %p146 = scmp.eq.s32.totalorder %s19, 1
      %p147 = por %p145, %p146
      %p148 = scmp.ne.s32.totalorder %s139, %s140
      %p149 = scmp.eq.s32.totalorder %s19, 0
      %p150 = por %p148, %p149
      %p151 = scmp.ne.s32.totalorder %s139, %s140
      %p152 = scmp.eq.s32.totalorder %s20, 1
      %p153 = por %p151, %p152
      %p155 = scmp.ne.s32.totalorder %s140, %s154
      %p156 = scmp.eq.s32.totalorder %s20, 0
      %p157 = por %p155, %p156
      %s159 = sadd.s32 %s158, 1
      %p162 = scmp.eq.s32.totalorder %s14, 1
      %p163 = scmp.ne.s32.totalorder %s158, %s160
      %p164 = scmp.eq.s32.totalorder %s14, 0
      %p165 = por %p163, %p164
      %p166 = scmp.ne.s32.totalorder %s158, %s160
      %p167 = scmp.eq.s32.totalorder %s19, 1
      %p168 = por %p166, %p167
      %p169 = scmp.ne.s32.totalorder %s160, %s161
      %p170 = scmp.eq.s32.totalorder %s19, 0
      %p171 = por %p169, %p170
      %p172 = scmp.ne.s32.totalorder %s160, %s161
      %p173 = scmp.eq.s32.totalorder %s20, 1
      %p174 = por %p172, %p173
      %p176 = scmp.ne.s32.totalorder %s161, %s175
      %p177 = scmp.eq.s32.totalorder %s20, 0
      %p178 = por %p176, %p177
      %s180 = sadd.s32 %s179, 1
      %p183 = scmp.eq.s32.totalorder %s14, 1
      %p184 = scmp.ne.s32.totalorder %s179, %s181
      %p185 = scmp.eq.s32.totalorder %s14, 0
      %p186 = por %p184, %p185
      %p187 = scmp.ne.s32.totalorder %s179, %s181
      %p188 = scmp.eq.s32.totalorder %s19, 1
      %p189 = por %p187, %p188
      %p190 = scmp.ne.s32.totalorder %s181, %s182
      %p191 = scmp.eq.s32.totalorder %s19, 0
      %p192 = por %p190, %p191
      %p193 = scmp.ne.s32.totalorder %s181, %s182
      %p194 = scmp.eq.s32.totalorder %s20, 1
      %p195 = por %p193, %p194
      %p197 = scmp.ne.s32.totalorder %s182, %s196
      %p198 = scmp.eq.s32.totalorder %s20, 0
      %p199 = por %p197, %p198
      %s200 = ssub.s32 %s14, %s21
      %p201 = scmp.eq.s32.totalorder %s200, 0
      %s203 = sadd.s32 %s202, 1
      %s204 = scalar_select %p201, %s202, %s203
      %p207 = pneg %p201
      %p208 = scmp.eq.s32.totalorder %s14, 1
      %p209 = por %p207, %p208
      %p210 = scmp.ne.s32.totalorder %s202, %s205
      %p211 = scmp.eq.s32.totalorder %s14, 0
      %p212 = por %p210, %p211
      %p213 = scmp.ne.s32.totalorder %s202, %s205
      %p214 = scmp.eq.s32.totalorder %s19, 1
      %p215 = por %p213, %p214
      %p216 = scmp.ne.s32.totalorder %s205, %s206
      %p217 = scmp.eq.s32.totalorder %s19, 0
      %p218 = por %p216, %p217
      %p219 = scmp.ne.s32.totalorder %s205, %s206
      %p220 = scmp.eq.s32.totalorder %s20, 1
      %p221 = por %p219, %p220
      %p223 = scmp.ne.s32.totalorder %s206, %s222
      %p224 = scmp.eq.s32.totalorder %s20, 0
      %p225 = por %p223, %p224
      %p226 = scmp.le.s32.totalorder 1, %s14
      %p227 = scmp.lt.s32.totalorder %s14, 3
      %p228 = pnand %p226, %p227
      %p229 = pneg %p228
      // Predicated region
      $region9: #{encoder_block_forward.6} parent=5 // pred_check
        _
      $region10: #{encoder_block_forward.6} parent=5 // pred_check_branch
        %231 = sbr.rel (%p228) target = $region12
      $region11: #{encoder_block_forward.6} parent=5 // pred_region
        %s232 = ssub.s32 %s14, 1
        // Predicated region
        $region13: #{encoder_block_forward.6} parent=11 // pred_check
          %p233 = pneg %p87
        $region14: #{encoder_block_forward.6} parent=11 // pred_check_branch
          %235 = sbr.rel (%p233) target = $region16
        $region15: #{encoder_block_forward.6} parent=11 // pred_region
          _
        $region16: #{encoder_block_forward.6} parent=11 // pred_fallthru
          _
        // Predicated region
        $region17: #{encoder_block_forward.6} parent=11 // pred_check
          %p236 = pneg %p108
        $region18: #{encoder_block_forward.6} parent=11 // pred_check_branch
          %238 = sbr.rel (%p236) target = $region20
        $region19: #{encoder_block_forward.6} parent=11 // pred_region
          _
        $region20: #{encoder_block_forward.6} parent=11 // pred_fallthru
          _
        // Predicated region
        $region21: #{encoder_block_forward.6} parent=11 // pred_check
          %p239 = pneg %p129
        $region22: #{encoder_block_forward.6} parent=11 // pred_check_branch
          %241 = sbr.rel (%p239) target = $region24
        $region23: #{encoder_block_forward.6} parent=11 // pred_region
          _
        $region24: #{encoder_block_forward.6} parent=11 // pred_fallthru
          _
        // Predicated region
        $region25: #{encoder_block_forward.6} parent=11 // pred_check
          %p242 = pneg %p150
        $region26: #{encoder_block_forward.6} parent=11 // pred_check_branch
          %244 = sbr.rel (%p242) target = $region28
        $region27: #{encoder_block_forward.6} parent=11 // pred_region
          _
        $region28: #{encoder_block_forward.6} parent=11 // pred_fallthru
          _
        // Predicated region
        $region29: #{encoder_block_forward.6} parent=11 // pred_check
          %p245 = pneg %p171
        $region30: #{encoder_block_forward.6} parent=11 // pred_check_branch
          %247 = sbr.rel (%p245) target = $region32
        $region31: #{encoder_block_forward.6} parent=11 // pred_region
          _
        $region32: #{encoder_block_forward.6} parent=11 // pred_fallthru
          _
        // Predicated region
        $region33: #{encoder_block_forward.6} parent=11 // pred_check
          %p248 = pneg %p192
        $region34: #{encoder_block_forward.6} parent=11 // pred_check_branch
          %250 = sbr.rel (%p248) target = $region36
        $region35: #{encoder_block_forward.6} parent=11 // pred_region
          _
        $region36: #{encoder_block_forward.6} parent=11 // pred_fallthru
          _
      $region12: #{encoder_block_forward.6} parent=5 // pred_fallthru
        _
      %p251 = scmp.lt.s32.totalorder %s14, 2
      // Predicated region
      $region37: #{encoder_block_forward.6} parent=5 // pred_check
        %p252 = pneg %p251
      $region38: #{encoder_block_forward.6} parent=5 // pred_check_branch
        %254 = sbr.rel (%p252) target = $region40
      $region39: #{encoder_block_forward.6} parent=5 // pred_region
        // Predicated region
        $region41: #{encoder_block_forward.6} parent=39 // pred_check
          %p255 = pneg %p34
        $region42: #{encoder_block_forward.6} parent=39 // pred_check_branch
          %257 = sbr.rel (%p255) target = $region44
        $region43: #{encoder_block_forward.6} parent=39 // pred_region
          %s258 = smul.u32 2, %s14
          %p259 = scmp.lt.s32.totalorder %s258, 3
          %s260 = scalar_select %p259, %s258, 3
          %s261 = smul.addr %s260, 4
          %s262 = scalar_lea.vmem %s0, %s261
          %s263 = smul.u32 2, %s14
        $region44: #{encoder_block_forward.6} parent=39 // pred_fallthru
          _
        // Predicated region
        $region45: #{encoder_block_forward.6} parent=39 // pred_check
          %p264 = pneg %p60
        $region46: #{encoder_block_forward.6} parent=39 // pred_check_branch
          %266 = sbr.rel (%p264) target = $region48
        $region47: #{encoder_block_forward.6} parent=39 // pred_region
          %s267 = smul.u32 2, %s14
          %p268 = scmp.lt.s32.totalorder %s267, 3
          %s269 = scalar_select %p268, %s267, 3
          %s270 = smul.addr %s269, 4
          %s271 = scalar_lea.vmem %s1, %s270
          %s272 = smul.u32 2, %s14
        $region48: #{encoder_block_forward.6} parent=39 // pred_fallthru
          _
      $region40: #{encoder_block_forward.6} parent=5 // pred_fallthru
        _
      %p273 = scmp.le.s32.totalorder 1, %s14
      %p274 = scmp.lt.s32.totalorder %s14, 3
      %p275 = pnand %p273, %p274
      %p276 = pneg %p275
      // Predicated region
      $region49: #{encoder_block_forward.6} parent=5 // pred_check
        _
      $region50: #{encoder_block_forward.6} parent=5 // pred_check_branch
        %278 = sbr.rel (%p275) target = $region52
      $region51: #{encoder_block_forward.6} parent=5 // pred_region
        %s279 = ssub.s32 %s14, 1
        %s280 = smul.u32 2, %s19
        %p281 = scmp.lt.s32.totalorder %s280, 3
        %s282 = scalar_select %p281, %s280, 3
        %s283 = smul.addr %s282, 4
        %s284 = scalar_lea.vmem %s0, %s283
        %p285 = pneg %p40
        %p286 = pneg %p37
        %s287 = smul.u32 2, %s19
        %p288 = scmp.lt.s32.totalorder %s287, 3
        %s289 = scalar_select %p288, %s287, 3
        %s290 = smul.addr %s289, 4
        %s291 = scalar_lea.vmem %s1, %s290
        %p292 = pneg %p66
        %p293 = pneg %p63
        %p294 = pneg %p87
        %p295 = pneg %p84
        %p296 = pneg %p108
        %p297 = pneg %p105
        %p298 = pneg %p129
        %p299 = pneg %p126
        %p300 = pneg %p150
        %p301 = pneg %p147
        %p302 = pneg %p171
        %p303 = pneg %p168
        %p304 = pneg %p192
        %p305 = pneg %p189
        %p306 = pneg %p218
        %p307 = pneg %p215
        %s308 = sand.u32 %s205, 1
        %s309 = sand.u32 %s205, 1
        %s310 = smul.addr %s309, 80
        %s311 = scalar_lea.vmem [#allocation2], %s310
        %s312 = smul.u32 2, %s19
        %p313 = scmp.lt.s32.totalorder %s312, 3
        %s314 = scalar_select %p313, %s312, 3
        %s315 = smul.addr %s314, 4
        %s316 = scalar_lea.vmem %s0, %s315
        %s317 = smul.u32 2, %s19
        %s318 = smul.u32 2, %s19
        %p319 = scmp.lt.s32.totalorder %s318, 3
        %s320 = scalar_select %p319, %s318, 3
        %s321 = smul.addr %s320, 4
        %s322 = scalar_lea.vmem %s1, %s321
        %s323 = smul.u32 2, %s19
        %s324 = smul.u32 2, %s19
        %v325 = vld [vmem:[%s316] sm:$0xff]
        %v326 = vld [vmem:[%s2] sm:$0xf]
        %328 = vset.pattern.permute.xlu0 0
        %329 = vperm.xlu0 %328, %v326
        %v330 = vpop.permute.xlu0 %329
        %v332 = vunpack.c.l.s4 839922192
        %v333 = vunpack.c.0.s8 %v332
        %v334 = vperm.slane %v330, %v333
        %v336 = vmul.f32 %v325, %v334
        %v337 = vld [vmem:[%s4] sm:$0xf]
        %339 = vset.pattern.permute.xlu0 0
        %340 = vperm.xlu0 %339, %v337
        %v341 = vpop.permute.xlu0 %340
        %v343 = vunpack.c.l.s4 839922192
        %v344 = vunpack.c.0.s8 %v343
        %v345 = vperm.slane %v341, %v344
        %v347 = vadd.f32 %v336, %v345
        %v348 = vmax.f32 %v347, 0.0
        %v349 = vld [vmem:[%s6] sm:$0xff]
        %v350 = vld [vmem:[%s6 + $0x8] sm:$0xff]
        %v351 = vld [vmem:[%s6 + $0x10] sm:$0xff]
        %v352 = vld [vmem:[%s6 + $0x18] sm:$0xff]
        %v353 = vld [vmem:[%s6 + $0x20] sm:$0xf]
        %v354 = vld [vmem:[%s322] sm:$0xff]
        %v355 = vld [vmem:[%s3] sm:$0xf]
        %357 = vset.pattern.permute.xlu0 0
        %358 = vperm.xlu0 %357, %v355
        %v359 = vpop.permute.xlu0 %358
        %v361 = vunpack.c.l.s4 839922192
        %v362 = vunpack.c.0.s8 %v361
        %v363 = vperm.slane %v359, %v362
        %v365 = vmul.f32 %v354, %v363
        %v366 = vld [vmem:[%s5] sm:$0xf]
        %368 = vset.pattern.permute.xlu0 0
        %369 = vperm.xlu0 %368, %v366
        %v370 = vpop.permute.xlu0 %369
        %v372 = vunpack.c.l.s4 839922192
        %v373 = vunpack.c.0.s8 %v372
        %v374 = vperm.slane %v370, %v373
        %v376 = vadd.f32 %v365, %v374
        %v377 = vmax.f32 %v376, 0.0
        %v378 = vld [vmem:[%s7] sm:$0xff]
        %v379 = vld [vmem:[%s7 + $0x8] sm:$0xff]
        %v380 = vld [vmem:[%s7 + $0x10] sm:$0xff]
        %v381 = vld [vmem:[%s7 + $0x18] sm:$0xff]
        %v382 = vld [vmem:[%s7 + $0x20] sm:$0xf]
        %384 = vst [vmem:[#allocation1] ss:$2 sm:$0xff] %v377
        %v385 = vld.sshfl [vmem:[#allocation1] sm:$0xff pattern:$0x75316420]
        %v386 = vld.sshfl [vmem:[#allocation1 + $0x8] sm:$0xff pattern:$0x75316420]
        %vm387 = vcmask 31744
        %v389 = vsel %vm387, %v378, 0
        %v392 = vsel %vm387, %v379, 0
        %v395 = vsel %vm387, %v380, 0
        %v398 = vsel %vm387, %v381, 0
        %v401 = vsel %vm387, %v382, 0
        %vm403 = vcmask 1043456
        %v404 = vsel %vm403, %v385, 0
        %v406 = vsel %vm403, %v386, 0
        %408 = vmatpush.msra.mxu0 0.0
        %409 = vmatpush.msra.mxu0 0.0
        %410 = vmatpush.msra.mxu0 0.0
        %411 = vmatpush.msra.mxu0 0.0
        %412 = vmatpush.msra.mxu0 0.0
        %413 = vmatpush.msra.mxu0 0.0
        %414 = vmatpush.msra.mxu0 0.0
        %415 = vmatpush.msra.mxu0 0.0
        %416 = vmatpush.msra.mxu0 0.0
        %417 = vmatpush.msra.mxu0 0.0
        %418 = vmatpush.msra.mxu0 0.0
        %419 = vmatpush.msra.mxu0 0.0
        %420 = vmatpush.msra.mxu0 0.0
        %421 = vmatpush.msra.mxu0 0.0
        %422 = vmatpush.msra.mxu0 0.0
        %423 = vmatpush.msra.mxu0 %v404
        %424 = vmatmul.f32.gmra.mxu0 %v389
        %v425 = vpop.f32.mrf.mxu0
        %v426 = vadd.f32 0.0, %v425
        %427 = vmatmul.f32.gmra.mxu0 %v392
        %v428 = vpop.f32.mrf.mxu0
        %v429 = vadd.f32 0.0, %v428
        %430 = vmatmul.f32.gmra.mxu0 %v395
        %v431 = vpop.f32.mrf.mxu0
        %v432 = vadd.f32 0.0, %v431
        %433 = vmatmul.f32.gmra.mxu0 %v398
        %v434 = vpop.f32.mrf.mxu0
        %v435 = vadd.f32 0.0, %v434
        %436 = vmatmul.f32.gmra.mxu0 %v401
        %v437 = vpop.f32.mrf.mxu0
        %v438 = vadd.f32 0.0, %v437
        %439 = vdwg.mxu0
        %440 = vmatpush.msra.mxu0 0.0
        %441 = vmatpush.msra.mxu0 0.0
        %442 = vmatpush.msra.mxu0 0.0
        %443 = vmatpush.msra.mxu0 0.0
        %444 = vmatpush.msra.mxu0 0.0
        %445 = vmatpush.msra.mxu0 0.0
        %446 = vmatpush.msra.mxu0 0.0
        %447 = vmatpush.msra.mxu0 0.0
        %448 = vmatpush.msra.mxu0 0.0
        %449 = vmatpush.msra.mxu0 0.0
        %450 = vmatpush.msra.mxu0 0.0
        %451 = vmatpush.msra.mxu0 0.0
        %452 = vmatpush.msra.mxu0 0.0
        %453 = vmatpush.msra.mxu0 0.0
        %454 = vmatpush.msra.mxu0 0.0
        %455 = vmatpush.msra.mxu0 %v406
        %456 = vmatmul.f32.gmra.mxu0 %v389
        %v457 = vpop.f32.mrf.mxu0
        %v458 = vadd.f32 0.0, %v457
        %459 = vmatmul.f32.gmra.mxu0 %v392
        %v460 = vpop.f32.mrf.mxu0
        %v461 = vadd.f32 0.0, %v460
        %462 = vmatmul.f32.gmra.mxu0 %v395
        %v463 = vpop.f32.mrf.mxu0
        %v464 = vadd.f32 0.0, %v463
        %465 = vmatmul.f32.gmra.mxu0 %v398
        %v466 = vpop.f32.mrf.mxu0
        %v467 = vadd.f32 0.0, %v466
        %468 = vmatmul.f32.gmra.mxu0 %v401
        %v469 = vpop.f32.mrf.mxu0
        %v470 = vadd.f32 0.0, %v469
        %471 = vdwg.mxu0
        %473 = vst [vmem:[#allocation1] ss:$2 sm:$0xff] %v348
        %v474 = vld.sshfl [vmem:[#allocation1] sm:$0xff pattern:$0x75316420]
        %v475 = vld.sshfl [vmem:[#allocation1 + $0x8] sm:$0xff pattern:$0x75316420]
        %v477 = vsel %vm387, %v349, 0
        %v480 = vsel %vm387, %v350, 0
        %v483 = vsel %vm387, %v351, 0
        %v486 = vsel %vm387, %v352, 0
        %v489 = vsel %vm387, %v353, 0
        %v491 = vsel %vm403, %v474, 0
        %v493 = vsel %vm403, %v475, 0
        %495 = vmatpush.msra.mxu0 0.0
        %496 = vmatpush.msra.mxu0 0.0
        %497 = vmatpush.msra.mxu0 0.0
        %498 = vmatpush.msra.mxu0 0.0
        %499 = vmatpush.msra.mxu0 0.0
        %500 = vmatpush.msra.mxu0 0.0
        %501 = vmatpush.msra.mxu0 0.0
        %502 = vmatpush.msra.mxu0 0.0
        %503 = vmatpush.msra.mxu0 0.0
        %504 = vmatpush.msra.mxu0 0.0
        %505 = vmatpush.msra.mxu0 0.0
        %506 = vmatpush.msra.mxu0 0.0
        %507 = vmatpush.msra.mxu0 0.0
        %508 = vmatpush.msra.mxu0 0.0
        %509 = vmatpush.msra.mxu0 0.0
        %510 = vmatpush.msra.mxu0 %v491
        %511 = vmatmul.f32.gmra.mxu0 %v477
        %v512 = vpop.f32.mrf.mxu0
        %v513 = vadd.f32 %v426, %v512
        %514 = vmatmul.f32.gmra.mxu0 %v480
        %v515 = vpop.f32.mrf.mxu0
        %v516 = vadd.f32 %v429, %v515
        %517 = vmatmul.f32.gmra.mxu0 %v483
        %v518 = vpop.f32.mrf.mxu0
        %v519 = vadd.f32 %v432, %v518
        %520 = vmatmul.f32.gmra.mxu0 %v486
        %v521 = vpop.f32.mrf.mxu0
        %v522 = vadd.f32 %v435, %v521
        %523 = vmatmul.f32.gmra.mxu0 %v489
        %v524 = vpop.f32.mrf.mxu0
        %v525 = vadd.f32 %v438, %v524
        %526 = vdwg.mxu0
        %527 = vmatpush.msra.mxu0 0.0
        %528 = vmatpush.msra.mxu0 0.0
        %529 = vmatpush.msra.mxu0 0.0
        %530 = vmatpush.msra.mxu0 0.0
        %531 = vmatpush.msra.mxu0 0.0
        %532 = vmatpush.msra.mxu0 0.0
        %533 = vmatpush.msra.mxu0 0.0
        %534 = vmatpush.msra.mxu0 0.0
        %535 = vmatpush.msra.mxu0 0.0
        %536 = vmatpush.msra.mxu0 0.0
        %537 = vmatpush.msra.mxu0 0.0
        %538 = vmatpush.msra.mxu0 0.0
        %539 = vmatpush.msra.mxu0 0.0
        %540 = vmatpush.msra.mxu0 0.0
        %541 = vmatpush.msra.mxu0 0.0
        %542 = vmatpush.msra.mxu0 %v493
        %543 = vmatmul.f32.gmra.mxu0 %v477
        %v544 = vpop.f32.mrf.mxu0
        %v545 = vadd.f32 %v458, %v544
        %546 = vmatmul.f32.gmra.mxu0 %v480
        %v547 = vpop.f32.mrf.mxu0
        %v548 = vadd.f32 %v461, %v547
        %549 = vmatmul.f32.gmra.mxu0 %v483
        %v550 = vpop.f32.mrf.mxu0
        %v551 = vadd.f32 %v464, %v550
        %552 = vmatmul.f32.gmra.mxu0 %v486
        %v553 = vpop.f32.mrf.mxu0
        %v554 = vadd.f32 %v467, %v553
        %555 = vmatmul.f32.gmra.mxu0 %v489
        %v556 = vpop.f32.mrf.mxu0
        %v557 = vadd.f32 %v470, %v556
        %558 = vdwg.mxu0
        %559 = vst [vmem:[%s311] sm:$0xff] %v513
        %560 = vst [vmem:[%s311 + $0x8] sm:$0xff] %v545
        %561 = vst [vmem:[%s311 + $0x10] sm:$0xff] %v516
        %562 = vst [vmem:[%s311 + $0x18] sm:$0xff] %v548
        %563 = vst [vmem:[%s311 + $0x20] sm:$0xff] %v519
        %564 = vst [vmem:[%s311 + $0x28] sm:$0xff] %v551
        %565 = vst [vmem:[%s311 + $0x30] sm:$0xff] %v522
        %566 = vst [vmem:[%s311 + $0x38] sm:$0xff] %v554
        %567 = vst [vmem:[%s311 + $0x40] sm:$0xf] %v525
        %568 = vst [vmem:[%s311 + $0x48] sm:$0xf] %v557
        %s569 = sand.u32 %s205, 1
        %s570 = sand.u32 %s205, 1
        %s571 = smul.addr %s570, 80
        %s572 = scalar_lea.vmem [#allocation2], %s571
        // Predicated region
        $region53: #{encoder_block_forward.6} parent=51 // pred_check
          %p573 = pneg %p215
        $region54: #{encoder_block_forward.6} parent=51 // pred_check_branch
          %575 = sbr.rel (%p573) target = $region56
        $region55: #{encoder_block_forward.6} parent=51 // pred_region
          %s576 = smul.u32 2, %s19
          %s577 = smul.addr %s576, 8
          %s578 = scalar_lea.vmem %s8, %s577
          // Predicated region
          $region57: #{encoder_block_forward.6} parent=55 // pred_check
            _
          $region58: #{encoder_block_forward.6} parent=55 // pred_check_branch
            %580 = sbr.rel (0) target = $region60
          $region59: #{encoder_block_forward.6} parent=55 // pred_region
            // Predicated region
            $region61: #{encoder_block_forward.6} parent=59 // pred_check
              _
            $region62: #{encoder_block_forward.6} parent=59 // pred_check_branch
              %582 = sbr.rel (0) target = $region64
            $region63: #{encoder_block_forward.6} parent=59 // pred_region
              loop: start=0, step=1, limit=1
              $region65: #{encoder_block_forward.6} parent=63 // loop_pre_header
                _
              $region66: #{encoder_block_forward.6} parent=63 // loop_header
                %s584 = sphi 0, %s588
                %p585 = scmp.ge.s32.totalorder %s584, 1
                %s589 = sphi %s572, %s572
                %s590 = sphi %s578, %s578
              $region67: #{encoder_block_forward.6} parent=63 // loop_header_branch
                %587 = sbr.rel (%p585) target = $region71
              $region68: #{encoder_block_forward.6} parent=63 // loop_body
                %v591 = vld [vmem:[%s589] sm:$0xff]
                %592 = vst [vmem:[%s590] sm:$0xff] %v591
                %v593 = vld [vmem:[%s589 + $0x8] sm:$0xff]
                %594 = vst [vmem:[%s590 + $0x8] sm:$0xff] %v593
                %v595 = vld [vmem:[%s589 + $0x10] sm:$0xff]
                %596 = vst [vmem:[%s590 + $0x20] sm:$0xff] %v595
                %v597 = vld [vmem:[%s589 + $0x18] sm:$0xff]
                %598 = vst [vmem:[%s590 + $0x28] sm:$0xff] %v597
                %v599 = vld [vmem:[%s589 + $0x20] sm:$0xff]
                %600 = vst [vmem:[%s590 + $0x40] sm:$0xff] %v599
                %v601 = vld [vmem:[%s589 + $0x28] sm:$0xff]
                %602 = vst [vmem:[%s590 + $0x48] sm:$0xff] %v601
                %v603 = vld [vmem:[%s589 + $0x30] sm:$0xff]
                %604 = vst [vmem:[%s590 + $0x60] sm:$0xff] %v603
                %v605 = vld [vmem:[%s589 + $0x38] sm:$0xff]
                %606 = vst [vmem:[%s590 + $0x68] sm:$0xff] %v605
                %v607 = vld [vmem:[%s589 + $0x40] sm:$0xff]
                %608 = vst [vmem:[%s590 + $0x80] sm:$0xff] %v607
                %v609 = vld [vmem:[%s589 + $0x48] sm:$0xff]
                %610 = vst [vmem:[%s590 + $0x88] sm:$0xff] %v609
              $region69: #{encoder_block_forward.6} parent=63 // loop_footer
                %s588 = sadd.s32 1, %s584
              $region70: #{encoder_block_forward.6} parent=63 // loop_footer_branch
                %583 = sbr.rel target = $region66
              $region71: #{encoder_block_forward.6} parent=63 // loop_exit
                _
            $region64: #{encoder_block_forward.6} parent=59 // pred_fallthru
              _
            // Predicated region
            $region72: #{encoder_block_forward.6} parent=59 // pred_check
              _
            $region73: #{encoder_block_forward.6} parent=59 // pred_check_branch
              %612 = sbr.rel target = $region75
            $region74: #{encoder_block_forward.6} parent=59 // pred_region
              _
            $region75: #{encoder_block_forward.6} parent=59 // pred_fallthru
              _
          $region60: #{encoder_block_forward.6} parent=55 // pred_fallthru
            _
          %613 = vnop
        $region56: #{encoder_block_forward.6} parent=51 // pred_fallthru
          _
      $region52: #{encoder_block_forward.6} parent=5 // pred_fallthru
        _
      %p614 = scmp.le.s32.totalorder 2, %s14
      // Predicated region
      $region76: #{encoder_block_forward.6} parent=5 // pred_check
        %p615 = pneg %p614
      $region77: #{encoder_block_forward.6} parent=5 // pred_check_branch
        %617 = sbr.rel (%p615) target = $region79
      $region78: #{encoder_block_forward.6} parent=5 // pred_region
        %s618 = ssub.s32 %s14, 2
        // Predicated region
        $region80: #{encoder_block_forward.6} parent=78 // pred_check
          %p619 = pneg %p221
        $region81: #{encoder_block_forward.6} parent=78 // pred_check_branch
          %621 = sbr.rel (%p619) target = $region83
        $region82: #{encoder_block_forward.6} parent=78 // pred_region
          %s622 = sand.u32 %s206, 1
          %s623 = sand.u32 %s206, 1
          %s624 = smul.addr %s623, 80
          %s625 = scalar_lea.vmem [#allocation2], %s624
        $region83: #{encoder_block_forward.6} parent=78 // pred_fallthru
          _
      $region79: #{encoder_block_forward.6} parent=5 // pred_fallthru
        _
    $region6: #{encoder_block_forward.6} parent=1 // loop_footer
      %s18 = sadd.s32 1, %s14
    $region7: #{encoder_block_forward.6} parent=1 // loop_footer_branch
      %13 = sbr.rel target = $region3
    $region8: #{encoder_block_forward.6} parent=1 // loop_exit
      _

// kernel: encoder_block_forward.7
$region0: #{encoder_block_forward.7}
  #allocation0 [shape = 'u32[]', space=smem, size = 0x4, offset = 0x4, fixed_abs, tag = 'smem constant byte address 0x4 - core index']
  #allocation1 [shape = 'u32[72,128]{1,0:T(1,128)}', space=vmem, size = 0x9000, scoped, tag = 'internal scratch']
  %s0 = inlined_call_operand.vmem [shape: f32[4,512], index: 0, kind: input, shape index: {}]
  %s1 = inlined_call_operand.vmem [shape: f32[4,512], index: 1, kind: input, shape index: {}]
  %s2 = inlined_call_operand.vmem [shape: f32[4,512], index: 2, kind: input, shape index: {}]
  %s3 = inlined_call_operand.vmem [shape: f32[4,1], index: 3, kind: input, shape index: {}]
  %s4 = inlined_call_operand.vmem [shape: f32[4,1], index: 4, kind: input, shape index: {}]
  %s5 = inlined_call_operand.vmem [shape: f32[4,1], index: 5, kind: input, shape index: {}]
  %s6 = inlined_call_operand.vmem [shape: f32[4,1], index: 6, kind: input, shape index: {}]
  %s7 = inlined_call_operand.vmem [shape: f32[4,1], index: 7, kind: input, shape index: {}]
  %s8 = inlined_call_operand.vmem [shape: f32[4,1], index: 8, kind: input, shape index: {}]
  %s9 = inlined_call_operand.vmem [shape: f32[4,4], index: 9, kind: input, shape index: {}]
  %s10 = inlined_call_operand.vmem [shape: f32[4,4], index: 10, kind: input, shape index: {}]
  %s11 = inlined_call_operand.vmem [shape: f32[4,4], index: 11, kind: input, shape index: {}]
  %s12 = inlined_call_operand.vmem [shape: f32[4,1], index: 12, kind: input, shape index: {}]
  %s13 = inlined_call_operand.vmem [shape: f32[4,512], index: 13, kind: output, shape index: {0}]
  %s14 = inlined_call_operand.vmem [shape: f32[2,4,2], index: 14, kind: output, shape index: {1}]
  %15 = xla_tuple %s13, %s14
  %s16 = sld [smem:[#allocation0]]
  $region93: #{encoder_block_forward.7} parent=0
    _
  %s18 = ssub.s32 1, %s16
  %s19 = scalar_select 0, %s18, %s16
  loop: start=0, step=1, limit=4
  $region2: #{encoder_block_forward.7} parent=0 // loop_pre_header
    _
  $region3: #{encoder_block_forward.7} parent=0 // loop_header
    %s21 = sphi 0, %s25
    %p22 = scmp.ge.s32.totalorder %s21, 4
    %s31 = sphi 0, %s33
    %s34 = sphi 0, %s31
    %s35 = sphi 0, %s34
    %s51 = sphi 0, %s35
    %s57 = sphi 0, %s59
    %s60 = sphi 0, %s57
    %s61 = sphi 0, %s60
    %s77 = sphi 0, %s61
    %s83 = sphi 0, %s85
    %s86 = sphi 0, %s83
    %s87 = sphi 0, %s86
    %s103 = sphi 0, %s87
    %s107 = sphi 0, %s107
    %s109 = sphi 0, %s107
    %s110 = sphi 0, %s109
    %s124 = sphi 0, %s110
    %s128 = sphi 0, %s128
    %s130 = sphi 0, %s128
    %s131 = sphi 0, %s130
    %s145 = sphi 0, %s131
    %s149 = sphi 0, %s149
    %s151 = sphi 0, %s149
    %s152 = sphi 0, %s151
    %s166 = sphi 0, %s152
    %s170 = sphi 0, %s170
    %s172 = sphi 0, %s170
    %s173 = sphi 0, %s172
    %s187 = sphi 0, %s173
    %s191 = sphi 0, %s191
    %s193 = sphi 0, %s191
    %s194 = sphi 0, %s193
    %s208 = sphi 0, %s194
    %s212 = sphi 0, %s212
    %s214 = sphi 0, %s212
    %s215 = sphi 0, %s214
    %s229 = sphi 0, %s215
    %s233 = sphi 0, %s233
    %s235 = sphi 0, %s233
    %s236 = sphi 0, %s235
    %s250 = sphi 0, %s236
    %s254 = sphi 0, %s254
    %s256 = sphi 0, %s254
    %s257 = sphi 0, %s256
    %s271 = sphi 0, %s257
    %s275 = sphi 0, %s275
    %s277 = sphi 0, %s275
    %s278 = sphi 0, %s277
    %s292 = sphi 0, %s278
    %s296 = sphi 0, %s296
    %s298 = sphi 0, %s296
    %s299 = sphi 0, %s298
    %s313 = sphi 0, %s299
    %s319 = sphi 0, %s321
    %s322 = sphi 0, %s319
    %s323 = sphi 0, %s322
    %s339 = sphi 0, %s323
    %s345 = sphi 0, %s347
    %s348 = sphi 0, %s345
    %s349 = sphi 0, %s348
    %s365 = sphi 0, %s349
  $region4: #{encoder_block_forward.7} parent=0 // loop_header_branch
    %24 = sbr.rel (%p22) target = $region8
  $region5: #{encoder_block_forward.7} parent=0 // loop_body
    %s26 = ssub.s32 %s21, 1
    %s27 = ssub.s32 %s21, 2
    %s28 = sadd.s32 %s21, 1
    %s29 = ssub.s32 %s21, %s28
    %p30 = scmp.eq.s32.totalorder %s29, 0
    %s32 = sadd.s32 %s31, 1
    %s33 = scalar_select %p30, %s31, %s32
    %p36 = pneg %p30
    %p37 = scmp.eq.s32.totalorder %s21, 1
    %p38 = por %p36, %p37
    %p39 = scmp.ne.s32.totalorder %s31, %s34
    %p40 = scmp.eq.s32.totalorder %s21, 0
    %p41 = por %p39, %p40
    %p42 = scmp.ne.s32.totalorder %s31, %s34
    %p43 = scmp.eq.s32.totalorder %s26, 1
    %p44 = por %p42, %p43
    %p45 = scmp.ne.s32.totalorder %s34, %s35
    %p46 = scmp.eq.s32.totalorder %s26, 0
    %p47 = por %p45, %p46
    %p48 = scmp.ne.s32.totalorder %s34, %s35
    %p49 = scmp.eq.s32.totalorder %s27, 1
    %p50 = por %p48, %p49
    %p52 = scmp.ne.s32.totalorder %s35, %s51
    %p53 = scmp.eq.s32.totalorder %s27, 0
    %p54 = por %p52, %p53
    %s55 = ssub.s32 %s21, %s28
    %p56 = scmp.eq.s32.totalorder %s55, 0
    %s58 = sadd.s32 %s57, 1
    %s59 = scalar_select %p56, %s57, %s58
    %p62 = pneg %p56
    %p63 = scmp.eq.s32.totalorder %s21, 1
    %p64 = por %p62, %p63
    %p65 = scmp.ne.s32.totalorder %s57, %s60
    %p66 = scmp.eq.s32.totalorder %s21, 0
    %p67 = por %p65, %p66
    %p68 = scmp.ne.s32.totalorder %s57, %s60
    %p69 = scmp.eq.s32.totalorder %s26, 1
    %p70 = por %p68, %p69
    %p71 = scmp.ne.s32.totalorder %s60, %s61
    %p72 = scmp.eq.s32.totalorder %s26, 0
    %p73 = por %p71, %p72
    %p74 = scmp.ne.s32.totalorder %s60, %s61
    %p75 = scmp.eq.s32.totalorder %s27, 1
    %p76 = por %p74, %p75
    %p78 = scmp.ne.s32.totalorder %s61, %s77
    %p79 = scmp.eq.s32.totalorder %s27, 0
    %p80 = por %p78, %p79
    %s81 = ssub.s32 %s21, %s28
    %p82 = scmp.eq.s32.totalorder %s81, 0
    %s84 = sadd.s32 %s83, 1
    %s85 = scalar_select %p82, %s83, %s84
    %p88 = pneg %p82
    %p89 = scmp.eq.s32.totalorder %s21, 1
    %p90 = por %p88, %p89
    %p91 = scmp.ne.s32.totalorder %s83, %s86
    %p92 = scmp.eq.s32.totalorder %s21, 0
    %p93 = por %p91, %p92
    %p94 = scmp.ne.s32.totalorder %s83, %s86
    %p95 = scmp.eq.s32.totalorder %s26, 1
    %p96 = por %p94, %p95
    %p97 = scmp.ne.s32.totalorder %s86, %s87
    %p98 = scmp.eq.s32.totalorder %s26, 0
    %p99 = por %p97, %p98
    %p100 = scmp.ne.s32.totalorder %s86, %s87
    %p101 = scmp.eq.s32.totalorder %s27, 1
    %p102 = por %p100, %p101
    %p104 = scmp.ne.s32.totalorder %s87, %s103
    %p105 = scmp.eq.s32.totalorder %s27, 0
    %p106 = por %p104, %p105
    %s108 = sadd.s32 %s107, 1
    %p111 = scmp.eq.s32.totalorder %s21, 1
    %p112 = scmp.ne.s32.totalorder %s107, %s109
    %p113 = scmp.eq.s32.totalorder %s21, 0
    %p114 = por %p112, %p113
    %p115 = scmp.ne.s32.totalorder %s107, %s109
    %p116 = scmp.eq.s32.totalorder %s26, 1
    %p117 = por %p115, %p116
    %p118 = scmp.ne.s32.totalorder %s109, %s110
    %p119 = scmp.eq.s32.totalorder %s26, 0
    %p120 = por %p118, %p119
    %p121 = scmp.ne.s32.totalorder %s109, %s110
    %p122 = scmp.eq.s32.totalorder %s27, 1
    %p123 = por %p121, %p122
    %p125 = scmp.ne.s32.totalorder %s110, %s124
    %p126 = scmp.eq.s32.totalorder %s27, 0
    %p127 = por %p125, %p126
    %s129 = sadd.s32 %s128, 1
    %p132 = scmp.eq.s32.totalorder %s21, 1
    %p133 = scmp.ne.s32.totalorder %s128, %s130
    %p134 = scmp.eq.s32.totalorder %s21, 0
    %p135 = por %p133, %p134
    %p136 = scmp.ne.s32.totalorder %s128, %s130
    %p137 = scmp.eq.s32.totalorder %s26, 1
    %p138 = por %p136, %p137
    %p139 = scmp.ne.s32.totalorder %s130, %s131
    %p140 = scmp.eq.s32.totalorder %s26, 0
    %p141 = por %p139, %p140
    %p142 = scmp.ne.s32.totalorder %s130, %s131
    %p143 = scmp.eq.s32.totalorder %s27, 1
    %p144 = por %p142, %p143
    %p146 = scmp.ne.s32.totalorder %s131, %s145
    %p147 = scmp.eq.s32.totalorder %s27, 0
    %p148 = por %p146, %p147
    %s150 = sadd.s32 %s149, 1
    %p153 = scmp.eq.s32.totalorder %s21, 1
    %p154 = scmp.ne.s32.totalorder %s149, %s151
    %p155 = scmp.eq.s32.totalorder %s21, 0
    %p156 = por %p154, %p155
    %p157 = scmp.ne.s32.totalorder %s149, %s151
    %p158 = scmp.eq.s32.totalorder %s26, 1
    %p159 = por %p157, %p158
    %p160 = scmp.ne.s32.totalorder %s151, %s152
    %p161 = scmp.eq.s32.totalorder %s26, 0
    %p162 = por %p160, %p161
    %p163 = scmp.ne.s32.totalorder %s151, %s152
    %p164 = scmp.eq.s32.totalorder %s27, 1
    %p165 = por %p163, %p164
    %p167 = scmp.ne.s32.totalorder %s152, %s166
    %p168 = scmp.eq.s32.totalorder %s27, 0
    %p169 = por %p167, %p168
    %s171 = sadd.s32 %s170, 1
    %p174 = scmp.eq.s32.totalorder %s21, 1
    %p175 = scmp.ne.s32.totalorder %s170, %s172
    %p176 = scmp.eq.s32.totalorder %s21, 0
    %p177 = por %p175, %p176
    %p178 = scmp.ne.s32.totalorder %s170, %s172
    %p179 = scmp.eq.s32.totalorder %s26, 1
    %p180 = por %p178, %p179
    %p181 = scmp.ne.s32.totalorder %s172, %s173
    %p182 = scmp.eq.s32.totalorder %s26, 0
    %p183 = por %p181, %p182
    %p184 = scmp.ne.s32.totalorder %s172, %s173
    %p185 = scmp.eq.s32.totalorder %s27, 1
    %p186 = por %p184, %p185
    %p188 = scmp.ne.s32.totalorder %s173, %s187
    %p189 = scmp.eq.s32.totalorder %s27, 0
    %p190 = por %p188, %p189
    %s192 = sadd.s32 %s191, 1
    %p195 = scmp.eq.s32.totalorder %s21, 1
    %p196 = scmp.ne.s32.totalorder %s191, %s193
    %p197 = scmp.eq.s32.totalorder %s21, 0
    %p198 = por %p196, %p197
    %p199 = scmp.ne.s32.totalorder %s191, %s193
    %p200 = scmp.eq.s32.totalorder %s26, 1
    %p201 = por %p199, %p200
    %p202 = scmp.ne.s32.totalorder %s193, %s194
    %p203 = scmp.eq.s32.totalorder %s26, 0
    %p204 = por %p202, %p203
    %p205 = scmp.ne.s32.totalorder %s193, %s194
    %p206 = scmp.eq.s32.totalorder %s27, 1
    %p207 = por %p205, %p206
    %p209 = scmp.ne.s32.totalorder %s194, %s208
    %p210 = scmp.eq.s32.totalorder %s27, 0
    %p211 = por %p209, %p210
    %s213 = sadd.s32 %s212, 1
    %p216 = scmp.eq.s32.totalorder %s21, 1
    %p217 = scmp.ne.s32.totalorder %s212, %s214
    %p218 = scmp.eq.s32.totalorder %s21, 0
    %p219 = por %p217, %p218
    %p220 = scmp.ne.s32.totalorder %s212, %s214
    %p221 = scmp.eq.s32.totalorder %s26, 1
    %p222 = por %p220, %p221
    %p223 = scmp.ne.s32.totalorder %s214, %s215
    %p224 = scmp.eq.s32.totalorder %s26, 0
    %p225 = por %p223, %p224
    %p226 = scmp.ne.s32.totalorder %s214, %s215
    %p227 = scmp.eq.s32.totalorder %s27, 1
    %p228 = por %p226, %p227
    %p230 = scmp.ne.s32.totalorder %s215, %s229
    %p231 = scmp.eq.s32.totalorder %s27, 0
    %p232 = por %p230, %p231
    %s234 = sadd.s32 %s233, 1
    %p237 = scmp.eq.s32.totalorder %s21, 1
    %p238 = scmp.ne.s32.totalorder %s233, %s235
    %p239 = scmp.eq.s32.totalorder %s21, 0
    %p240 = por %p238, %p239
    %p241 = scmp.ne.s32.totalorder %s233, %s235
    %p242 = scmp.eq.s32.totalorder %s26, 1
    %p243 = por %p241, %p242
    %p244 = scmp.ne.s32.totalorder %s235, %s236
    %p245 = scmp.eq.s32.totalorder %s26, 0
    %p246 = por %p244, %p245
    %p247 = scmp.ne.s32.totalorder %s235, %s236
    %p248 = scmp.eq.s32.totalorder %s27, 1
    %p249 = por %p247, %p248
    %p251 = scmp.ne.s32.totalorder %s236, %s250
    %p252 = scmp.eq.s32.totalorder %s27, 0
    %p253 = por %p251, %p252
    %s255 = sadd.s32 %s254, 1
    %p258 = scmp.eq.s32.totalorder %s21, 1
    %p259 = scmp.ne.s32.totalorder %s254, %s256
    %p260 = scmp.eq.s32.totalorder %s21, 0
    %p261 = por %p259, %p260
    %p262 = scmp.ne.s32.totalorder %s254, %s256
    %p263 = scmp.eq.s32.totalorder %s26, 1
    %p264 = por %p262, %p263
    %p265 = scmp.ne.s32.totalorder %s256, %s257
    %p266 = scmp.eq.s32.totalorder %s26, 0
    %p267 = por %p265, %p266
    %p268 = scmp.ne.s32.totalorder %s256, %s257
    %p269 = scmp.eq.s32.totalorder %s27, 1
    %p270 = por %p268, %p269
    %p272 = scmp.ne.s32.totalorder %s257, %s271
    %p273 = scmp.eq.s32.totalorder %s27, 0
    %p274 = por %p272, %p273
    %s276 = sadd.s32 %s275, 1
    %p279 = scmp.eq.s32.totalorder %s21, 1
    %p280 = scmp.ne.s32.totalorder %s275, %s277
    %p281 = scmp.eq.s32.totalorder %s21, 0
    %p282 = por %p280, %p281
    %p283 = scmp.ne.s32.totalorder %s275, %s277
    %p284 = scmp.eq.s32.totalorder %s26, 1
    %p285 = por %p283, %p284
    %p286 = scmp.ne.s32.totalorder %s277, %s278
    %p287 = scmp.eq.s32.totalorder %s26, 0
    %p288 = por %p286, %p287
    %p289 = scmp.ne.s32.totalorder %s277, %s278
    %p290 = scmp.eq.s32.totalorder %s27, 1
    %p291 = por %p289, %p290
    %p293 = scmp.ne.s32.totalorder %s278, %s292
    %p294 = scmp.eq.s32.totalorder %s27, 0
    %p295 = por %p293, %p294
    %s297 = sadd.s32 %s296, 1
    %p300 = scmp.eq.s32.totalorder %s21, 1
    %p301 = scmp.ne.s32.totalorder %s296, %s298
    %p302 = scmp.eq.s32.totalorder %s21, 0
    %p303 = por %p301, %p302
    %p304 = scmp.ne.s32.totalorder %s296, %s298
    %p305 = scmp.eq.s32.totalorder %s26, 1
    %p306 = por %p304, %p305
    %p307 = scmp.ne.s32.totalorder %s298, %s299
    %p308 = scmp.eq.s32.totalorder %s26, 0
    %p309 = por %p307, %p308
    %p310 = scmp.ne.s32.totalorder %s298, %s299
    %p311 = scmp.eq.s32.totalorder %s27, 1
    %p312 = por %p310, %p311
    %p314 = scmp.ne.s32.totalorder %s299, %s313
    %p315 = scmp.eq.s32.totalorder %s27, 0
    %p316 = por %p314, %p315
    %s317 = ssub.s32 %s21, %s28
    %p318 = scmp.eq.s32.totalorder %s317, 0
    %s320 = sadd.s32 %s319, 1
    %s321 = scalar_select %p318, %s319, %s320
    %p324 = pneg %p318
    %p325 = scmp.eq.s32.totalorder %s21, 1
    %p326 = por %p324, %p325
    %p327 = scmp.ne.s32.totalorder %s319, %s322
    %p328 = scmp.eq.s32.totalorder %s21, 0
    %p329 = por %p327, %p328
    %p330 = scmp.ne.s32.totalorder %s319, %s322
    %p331 = scmp.eq.s32.totalorder %s26, 1
    %p332 = por %p330, %p331
    %p333 = scmp.ne.s32.totalorder %s322, %s323
    %p334 = scmp.eq.s32.totalorder %s26, 0
    %p335 = por %p333, %p334
    %p336 = scmp.ne.s32.totalorder %s322, %s323
    %p337 = scmp.eq.s32.totalorder %s27, 1
    %p338 = por %p336, %p337
    %p340 = scmp.ne.s32.totalorder %s323, %s339
    %p341 = scmp.eq.s32.totalorder %s27, 0
    %p342 = por %p340, %p341
    %s343 = ssub.s32 %s21, %s28
    %p344 = scmp.eq.s32.totalorder %s343, 0
    %s346 = sadd.s32 %s345, 1
    %s347 = scalar_select %p344, %s345, %s346
    %p350 = pneg %p344
    %p351 = scmp.eq.s32.totalorder %s21, 1
    %p352 = por %p350, %p351
    %p353 = scmp.ne.s32.totalorder %s345, %s348
    %p354 = scmp.eq.s32.totalorder %s21, 0
    %p355 = por %p353, %p354
    %p356 = scmp.ne.s32.totalorder %s345, %s348
    %p357 = scmp.eq.s32.totalorder %s26, 1
    %p358 = por %p356, %p357
    %p359 = scmp.ne.s32.totalorder %s348, %s349
    %p360 = scmp.eq.s32.totalorder %s26, 0
    %p361 = por %p359, %p360
    %p362 = scmp.ne.s32.totalorder %s348, %s349
    %p363 = scmp.eq.s32.totalorder %s27, 1
    %p364 = por %p362, %p363
    %p366 = scmp.ne.s32.totalorder %s349, %s365
    %p367 = scmp.eq.s32.totalorder %s27, 0
    %p368 = por %p366, %p367
    %p369 = scmp.le.s32.totalorder 1, %s21
    %p370 = scmp.lt.s32.totalorder %s21, 3
    %p371 = pnand %p369, %p370
    %p372 = pneg %p371
    // Predicated region
    $region9: #{encoder_block_forward.7} parent=5 // pred_check
      _
    $region10: #{encoder_block_forward.7} parent=5 // pred_check_branch
      %374 = sbr.rel (%p371) target = $region12
    $region11: #{encoder_block_forward.7} parent=5 // pred_region
      %s375 = ssub.s32 %s21, 1
      // Predicated region
      $region13: #{encoder_block_forward.7} parent=11 // pred_check
        %p376 = pneg %p120
      $region14: #{encoder_block_forward.7} parent=11 // pred_check_branch
        %378 = sbr.rel (%p376) target = $region16
      $region15: #{encoder_block_forward.7} parent=11 // pred_region
        _
      $region16: #{encoder_block_forward.7} parent=11 // pred_fallthru
        _
      // Predicated region
      $region17: #{encoder_block_forward.7} parent=11 // pred_check
        %p379 = pneg %p141
      $region18: #{encoder_block_forward.7} parent=11 // pred_check_branch
        %381 = sbr.rel (%p379) target = $region20
      $region19: #{encoder_block_forward.7} parent=11 // pred_region
        _
      $region20: #{encoder_block_forward.7} parent=11 // pred_fallthru
        _
      // Predicated region
      $region21: #{encoder_block_forward.7} parent=11 // pred_check
        %p382 = pneg %p162
      $region22: #{encoder_block_forward.7} parent=11 // pred_check_branch
        %384 = sbr.rel (%p382) target = $region24
      $region23: #{encoder_block_forward.7} parent=11 // pred_region
        _
      $region24: #{encoder_block_forward.7} parent=11 // pred_fallthru
        _
      // Predicated region
      $region25: #{encoder_block_forward.7} parent=11 // pred_check
        %p385 = pneg %p183
      $region26: #{encoder_block_forward.7} parent=11 // pred_check_branch
        %387 = sbr.rel (%p385) target = $region28
      $region27: #{encoder_block_forward.7} parent=11 // pred_region
        _
      $region28: #{encoder_block_forward.7} parent=11 // pred_fallthru
        _
      // Predicated region
      $region29: #{encoder_block_forward.7} parent=11 // pred_check
        %p388 = pneg %p204
      $region30: #{encoder_block_forward.7} parent=11 // pred_check_branch
        %390 = sbr.rel (%p388) target = $region32
      $region31: #{encoder_block_forward.7} parent=11 // pred_region
        _
      $region32: #{encoder_block_forward.7} parent=11 // pred_fallthru
        _
      // Predicated region
      $region33: #{encoder_block_forward.7} parent=11 // pred_check
        %p391 = pneg %p225
      $region34: #{encoder_block_forward.7} parent=11 // pred_check_branch
        %393 = sbr.rel (%p391) target = $region36
      $region35: #{encoder_block_forward.7} parent=11 // pred_region
        _
      $region36: #{encoder_block_forward.7} parent=11 // pred_fallthru
        _
      // Predicated region
      $region37: #{encoder_block_forward.7} parent=11 // pred_check
        %p394 = pneg %p246
      $region38: #{encoder_block_forward.7} parent=11 // pred_check_branch
        %396 = sbr.rel (%p394) target = $region40
      $region39: #{encoder_block_forward.7} parent=11 // pred_region
        _
      $region40: #{encoder_block_forward.7} parent=11 // pred_fallthru
        _
      // Predicated region
      $region41: #{encoder_block_forward.7} parent=11 // pred_check
        %p397 = pneg %p267
      $region42: #{encoder_block_forward.7} parent=11 // pred_check_branch
        %399 = sbr.rel (%p397) target = $region44
      $region43: #{encoder_block_forward.7} parent=11 // pred_region
        _
      $region44: #{encoder_block_forward.7} parent=11 // pred_fallthru
        _
      // Predicated region
      $region45: #{encoder_block_forward.7} parent=11 // pred_check
        %p400 = pneg %p288
      $region46: #{encoder_block_forward.7} parent=11 // pred_check_branch
        %402 = sbr.rel (%p400) target = $region48
      $region47: #{encoder_block_forward.7} parent=11 // pred_region
        _
      $region48: #{encoder_block_forward.7} parent=11 // pred_fallthru
        _
      // Predicated region
      $region49: #{encoder_block_forward.7} parent=11 // pred_check
        %p403 = pneg %p309
      $region50: #{encoder_block_forward.7} parent=11 // pred_check_branch
        %405 = sbr.rel (%p403) target = $region52
      $region51: #{encoder_block_forward.7} parent=11 // pred_region
        _
      $region52: #{encoder_block_forward.7} parent=11 // pred_fallthru
        _
    $region12: #{encoder_block_forward.7} parent=5 // pred_fallthru
      _
    %p406 = scmp.lt.s32.totalorder %s21, 2
    // Predicated region
    $region53: #{encoder_block_forward.7} parent=5 // pred_check
      %p407 = pneg %p406
    $region54: #{encoder_block_forward.7} parent=5 // pred_check_branch
      %409 = sbr.rel (%p407) target = $region56
    $region55: #{encoder_block_forward.7} parent=5 // pred_region
      // Predicated region
      $region57: #{encoder_block_forward.7} parent=55 // pred_check
        %p410 = pneg %p41
      $region58: #{encoder_block_forward.7} parent=55 // pred_check_branch
        %412 = sbr.rel (%p410) target = $region60
      $region59: #{encoder_block_forward.7} parent=55 // pred_region
        %s413 = smul.u32 2, %s21
        %p414 = scmp.lt.s32.totalorder %s413, 3
        %s415 = scalar_select %p414, %s413, 3
        %s416 = smul.addr %s415, 4
        %s417 = scalar_lea.vmem %s0, %s416
        %s418 = smul.u32 2, %s21
      $region60: #{encoder_block_forward.7} parent=55 // pred_fallthru
        _
      // Predicated region
      $region61: #{encoder_block_forward.7} parent=55 // pred_check
        %p419 = pneg %p67
      $region62: #{encoder_block_forward.7} parent=55 // pred_check_branch
        %421 = sbr.rel (%p419) target = $region64
      $region63: #{encoder_block_forward.7} parent=55 // pred_region
        %s422 = smul.u32 2, %s21
        %p423 = scmp.lt.s32.totalorder %s422, 3
        %s424 = scalar_select %p423, %s422, 3
        %s425 = smul.addr %s424, 4
        %s426 = scalar_lea.vmem %s1, %s425
        %s427 = smul.u32 2, %s21
      $region64: #{encoder_block_forward.7} parent=55 // pred_fallthru
        _
      // Predicated region
      $region65: #{encoder_block_forward.7} parent=55 // pred_check
        %p428 = pneg %p93
      $region66: #{encoder_block_forward.7} parent=55 // pred_check_branch
        %430 = sbr.rel (%p428) target = $region68
      $region67: #{encoder_block_forward.7} parent=55 // pred_region
        %s431 = smul.u32 2, %s21
        %p432 = scmp.lt.s32.totalorder %s431, 3
        %s433 = scalar_select %p432, %s431, 3
        %s434 = smul.addr %s433, 4
        %s435 = scalar_lea.vmem %s2, %s434
        %s436 = smul.u32 2, %s21
      $region68: #{encoder_block_forward.7} parent=55 // pred_fallthru
        _
    $region56: #{encoder_block_forward.7} parent=5 // pred_fallthru
      _
    %p437 = scmp.le.s32.totalorder 1, %s21
    %p438 = scmp.lt.s32.totalorder %s21, 3
    %p439 = pnand %p437, %p438
    %p440 = pneg %p439
    // Predicated region
    $region69: #{encoder_block_forward.7} parent=5 // pred_check
      _
    $region70: #{encoder_block_forward.7} parent=5 // pred_check_branch
      %442 = sbr.rel (%p439) target = $region72
    $region71: #{encoder_block_forward.7} parent=5 // pred_region
      %s443 = ssub.s32 %s21, 1
      %s444 = smul.u32 2, %s26
      %p445 = scmp.lt.s32.totalorder %s444, 3
      %s446 = scalar_select %p445, %s444, 3
      %s447 = smul.addr %s446, 4
      %s448 = scalar_lea.vmem %s0, %s447
      %p449 = pneg %p47
      %p450 = pneg %p44
      %s451 = smul.u32 2, %s26
      %p452 = scmp.lt.s32.totalorder %s451, 3
      %s453 = scalar_select %p452, %s451, 3
      %s454 = smul.addr %s453, 4
      %s455 = scalar_lea.vmem %s1, %s454
      %p456 = pneg %p73
      %p457 = pneg %p70
      %s458 = smul.u32 2, %s26
      %p459 = scmp.lt.s32.totalorder %s458, 3
      %s460 = scalar_select %p459, %s458, 3
      %s461 = smul.addr %s460, 4
      %s462 = scalar_lea.vmem %s2, %s461
      %p463 = pneg %p99
      %p464 = pneg %p96
      %p465 = pneg %p120
      %p466 = pneg %p117
      %p467 = pneg %p141
      %p468 = pneg %p138
      %p469 = pneg %p162
      %p470 = pneg %p159
      %p471 = pneg %p183
      %p472 = pneg %p180
      %p473 = pneg %p204
      %p474 = pneg %p201
      %p475 = pneg %p225
      %p476 = pneg %p222
      %p477 = pneg %p246
      %p478 = pneg %p243
      %p479 = pneg %p267
      %p480 = pneg %p264
      %p481 = pneg %p288
      %p482 = pneg %p285
      %p483 = pneg %p309
      %p484 = pneg %p306
      %p485 = pneg %p335
      %p486 = pneg %p332
      %s487 = smul.u32 2, %s26
      %p488 = scmp.lt.s32.totalorder %s487, 3
      %s489 = scalar_select %p488, %s487, 3
      %s490 = smul.addr %s489, 4
      %s491 = scalar_lea.vmem %s13, %s490
      %p492 = pneg %p361
      %p493 = pneg %p358
      %p494 = scmp.lt.s32.totalorder %s26, 1
      %s495 = scalar_select %p494, %s26, 1
      %s496 = smul.addr %s495, 4
      %s497 = scalar_lea.vmem %s14, %s496
      %s498 = smul.u32 2, %s26
      %p499 = scmp.lt.s32.totalorder %s498, 3
      %s500 = scalar_select %p499, %s498, 3
      %s501 = smul.addr %s500, 4
      %s502 = scalar_lea.vmem %s0, %s501
      %s503 = smul.u32 2, %s26
      %s504 = smul.u32 2, %s26
      %p505 = scmp.lt.s32.totalorder %s504, 3
      %s506 = scalar_select %p505, %s504, 3
      %s507 = smul.addr %s506, 4
      %s508 = scalar_lea.vmem %s1, %s507
      %s509 = smul.u32 2, %s26
      %s510 = smul.u32 2, %s26
      %p511 = scmp.lt.s32.totalorder %s510, 3
      %s512 = scalar_select %p511, %s510, 3
      %s513 = smul.addr %s512, 4
      %s514 = scalar_lea.vmem %s2, %s513
      %s515 = smul.u32 2, %s26
      %s516 = smul.u32 2, %s26
      %p517 = scmp.lt.s32.totalorder %s516, 3
      %s518 = scalar_select %p517, %s516, 3
      %s519 = smul.addr %s518, 4
      %s520 = scalar_lea.vmem %s13, %s519
      %s521 = smul.u32 2, %s26
      %p522 = scmp.lt.s32.totalorder %s26, 1
      %s523 = scalar_select %p522, %s26, 1
      %s524 = smul.addr %s523, 4
      %s525 = scalar_lea.vmem %s14, %s524
      %v526 = vld [vmem:[%s502] sm:$0xff]
      %v527 = vld [vmem:[%s3] sm:$0xf]
      %529 = vset.pattern.permute.xlu0 0
      %530 = vperm.xlu0 %529, %v527
      %v531 = vpop.permute.xlu0 %530
      %v533 = vunpack.c.l.s4 839922192
      %v534 = vunpack.c.0.s8 %v533
      %v535 = vperm.slane %v531, %v534
      %v537 = vmul.f32 %v526, %v535
      %v538 = vld [vmem:[%s6] sm:$0xf]
      %540 = vset.pattern.permute.xlu0 0
      %541 = vperm.xlu0 %540, %v538
      %v542 = vpop.permute.xlu0 %541
      %v544 = vunpack.c.l.s4 839922192
      %v545 = vunpack.c.0.s8 %v544
      %v546 = vperm.slane %v542, %v545
      %v548 = vadd.f32 %v537, %v546
      %v549 = vmax.f32 %v548, 0.0
      %v550 = vld [vmem:[%s9] sm:$0xf]
      %v551 = vld [vmem:[%s508] sm:$0xff]
      %v552 = vld [vmem:[%s4] sm:$0xf]
      %554 = vset.pattern.permute.xlu0 0
      %555 = vperm.xlu0 %554, %v552
      %v556 = vpop.permute.xlu0 %555
      %v558 = vunpack.c.l.s4 839922192
      %v559 = vunpack.c.0.s8 %v558
      %v560 = vperm.slane %v556, %v559
      %v562 = vmul.f32 %v551, %v560
      %v563 = vld [vmem:[%s7] sm:$0xf]
      %565 = vset.pattern.permute.xlu0 0
      %566 = vperm.xlu0 %565, %v563
      %v567 = vpop.permute.xlu0 %566
      %v569 = vunpack.c.l.s4 839922192
      %v570 = vunpack.c.0.s8 %v569
      %v571 = vperm.slane %v567, %v570
      %v573 = vadd.f32 %v562, %v571
      %v574 = vmax.f32 %v573, 0.0
      %v575 = vld [vmem:[%s10] sm:$0xf]
      %577 = vst [vmem:[#allocation1] ss:$2 sm:$0xff] %v574
      %v578 = vld.sshfl [vmem:[#allocation1] sm:$0xff pattern:$0x75316420]
      %v579 = vld.sshfl [vmem:[#allocation1 + $0x8] sm:$0xff pattern:$0x75316420]
      %vm580 = vcmask 31744
      %v582 = vsel %vm580, %v575, 0
      %vm584 = vcmask 1043456
      %v585 = vsel %vm584, %v578, 0
      %v587 = vsel %vm584, %v579, 0
      %589 = vmatpush.msra.mxu0 0.0
      %590 = vmatpush.msra.mxu0 0.0
      %591 = vmatpush.msra.mxu0 0.0
      %592 = vmatpush.msra.mxu0 0.0
      %593 = vmatpush.msra.mxu0 0.0
      %594 = vmatpush.msra.mxu0 0.0
      %595 = vmatpush.msra.mxu0 0.0
      %596 = vmatpush.msra.mxu0 0.0
      %597 = vmatpush.msra.mxu0 0.0
      %598 = vmatpush.msra.mxu0 0.0
      %599 = vmatpush.msra.mxu0 0.0
      %600 = vmatpush.msra.mxu0 0.0
      %601 = vmatpush.msra.mxu0 0.0
      %602 = vmatpush.msra.mxu0 0.0
      %603 = vmatpush.msra.mxu0 0.0
      %604 = vmatpush.msra.mxu0 %v585
      %605 = vmatmul.f32.gmra.mxu0 %v582
      %v606 = vpop.f32.mrf.mxu0
      %v607 = vadd.f32 0.0, %v606
      %608 = vdwg.mxu0
      %609 = vmatpush.msra.mxu0 0.0
      %610 = vmatpush.msra.mxu0 0.0
      %611 = vmatpush.msra.mxu0 0.0
      %612 = vmatpush.msra.mxu0 0.0
      %613 = vmatpush.msra.mxu0 0.0
      %614 = vmatpush.msra.mxu0 0.0
      %615 = vmatpush.msra.mxu0 0.0
      %616 = vmatpush.msra.mxu0 0.0
      %617 = vmatpush.msra.mxu0 0.0
      %618 = vmatpush.msra.mxu0 0.0
      %619 = vmatpush.msra.mxu0 0.0
      %620 = vmatpush.msra.mxu0 0.0
      %621 = vmatpush.msra.mxu0 0.0
      %622 = vmatpush.msra.mxu0 0.0
      %623 = vmatpush.msra.mxu0 0.0
      %624 = vmatpush.msra.mxu0 %v587
      %625 = vmatmul.f32.gmra.mxu0 %v582
      %v626 = vpop.f32.mrf.mxu0
      %v627 = vadd.f32 0.0, %v626
      %628 = vdwg.mxu0
      %630 = vst [vmem:[#allocation1] ss:$2 sm:$0xff] %v549
      %v631 = vld.sshfl [vmem:[#allocation1] sm:$0xff pattern:$0x75316420]
      %v632 = vld.sshfl [vmem:[#allocation1 + $0x8] sm:$0xff pattern:$0x75316420]
      %v634 = vsel %vm580, %v550, 0
      %v636 = vsel %vm584, %v631, 0
      %v638 = vsel %vm584, %v632, 0
      %640 = vmatpush.msra.mxu0 0.0
      %641 = vmatpush.msra.mxu0 0.0
      %642 = vmatpush.msra.mxu0 0.0
      %643 = vmatpush.msra.mxu0 0.0
      %644 = vmatpush.msra.mxu0 0.0
      %645 = vmatpush.msra.mxu0 0.0
      %646 = vmatpush.msra.mxu0 0.0
      %647 = vmatpush.msra.mxu0 0.0
      %648 = vmatpush.msra.mxu0 0.0
      %649 = vmatpush.msra.mxu0 0.0
      %650 = vmatpush.msra.mxu0 0.0
      %651 = vmatpush.msra.mxu0 0.0
      %652 = vmatpush.msra.mxu0 0.0
      %653 = vmatpush.msra.mxu0 0.0
      %654 = vmatpush.msra.mxu0 0.0
      %655 = vmatpush.msra.mxu0 %v636
      %656 = vmatmul.f32.gmra.mxu0 %v634
      %v657 = vpop.f32.mrf.mxu0
      %v658 = vadd.f32 %v607, %v657
      %659 = vdwg.mxu0
      %660 = vmatpush.msra.mxu0 0.0
      %661 = vmatpush.msra.mxu0 0.0
      %662 = vmatpush.msra.mxu0 0.0
      %663 = vmatpush.msra.mxu0 0.0
      %664 = vmatpush.msra.mxu0 0.0
      %665 = vmatpush.msra.mxu0 0.0
      %666 = vmatpush.msra.mxu0 0.0
      %667 = vmatpush.msra.mxu0 0.0
      %668 = vmatpush.msra.mxu0 0.0
      %669 = vmatpush.msra.mxu0 0.0
      %670 = vmatpush.msra.mxu0 0.0
      %671 = vmatpush.msra.mxu0 0.0
      %672 = vmatpush.msra.mxu0 0.0
      %673 = vmatpush.msra.mxu0 0.0
      %674 = vmatpush.msra.mxu0 0.0
      %675 = vmatpush.msra.mxu0 %v638
      %676 = vmatmul.f32.gmra.mxu0 %v634
      %v677 = vpop.f32.mrf.mxu0
      %v678 = vadd.f32 %v627, %v677
      %679 = vdwg.mxu0
      %v680 = vld [vmem:[%s514] sm:$0xff]
      %v681 = vld [vmem:[%s5] sm:$0xf]
      %683 = vset.pattern.permute.xlu0 0
      %684 = vperm.xlu0 %683, %v681
      %v685 = vpop.permute.xlu0 %684
      %v687 = vunpack.c.l.s4 839922192
      %v688 = vunpack.c.0.s8 %v687
      %v689 = vperm.slane %v685, %v688
      %v691 = vmul.f32 %v680, %v689
      %v692 = vld [vmem:[%s8] sm:$0xf]
      %694 = vset.pattern.permute.xlu0 0
      %695 = vperm.xlu0 %694, %v692
      %v696 = vpop.permute.xlu0 %695
      %v698 = vunpack.c.l.s4 839922192
      %v699 = vunpack.c.0.s8 %v698
      %v700 = vperm.slane %v696, %v699
      %v702 = vadd.f32 %v691, %v700
      %v703 = vmax.f32 %v702, 0.0
      %v704 = vld [vmem:[%s11] sm:$0xf]
      %706 = vst [vmem:[#allocation1] ss:$2 sm:$0xff] %v703
      %v707 = vld.sshfl [vmem:[#allocation1] sm:$0xff pattern:$0x75316420]
      %v708 = vld.sshfl [vmem:[#allocation1 + $0x8] sm:$0xff pattern:$0x75316420]
      %v710 = vsel %vm580, %v704, 0
      %v712 = vsel %vm584, %v707, 0
      %v714 = vsel %vm584, %v708, 0
      %716 = vmatpush.msra.mxu0 0.0
      %717 = vmatpush.msra.mxu0 0.0
      %718 = vmatpush.msra.mxu0 0.0
      %719 = vmatpush.msra.mxu0 0.0
      %720 = vmatpush.msra.mxu0 0.0
      %721 = vmatpush.msra.mxu0 0.0
      %722 = vmatpush.msra.mxu0 0.0
      %723 = vmatpush.msra.mxu0 0.0
      %724 = vmatpush.msra.mxu0 0.0
      %725 = vmatpush.msra.mxu0 0.0
      %726 = vmatpush.msra.mxu0 0.0
      %727 = vmatpush.msra.mxu0 0.0
      %728 = vmatpush.msra.mxu0 0.0
      %729 = vmatpush.msra.mxu0 0.0
      %730 = vmatpush.msra.mxu0 0.0
      %731 = vmatpush.msra.mxu0 %v712
      %732 = vmatmul.f32.gmra.mxu0 %v710
      %v733 = vpop.f32.mrf.mxu0
      %v734 = vadd.f32 0.0, %v733
      %735 = vdwg.mxu0
      %736 = vmatpush.msra.mxu0 0.0
      %737 = vmatpush.msra.mxu0 0.0
      %738 = vmatpush.msra.mxu0 0.0
      %739 = vmatpush.msra.mxu0 0.0
      %740 = vmatpush.msra.mxu0 0.0
      %741 = vmatpush.msra.mxu0 0.0
      %742 = vmatpush.msra.mxu0 0.0
      %743 = vmatpush.msra.mxu0 0.0
      %744 = vmatpush.msra.mxu0 0.0
      %745 = vmatpush.msra.mxu0 0.0
      %746 = vmatpush.msra.mxu0 0.0
      %747 = vmatpush.msra.mxu0 0.0
      %748 = vmatpush.msra.mxu0 0.0
      %749 = vmatpush.msra.mxu0 0.0
      %750 = vmatpush.msra.mxu0 0.0
      %751 = vmatpush.msra.mxu0 %v714
      %752 = vmatmul.f32.gmra.mxu0 %v710
      %v753 = vpop.f32.mrf.mxu0
      %v754 = vadd.f32 0.0, %v753
      %755 = vdwg.mxu0
      %v756 = vadd.f32 %v658, %v734
      %v757 = vadd.f32 %v678, %v754
      %v758 = vld [vmem:[%s12] sm:$0xf]
      %760 = vset.pattern.permute.xlu0 0
      %761 = vperm.xlu0 %760, %v758
      %v762 = vpop.permute.xlu0 %761
      %v764 = vadd.f32 %v756, %v762
      %v765 = vadd.f32 %v757, %v762
      %v768 = vrot.slane %v765, 4
      %v769 = vsel %vm584, %v764, %v768
      %771 = vst [vmem:[%s520] sm:$0xff] %v769
      %v772 = vsel %vm584, %v764, 0.0
      %v773 = vsel %vm584, %v765, 0.0
      %v774 = vadd.f32 %v772, %v773
      %775 = vadd.xlane.f32.xlu0 %v774
      %v776 = vpop.xlane.xlu0 %775
      %v777 = vmul.f32 %v764, %v764
      %v778 = vmul.f32 %v765, %v765
      %v779 = vsel %vm584, %v777, 0.0
      %v780 = vsel %vm584, %v778, 0.0
      %v781 = vadd.f32 %v779, %v780
      %782 = vadd.xlane.f32.xlu0 %v781
      %v783 = vpop.xlane.xlu0 %782
      %vm784 = vcmask 7168
      %v785 = vsel %vm784, %v776, %v783
      %vm786 = vcmask 11264
      %787 = vst.msk [vmem:[%s525] sm:$0xf] %vm786, %v785
      %s788 = smul.u32 2, %s26
      %p789 = scmp.lt.s32.totalorder %s788, 3
      %s790 = scalar_select %p789, %s788, 3
      %s791 = smul.addr %s790, 4
      %s792 = scalar_lea.vmem %s13, %s791
      %p793 = scmp.lt.s32.totalorder %s26, 1
      %s794 = scalar_select %p793, %s26, 1
      %s795 = smul.addr %s794, 4
      %s796 = scalar_lea.vmem %s14, %s795
      // Predicated region
      $region73: #{encoder_block_forward.7} parent=71 // pred_check
        %p797 = pneg %p332
      $region74: #{encoder_block_forward.7} parent=71 // pred_check_branch
        %799 = sbr.rel (%p797) target = $region76
      $region75: #{encoder_block_forward.7} parent=71 // pred_region
        %s800 = smul.u32 2, %s26
      $region76: #{encoder_block_forward.7} parent=71 // pred_fallthru
        _
      // Predicated region
      $region77: #{encoder_block_forward.7} parent=71 // pred_check
        %p801 = pneg %p358
      $region78: #{encoder_block_forward.7} parent=71 // pred_check_branch
        %803 = sbr.rel (%p801) target = $region80
      $region79: #{encoder_block_forward.7} parent=71 // pred_region
        _
      $region80: #{encoder_block_forward.7} parent=71 // pred_fallthru
        _
    $region72: #{encoder_block_forward.7} parent=5 // pred_fallthru
      _
    %p804 = scmp.le.s32.totalorder 2, %s21
    // Predicated region
    $region81: #{encoder_block_forward.7} parent=5 // pred_check
      %p805 = pneg %p804
    $region82: #{encoder_block_forward.7} parent=5 // pred_check_branch
      %807 = sbr.rel (%p805) target = $region84
    $region83: #{encoder_block_forward.7} parent=5 // pred_region
      %s808 = ssub.s32 %s21, 2
      // Predicated region
      $region85: #{encoder_block_forward.7} parent=83 // pred_check
        %p809 = pneg %p338
      $region86: #{encoder_block_forward.7} parent=83 // pred_check_branch
        %811 = sbr.rel (%p809) target = $region88
      $region87: #{encoder_block_forward.7} parent=83 // pred_region
        %s812 = smul.u32 2, %s27
        %p813 = scmp.lt.s32.totalorder %s812, 3
        %s814 = scalar_select %p813, %s812, 3
        %s815 = smul.addr %s814, 4
        %s816 = scalar_lea.vmem %s13, %s815
      $region88: #{encoder_block_forward.7} parent=83 // pred_fallthru
        _
      // Predicated region
      $region89: #{encoder_block_forward.7} parent=83 // pred_check
        %p817 = pneg %p364
      $region90: #{encoder_block_forward.7} parent=83 // pred_check_branch
        %819 = sbr.rel (%p817) target = $region92
      $region91: #{encoder_block_forward.7} parent=83 // pred_region
        %p820 = scmp.lt.s32.totalorder %s27, 1
        %s821 = scalar_select %p820, %s27, 1
        %s822 = smul.addr %s821, 4
        %s823 = scalar_lea.vmem %s14, %s822
      $region92: #{encoder_block_forward.7} parent=83 // pred_fallthru
        _
    $region84: #{encoder_block_forward.7} parent=5 // pred_fallthru
      _
  $region6: #{encoder_block_forward.7} parent=0 // loop_footer
    %s25 = sadd.s32 1, %s21
  $region7: #{encoder_block_forward.7} parent=0 // loop_footer_branch
    %20 = sbr.rel target = $region3
  $region8: #{encoder_block_forward.7} parent=0 // loop_exit
    _

// kernel: encoder_block_forward.8
$region0: #{encoder_block_forward.8}
  #allocation0 [shape = 'u32[]', space=smem, size = 0x4, offset = 0x4, fixed_abs, tag = 'smem constant byte address 0x4 - core index']
  #allocation1 [shape = 'u32[72,128]{1,0:T(1,128)}', space=vmem, size = 0x9000, scoped, tag = 'internal scratch']
  %s0 = inlined_call_operand.vmem [shape: f32[4,512], index: 0, kind: input, shape index: {}]
  %s1 = inlined_call_operand.vmem [shape: f32[4,512], index: 1, kind: input, shape index: {}]
  %s2 = inlined_call_operand.vmem [shape: f32[4,512], index: 2, kind: input, shape index: {}]
  %s3 = inlined_call_operand.vmem [shape: f32[4,512], index: 3, kind: input, shape index: {}]
  %s4 = inlined_call_operand.vmem [shape: f32[4,1], index: 4, kind: input, shape index: {}]
  %s5 = inlined_call_operand.vmem [shape: f32[4,1], index: 5, kind: input, shape index: {}]
  %s6 = inlined_call_operand.vmem [shape: f32[4,1], index: 6, kind: input, shape index: {}]
  %s7 = inlined_call_operand.vmem [shape: f32[4,1], index: 7, kind: input, shape index: {}]
  %s8 = inlined_call_operand.vmem [shape: f32[4,1], index: 8, kind: input, shape index: {}]
  %s9 = inlined_call_operand.vmem [shape: f32[4,1], index: 9, kind: input, shape index: {}]
  %s10 = inlined_call_operand.vmem [shape: f32[4,1], index: 10, kind: input, shape index: {}]
  %s11 = inlined_call_operand.vmem [shape: f32[4,1], index: 11, kind: input, shape index: {}]
  %s12 = inlined_call_operand.vmem [shape: f32[4,4], index: 12, kind: input, shape index: {}]
  %s13 = inlined_call_operand.vmem [shape: f32[4,4], index: 13, kind: input, shape index: {}]
  %s14 = inlined_call_operand.vmem [shape: f32[4,4], index: 14, kind: input, shape index: {}]
  %s15 = inlined_call_operand.vmem [shape: f32[4,4], index: 15, kind: input, shape index: {}]
  %s16 = inlined_call_operand.vmem [shape: f32[4,1], index: 16, kind: input, shape index: {}]
  %s17 = inlined_call_operand.vmem [shape: f32[4,512], index: 17, kind: output, shape index: {0}]
  %s18 = inlined_call_operand.vmem [shape: f32[2,4,2], index: 18, kind: output, shape index: {1}]
  %19 = xla_tuple %s17, %s18
  %s20 = sld [smem:[#allocation0]]
  $region109: #{encoder_block_forward.8} parent=0
    _
  %s22 = ssub.s32 1, %s20
  %s23 = scalar_select 0, %s22, %s20
  loop: start=0, step=1, limit=4
  $region2: #{encoder_block_forward.8} parent=0 // loop_pre_header
    _
  $region3: #{encoder_block_forward.8} parent=0 // loop_header
    %s25 = sphi 0, %s29
    %p26 = scmp.ge.s32.totalorder %s25, 4
    %s35 = sphi 0, %s37
    %s38 = sphi 0, %s35
    %s39 = sphi 0, %s38
    %s55 = sphi 0, %s39
    %s61 = sphi 0, %s63
    %s64 = sphi 0, %s61
    %s65 = sphi 0, %s64
    %s81 = sphi 0, %s65
    %s87 = sphi 0, %s89
    %s90 = sphi 0, %s87
    %s91 = sphi 0, %s90
    %s107 = sphi 0, %s91
    %s113 = sphi 0, %s115
    %s116 = sphi 0, %s113
    %s117 = sphi 0, %s116
    %s133 = sphi 0, %s117
    %s137 = sphi 0, %s137
    %s139 = sphi 0, %s137
    %s140 = sphi 0, %s139
    %s154 = sphi 0, %s140
    %s158 = sphi 0, %s158
    %s160 = sphi 0, %s158
    %s161 = sphi 0, %s160
    %s175 = sphi 0, %s161
    %s179 = sphi 0, %s179
    %s181 = sphi 0, %s179
    %s182 = sphi 0, %s181
    %s196 = sphi 0, %s182
    %s200 = sphi 0, %s200
    %s202 = sphi 0, %s200
    %s203 = sphi 0, %s202
    %s217 = sphi 0, %s203
    %s221 = sphi 0, %s221
    %s223 = sphi 0, %s221
    %s224 = sphi 0, %s223
    %s238 = sphi 0, %s224
    %s242 = sphi 0, %s242
    %s244 = sphi 0, %s242
    %s245 = sphi 0, %s244
    %s259 = sphi 0, %s245
    %s263 = sphi 0, %s263
    %s265 = sphi 0, %s263
    %s266 = sphi 0, %s265
    %s280 = sphi 0, %s266
    %s284 = sphi 0, %s284
    %s286 = sphi 0, %s284
    %s287 = sphi 0, %s286
    %s301 = sphi 0, %s287
    %s305 = sphi 0, %s305
    %s307 = sphi 0, %s305
    %s308 = sphi 0, %s307
    %s322 = sphi 0, %s308
    %s326 = sphi 0, %s326
    %s328 = sphi 0, %s326
    %s329 = sphi 0, %s328
    %s343 = sphi 0, %s329
    %s347 = sphi 0, %s347
    %s349 = sphi 0, %s347
    %s350 = sphi 0, %s349
    %s364 = sphi 0, %s350
    %s368 = sphi 0, %s368
    %s370 = sphi 0, %s368
    %s371 = sphi 0, %s370
    %s385 = sphi 0, %s371
    %s389 = sphi 0, %s389
    %s391 = sphi 0, %s389
    %s392 = sphi 0, %s391
    %s406 = sphi 0, %s392
    %s412 = sphi 0, %s414
    %s415 = sphi 0, %s412
    %s416 = sphi 0, %s415
    %s432 = sphi 0, %s416
    %s438 = sphi 0, %s440
    %s441 = sphi 0, %s438
    %s442 = sphi 0, %s441
    %s458 = sphi 0, %s442
  $region4: #{encoder_block_forward.8} parent=0 // loop_header_branch
    %28 = sbr.rel (%p26) target = $region8
  $region5: #{encoder_block_forward.8} parent=0 // loop_body
    %s30 = ssub.s32 %s25, 1
    %s31 = ssub.s32 %s25, 2
    %s32 = sadd.s32 %s25, 1
    %s33 = ssub.s32 %s25, %s32
    %p34 = scmp.eq.s32.totalorder %s33, 0
    %s36 = sadd.s32 %s35, 1
    %s37 = scalar_select %p34, %s35, %s36
    %p40 = pneg %p34
    %p41 = scmp.eq.s32.totalorder %s25, 1
    %p42 = por %p40, %p41
    %p43 = scmp.ne.s32.totalorder %s35, %s38
    %p44 = scmp.eq.s32.totalorder %s25, 0
    %p45 = por %p43, %p44
    %p46 = scmp.ne.s32.totalorder %s35, %s38
    %p47 = scmp.eq.s32.totalorder %s30, 1
    %p48 = por %p46, %p47
    %p49 = scmp.ne.s32.totalorder %s38, %s39
    %p50 = scmp.eq.s32.totalorder %s30, 0
    %p51 = por %p49, %p50
    %p52 = scmp.ne.s32.totalorder %s38, %s39
    %p53 = scmp.eq.s32.totalorder %s31, 1
    %p54 = por %p52, %p53
    %p56 = scmp.ne.s32.totalorder %s39, %s55
    %p57 = scmp.eq.s32.totalorder %s31, 0
    %p58 = por %p56, %p57
    %s59 = ssub.s32 %s25, %s32
    %p60 = scmp.eq.s32.totalorder %s59, 0
    %s62 = sadd.s32 %s61, 1
    %s63 = scalar_select %p60, %s61, %s62
    %p66 = pneg %p60
    %p67 = scmp.eq.s32.totalorder %s25, 1
    %p68 = por %p66, %p67
    %p69 = scmp.ne.s32.totalorder %s61, %s64
    %p70 = scmp.eq.s32.totalorder %s25, 0
    %p71 = por %p69, %p70
    %p72 = scmp.ne.s32.totalorder %s61, %s64
    %p73 = scmp.eq.s32.totalorder %s30, 1
    %p74 = por %p72, %p73
    %p75 = scmp.ne.s32.totalorder %s64, %s65
    %p76 = scmp.eq.s32.totalorder %s30, 0
    %p77 = por %p75, %p76
    %p78 = scmp.ne.s32.totalorder %s64, %s65
    %p79 = scmp.eq.s32.totalorder %s31, 1
    %p80 = por %p78, %p79
    %p82 = scmp.ne.s32.totalorder %s65, %s81
    %p83 = scmp.eq.s32.totalorder %s31, 0
    %p84 = por %p82, %p83
    %s85 = ssub.s32 %s25, %s32
    %p86 = scmp.eq.s32.totalorder %s85, 0
    %s88 = sadd.s32 %s87, 1
    %s89 = scalar_select %p86, %s87, %s88
    %p92 = pneg %p86
    %p93 = scmp.eq.s32.totalorder %s25, 1
    %p94 = por %p92, %p93
    %p95 = scmp.ne.s32.totalorder %s87, %s90
    %p96 = scmp.eq.s32.totalorder %s25, 0
    %p97 = por %p95, %p96
    %p98 = scmp.ne.s32.totalorder %s87, %s90
    %p99 = scmp.eq.s32.totalorder %s30, 1
    %p100 = por %p98, %p99
    %p101 = scmp.ne.s32.totalorder %s90, %s91
    %p102 = scmp.eq.s32.totalorder %s30, 0
    %p103 = por %p101, %p102
    %p104 = scmp.ne.s32.totalorder %s90, %s91
    %p105 = scmp.eq.s32.totalorder %s31, 1
    %p106 = por %p104, %p105
    %p108 = scmp.ne.s32.totalorder %s91, %s107
    %p109 = scmp.eq.s32.totalorder %s31, 0
    %p110 = por %p108, %p109
    %s111 = ssub.s32 %s25, %s32
    %p112 = scmp.eq.s32.totalorder %s111, 0
    %s114 = sadd.s32 %s113, 1
    %s115 = scalar_select %p112, %s113, %s114
    %p118 = pneg %p112
    %p119 = scmp.eq.s32.totalorder %s25, 1
    %p120 = por %p118, %p119
    %p121 = scmp.ne.s32.totalorder %s113, %s116
    %p122 = scmp.eq.s32.totalorder %s25, 0
    %p123 = por %p121, %p122
    %p124 = scmp.ne.s32.totalorder %s113, %s116
    %p125 = scmp.eq.s32.totalorder %s30, 1
    %p126 = por %p124, %p125
    %p127 = scmp.ne.s32.totalorder %s116, %s117
    %p128 = scmp.eq.s32.totalorder %s30, 0
    %p129 = por %p127, %p128
    %p130 = scmp.ne.s32.totalorder %s116, %s117
    %p131 = scmp.eq.s32.totalorder %s31, 1
    %p132 = por %p130, %p131
    %p134 = scmp.ne.s32.totalorder %s117, %s133
    %p135 = scmp.eq.s32.totalorder %s31, 0
    %p136 = por %p134, %p135
    %s138 = sadd.s32 %s137, 1
    %p141 = scmp.eq.s32.totalorder %s25, 1
    %p142 = scmp.ne.s32.totalorder %s137, %s139
    %p143 = scmp.eq.s32.totalorder %s25, 0
    %p144 = por %p142, %p143
    %p145 = scmp.ne.s32.totalorder %s137, %s139
    %p146 = scmp.eq.s32.totalorder %s30, 1
    %p147 = por %p145, %p146
    %p148 = scmp.ne.s32.totalorder %s139, %s140
    %p149 = scmp.eq.s32.totalorder %s30, 0
    %p150 = por %p148, %p149
    %p151 = scmp.ne.s32.totalorder %s139, %s140
    %p152 = scmp.eq.s32.totalorder %s31, 1
    %p153 = por %p151, %p152
    %p155 = scmp.ne.s32.totalorder %s140, %s154
    %p156 = scmp.eq.s32.totalorder %s31, 0
    %p157 = por %p155, %p156
    %s159 = sadd.s32 %s158, 1
    %p162 = scmp.eq.s32.totalorder %s25, 1
    %p163 = scmp.ne.s32.totalorder %s158, %s160
    %p164 = scmp.eq.s32.totalorder %s25, 0
    %p165 = por %p163, %p164
    %p166 = scmp.ne.s32.totalorder %s158, %s160
    %p167 = scmp.eq.s32.totalorder %s30, 1
    %p168 = por %p166, %p167
    %p169 = scmp.ne.s32.totalorder %s160, %s161
    %p170 = scmp.eq.s32.totalorder %s30, 0
    %p171 = por %p169, %p170
    %p172 = scmp.ne.s32.totalorder %s160, %s161
    %p173 = scmp.eq.s32.totalorder %s31, 1
    %p174 = por %p172, %p173
    %p176 = scmp.ne.s32.totalorder %s161, %s175
    %p177 = scmp.eq.s32.totalorder %s31, 0
    %p178 = por %p176, %p177
    %s180 = sadd.s32 %s179, 1
    %p183 = scmp.eq.s32.totalorder %s25, 1
    %p184 = scmp.ne.s32.totalorder %s179, %s181
    %p185 = scmp.eq.s32.totalorder %s25, 0
    %p186 = por %p184, %p185
    %p187 = scmp.ne.s32.totalorder %s179, %s181
    %p188 = scmp.eq.s32.totalorder %s30, 1
    %p189 = por %p187, %p188
    %p190 = scmp.ne.s32.totalorder %s181, %s182
    %p191 = scmp.eq.s32.totalorder %s30, 0
    %p192 = por %p190, %p191
    %p193 = scmp.ne.s32.totalorder %s181, %s182
    %p194 = scmp.eq.s32.totalorder %s31, 1
    %p195 = por %p193, %p194
    %p197 = scmp.ne.s32.totalorder %s182, %s196
    %p198 = scmp.eq.s32.totalorder %s31, 0
    %p199 = por %p197, %p198
    %s201 = sadd.s32 %s200, 1
    %p204 = scmp.eq.s32.totalorder %s25, 1
    %p205 = scmp.ne.s32.totalorder %s200, %s202
    %p206 = scmp.eq.s32.totalorder %s25, 0
    %p207 = por %p205, %p206
    %p208 = scmp.ne.s32.totalorder %s200, %s202
    %p209 = scmp.eq.s32.totalorder %s30, 1
    %p210 = por %p208, %p209
    %p211 = scmp.ne.s32.totalorder %s202, %s203
    %p212 = scmp.eq.s32.totalorder %s30, 0
    %p213 = por %p211, %p212
    %p214 = scmp.ne.s32.totalorder %s202, %s203
    %p215 = scmp.eq.s32.totalorder %s31, 1
    %p216 = por %p214, %p215
    %p218 = scmp.ne.s32.totalorder %s203, %s217
    %p219 = scmp.eq.s32.totalorder %s31, 0
    %p220 = por %p218, %p219
    %s222 = sadd.s32 %s221, 1
    %p225 = scmp.eq.s32.totalorder %s25, 1
    %p226 = scmp.ne.s32.totalorder %s221, %s223
    %p227 = scmp.eq.s32.totalorder %s25, 0
    %p228 = por %p226, %p227
    %p229 = scmp.ne.s32.totalorder %s221, %s223
    %p230 = scmp.eq.s32.totalorder %s30, 1
    %p231 = por %p229, %p230
    %p232 = scmp.ne.s32.totalorder %s223, %s224
    %p233 = scmp.eq.s32.totalorder %s30, 0
    %p234 = por %p232, %p233
    %p235 = scmp.ne.s32.totalorder %s223, %s224
    %p236 = scmp.eq.s32.totalorder %s31, 1
    %p237 = por %p235, %p236
    %p239 = scmp.ne.s32.totalorder %s224, %s238
    %p240 = scmp.eq.s32.totalorder %s31, 0
    %p241 = por %p239, %p240
    %s243 = sadd.s32 %s242, 1
    %p246 = scmp.eq.s32.totalorder %s25, 1
    %p247 = scmp.ne.s32.totalorder %s242, %s244
    %p248 = scmp.eq.s32.totalorder %s25, 0
    %p249 = por %p247, %p248
    %p250 = scmp.ne.s32.totalorder %s242, %s244
    %p251 = scmp.eq.s32.totalorder %s30, 1
    %p252 = por %p250, %p251
    %p253 = scmp.ne.s32.totalorder %s244, %s245
    %p254 = scmp.eq.s32.totalorder %s30, 0
    %p255 = por %p253, %p254
    %p256 = scmp.ne.s32.totalorder %s244, %s245
    %p257 = scmp.eq.s32.totalorder %s31, 1
    %p258 = por %p256, %p257
    %p260 = scmp.ne.s32.totalorder %s245, %s259
    %p261 = scmp.eq.s32.totalorder %s31, 0
    %p262 = por %p260, %p261
    %s264 = sadd.s32 %s263, 1
    %p267 = scmp.eq.s32.totalorder %s25, 1
    %p268 = scmp.ne.s32.totalorder %s263, %s265
    %p269 = scmp.eq.s32.totalorder %s25, 0
    %p270 = por %p268, %p269
    %p271 = scmp.ne.s32.totalorder %s263, %s265
    %p272 = scmp.eq.s32.totalorder %s30, 1
    %p273 = por %p271, %p272
    %p274 = scmp.ne.s32.totalorder %s265, %s266
    %p275 = scmp.eq.s32.totalorder %s30, 0
    %p276 = por %p274, %p275
    %p277 = scmp.ne.s32.totalorder %s265, %s266
    %p278 = scmp.eq.s32.totalorder %s31, 1
    %p279 = por %p277, %p278
    %p281 = scmp.ne.s32.totalorder %s266, %s280
    %p282 = scmp.eq.s32.totalorder %s31, 0
    %p283 = por %p281, %p282
    %s285 = sadd.s32 %s284, 1
    %p288 = scmp.eq.s32.totalorder %s25, 1
    %p289 = scmp.ne.s32.totalorder %s284, %s286
    %p290 = scmp.eq.s32.totalorder %s25, 0
    %p291 = por %p289, %p290
    %p292 = scmp.ne.s32.totalorder %s284, %s286
    %p293 = scmp.eq.s32.totalorder %s30, 1
    %p294 = por %p292, %p293
    %p295 = scmp.ne.s32.totalorder %s286, %s287
    %p296 = scmp.eq.s32.totalorder %s30, 0
    %p297 = por %p295, %p296
    %p298 = scmp.ne.s32.totalorder %s286, %s287
    %p299 = scmp.eq.s32.totalorder %s31, 1
    %p300 = por %p298, %p299
    %p302 = scmp.ne.s32.totalorder %s287, %s301
    %p303 = scmp.eq.s32.totalorder %s31, 0
    %p304 = por %p302, %p303
    %s306 = sadd.s32 %s305, 1
    %p309 = scmp.eq.s32.totalorder %s25, 1
    %p310 = scmp.ne.s32.totalorder %s305, %s307
    %p311 = scmp.eq.s32.totalorder %s25, 0
    %p312 = por %p310, %p311
    %p313 = scmp.ne.s32.totalorder %s305, %s307
    %p314 = scmp.eq.s32.totalorder %s30, 1
    %p315 = por %p313, %p314
    %p316 = scmp.ne.s32.totalorder %s307, %s308
    %p317 = scmp.eq.s32.totalorder %s30, 0
    %p318 = por %p316, %p317
    %p319 = scmp.ne.s32.totalorder %s307, %s308
    %p320 = scmp.eq.s32.totalorder %s31, 1
    %p321 = por %p319, %p320
    %p323 = scmp.ne.s32.totalorder %s308, %s322
    %p324 = scmp.eq.s32.totalorder %s31, 0
    %p325 = por %p323, %p324
    %s327 = sadd.s32 %s326, 1
    %p330 = scmp.eq.s32.totalorder %s25, 1
    %p331 = scmp.ne.s32.totalorder %s326, %s328
    %p332 = scmp.eq.s32.totalorder %s25, 0
    %p333 = por %p331, %p332
    %p334 = scmp.ne.s32.totalorder %s326, %s328
    %p335 = scmp.eq.s32.totalorder %s30, 1
    %p336 = por %p334, %p335
    %p337 = scmp.ne.s32.totalorder %s328, %s329
    %p338 = scmp.eq.s32.totalorder %s30, 0
    %p339 = por %p337, %p338
    %p340 = scmp.ne.s32.totalorder %s328, %s329
    %p341 = scmp.eq.s32.totalorder %s31, 1
    %p342 = por %p340, %p341
    %p344 = scmp.ne.s32.totalorder %s329, %s343
    %p345 = scmp.eq.s32.totalorder %s31, 0
    %p346 = por %p344, %p345
    %s348 = sadd.s32 %s347, 1
    %p351 = scmp.eq.s32.totalorder %s25, 1
    %p352 = scmp.ne.s32.totalorder %s347, %s349
    %p353 = scmp.eq.s32.totalorder %s25, 0
    %p354 = por %p352, %p353
    %p355 = scmp.ne.s32.totalorder %s347, %s349
    %p356 = scmp.eq.s32.totalorder %s30, 1
    %p357 = por %p355, %p356
    %p358 = scmp.ne.s32.totalorder %s349, %s350
    %p359 = scmp.eq.s32.totalorder %s30, 0
    %p360 = por %p358, %p359
    %p361 = scmp.ne.s32.totalorder %s349, %s350
    %p362 = scmp.eq.s32.totalorder %s31, 1
    %p363 = por %p361, %p362
    %p365 = scmp.ne.s32.totalorder %s350, %s364
    %p366 = scmp.eq.s32.totalorder %s31, 0
    %p367 = por %p365, %p366
    %s369 = sadd.s32 %s368, 1
    %p372 = scmp.eq.s32.totalorder %s25, 1
    %p373 = scmp.ne.s32.totalorder %s368, %s370
    %p374 = scmp.eq.s32.totalorder %s25, 0
    %p375 = por %p373, %p374
    %p376 = scmp.ne.s32.totalorder %s368, %s370
    %p377 = scmp.eq.s32.totalorder %s30, 1
    %p378 = por %p376, %p377
    %p379 = scmp.ne.s32.totalorder %s370, %s371
    %p380 = scmp.eq.s32.totalorder %s30, 0
    %p381 = por %p379, %p380
    %p382 = scmp.ne.s32.totalorder %s370, %s371
    %p383 = scmp.eq.s32.totalorder %s31, 1
    %p384 = por %p382, %p383
    %p386 = scmp.ne.s32.totalorder %s371, %s385
    %p387 = scmp.eq.s32.totalorder %s31, 0
    %p388 = por %p386, %p387
    %s390 = sadd.s32 %s389, 1
    %p393 = scmp.eq.s32.totalorder %s25, 1
    %p394 = scmp.ne.s32.totalorder %s389, %s391
    %p395 = scmp.eq.s32.totalorder %s25, 0
    %p396 = por %p394, %p395
    %p397 = scmp.ne.s32.totalorder %s389, %s391
    %p398 = scmp.eq.s32.totalorder %s30, 1
    %p399 = por %p397, %p398
    %p400 = scmp.ne.s32.totalorder %s391, %s392
    %p401 = scmp.eq.s32.totalorder %s30, 0
    %p402 = por %p400, %p401
    %p403 = scmp.ne.s32.totalorder %s391, %s392
    %p404 = scmp.eq.s32.totalorder %s31, 1
    %p405 = por %p403, %p404
    %p407 = scmp.ne.s32.totalorder %s392, %s406
    %p408 = scmp.eq.s32.totalorder %s31, 0
    %p409 = por %p407, %p408
    %s410 = ssub.s32 %s25, %s32
    %p411 = scmp.eq.s32.totalorder %s410, 0
    %s413 = sadd.s32 %s412, 1
    %s414 = scalar_select %p411, %s412, %s413
    %p417 = pneg %p411
    %p418 = scmp.eq.s32.totalorder %s25, 1
    %p419 = por %p417, %p418
    %p420 = scmp.ne.s32.totalorder %s412, %s415
    %p421 = scmp.eq.s32.totalorder %s25, 0
    %p422 = por %p420, %p421
    %p423 = scmp.ne.s32.totalorder %s412, %s415
    %p424 = scmp.eq.s32.totalorder %s30, 1
    %p425 = por %p423, %p424
    %p426 = scmp.ne.s32.totalorder %s415, %s416
    %p427 = scmp.eq.s32.totalorder %s30, 0
    %p428 = por %p426, %p427
    %p429 = scmp.ne.s32.totalorder %s415, %s416
    %p430 = scmp.eq.s32.totalorder %s31, 1
    %p431 = por %p429, %p430
    %p433 = scmp.ne.s32.totalorder %s416, %s432
    %p434 = scmp.eq.s32.totalorder %s31, 0
    %p435 = por %p433, %p434
    %s436 = ssub.s32 %s25, %s32
    %p437 = scmp.eq.s32.totalorder %s436, 0
    %s439 = sadd.s32 %s438, 1
    %s440 = scalar_select %p437, %s438, %s439
    %p443 = pneg %p437
    %p444 = scmp.eq.s32.totalorder %s25, 1
    %p445 = por %p443, %p444
    %p446 = scmp.ne.s32.totalorder %s438, %s441
    %p447 = scmp.eq.s32.totalorder %s25, 0
    %p448 = por %p446, %p447
    %p449 = scmp.ne.s32.totalorder %s438, %s441
    %p450 = scmp.eq.s32.totalorder %s30, 1
    %p451 = por %p449, %p450
    %p452 = scmp.ne.s32.totalorder %s441, %s442
    %p453 = scmp.eq.s32.totalorder %s30, 0
    %p454 = por %p452, %p453
    %p455 = scmp.ne.s32.totalorder %s441, %s442
    %p456 = scmp.eq.s32.totalorder %s31, 1
    %p457 = por %p455, %p456
    %p459 = scmp.ne.s32.totalorder %s442, %s458
    %p460 = scmp.eq.s32.totalorder %s31, 0
    %p461 = por %p459, %p460
    %p462 = scmp.le.s32.totalorder 1, %s25
    %p463 = scmp.lt.s32.totalorder %s25, 3
    %p464 = pnand %p462, %p463
    %p465 = pneg %p464
    // Predicated region
    $region9: #{encoder_block_forward.8} parent=5 // pred_check
      _
    $region10: #{encoder_block_forward.8} parent=5 // pred_check_branch
      %467 = sbr.rel (%p464) target = $region12
    $region11: #{encoder_block_forward.8} parent=5 // pred_region
      %s468 = ssub.s32 %s25, 1
      // Predicated region
      $region13: #{encoder_block_forward.8} parent=11 // pred_check
        %p469 = pneg %p150
      $region14: #{encoder_block_forward.8} parent=11 // pred_check_branch
        %471 = sbr.rel (%p469) target = $region16
      $region15: #{encoder_block_forward.8} parent=11 // pred_region
        _
      $region16: #{encoder_block_forward.8} parent=11 // pred_fallthru
        _
      // Predicated region
      $region17: #{encoder_block_forward.8} parent=11 // pred_check
        %p472 = pneg %p171
      $region18: #{encoder_block_forward.8} parent=11 // pred_check_branch
        %474 = sbr.rel (%p472) target = $region20
      $region19: #{encoder_block_forward.8} parent=11 // pred_region
        _
      $region20: #{encoder_block_forward.8} parent=11 // pred_fallthru
        _
      // Predicated region
      $region21: #{encoder_block_forward.8} parent=11 // pred_check
        %p475 = pneg %p192
      $region22: #{encoder_block_forward.8} parent=11 // pred_check_branch
        %477 = sbr.rel (%p475) target = $region24
      $region23: #{encoder_block_forward.8} parent=11 // pred_region
        _
      $region24: #{encoder_block_forward.8} parent=11 // pred_fallthru
        _
      // Predicated region
      $region25: #{encoder_block_forward.8} parent=11 // pred_check
        %p478 = pneg %p213
      $region26: #{encoder_block_forward.8} parent=11 // pred_check_branch
        %480 = sbr.rel (%p478) target = $region28
      $region27: #{encoder_block_forward.8} parent=11 // pred_region
        _
      $region28: #{encoder_block_forward.8} parent=11 // pred_fallthru
        _
      // Predicated region
      $region29: #{encoder_block_forward.8} parent=11 // pred_check
        %p481 = pneg %p234
      $region30: #{encoder_block_forward.8} parent=11 // pred_check_branch
        %483 = sbr.rel (%p481) target = $region32
      $region31: #{encoder_block_forward.8} parent=11 // pred_region
        _
      $region32: #{encoder_block_forward.8} parent=11 // pred_fallthru
        _
      // Predicated region
      $region33: #{encoder_block_forward.8} parent=11 // pred_check
        %p484 = pneg %p255
      $region34: #{encoder_block_forward.8} parent=11 // pred_check_branch
        %486 = sbr.rel (%p484) target = $region36
      $region35: #{encoder_block_forward.8} parent=11 // pred_region
        _
      $region36: #{encoder_block_forward.8} parent=11 // pred_fallthru
        _
      // Predicated region
      $region37: #{encoder_block_forward.8} parent=11 // pred_check
        %p487 = pneg %p276
      $region38: #{encoder_block_forward.8} parent=11 // pred_check_branch
        %489 = sbr.rel (%p487) target = $region40
      $region39: #{encoder_block_forward.8} parent=11 // pred_region
        _
      $region40: #{encoder_block_forward.8} parent=11 // pred_fallthru
        _
      // Predicated region
      $region41: #{encoder_block_forward.8} parent=11 // pred_check
        %p490 = pneg %p297
      $region42: #{encoder_block_forward.8} parent=11 // pred_check_branch
        %492 = sbr.rel (%p490) target = $region44
      $region43: #{encoder_block_forward.8} parent=11 // pred_region
        _
      $region44: #{encoder_block_forward.8} parent=11 // pred_fallthru
        _
      // Predicated region
      $region45: #{encoder_block_forward.8} parent=11 // pred_check
        %p493 = pneg %p318
      $region46: #{encoder_block_forward.8} parent=11 // pred_check_branch
        %495 = sbr.rel (%p493) target = $region48
      $region47: #{encoder_block_forward.8} parent=11 // pred_region
        _
      $region48: #{encoder_block_forward.8} parent=11 // pred_fallthru
        _
      // Predicated region
      $region49: #{encoder_block_forward.8} parent=11 // pred_check
        %p496 = pneg %p339
      $region50: #{encoder_block_forward.8} parent=11 // pred_check_branch
        %498 = sbr.rel (%p496) target = $region52
      $region51: #{encoder_block_forward.8} parent=11 // pred_region
        _
      $region52: #{encoder_block_forward.8} parent=11 // pred_fallthru
        _
      // Predicated region
      $region53: #{encoder_block_forward.8} parent=11 // pred_check
        %p499 = pneg %p360
      $region54: #{encoder_block_forward.8} parent=11 // pred_check_branch
        %501 = sbr.rel (%p499) target = $region56
      $region55: #{encoder_block_forward.8} parent=11 // pred_region
        _
      $region56: #{encoder_block_forward.8} parent=11 // pred_fallthru
        _
      // Predicated region
      $region57: #{encoder_block_forward.8} parent=11 // pred_check
        %p502 = pneg %p381
      $region58: #{encoder_block_forward.8} parent=11 // pred_check_branch
        %504 = sbr.rel (%p502) target = $region60
      $region59: #{encoder_block_forward.8} parent=11 // pred_region
        _
      $region60: #{encoder_block_forward.8} parent=11 // pred_fallthru
        _
      // Predicated region
      $region61: #{encoder_block_forward.8} parent=11 // pred_check
        %p505 = pneg %p402
      $region62: #{encoder_block_forward.8} parent=11 // pred_check_branch
        %507 = sbr.rel (%p505) target = $region64
      $region63: #{encoder_block_forward.8} parent=11 // pred_region
        _
      $region64: #{encoder_block_forward.8} parent=11 // pred_fallthru
        _
    $region12: #{encoder_block_forward.8} parent=5 // pred_fallthru
      _
    %p508 = scmp.lt.s32.totalorder %s25, 2
    // Predicated region
    $region65: #{encoder_block_forward.8} parent=5 // pred_check
      %p509 = pneg %p508
    $region66: #{encoder_block_forward.8} parent=5 // pred_check_branch
      %511 = sbr.rel (%p509) target = $region68
    $region67: #{encoder_block_forward.8} parent=5 // pred_region
      // Predicated region
      $region69: #{encoder_block_forward.8} parent=67 // pred_check
        %p512 = pneg %p45
      $region70: #{encoder_block_forward.8} parent=67 // pred_check_branch
        %514 = sbr.rel (%p512) target = $region72
      $region71: #{encoder_block_forward.8} parent=67 // pred_region
        %s515 = smul.u32 2, %s25
        %p516 = scmp.lt.s32.totalorder %s515, 3
        %s517 = scalar_select %p516, %s515, 3
        %s518 = smul.addr %s517, 4
        %s519 = scalar_lea.vmem %s0, %s518
        %s520 = smul.u32 2, %s25
      $region72: #{encoder_block_forward.8} parent=67 // pred_fallthru
        _
      // Predicated region
      $region73: #{encoder_block_forward.8} parent=67 // pred_check
        %p521 = pneg %p71
      $region74: #{encoder_block_forward.8} parent=67 // pred_check_branch
        %523 = sbr.rel (%p521) target = $region76
      $region75: #{encoder_block_forward.8} parent=67 // pred_region
        %s524 = smul.u32 2, %s25
        %p525 = scmp.lt.s32.totalorder %s524, 3
        %s526 = scalar_select %p525, %s524, 3
        %s527 = smul.addr %s526, 4
        %s528 = scalar_lea.vmem %s1, %s527
        %s529 = smul.u32 2, %s25
      $region76: #{encoder_block_forward.8} parent=67 // pred_fallthru
        _
      // Predicated region
      $region77: #{encoder_block_forward.8} parent=67 // pred_check
        %p530 = pneg %p97
      $region78: #{encoder_block_forward.8} parent=67 // pred_check_branch
        %532 = sbr.rel (%p530) target = $region80
      $region79: #{encoder_block_forward.8} parent=67 // pred_region
        %s533 = smul.u32 2, %s25
        %p534 = scmp.lt.s32.totalorder %s533, 3
        %s535 = scalar_select %p534, %s533, 3
        %s536 = smul.addr %s535, 4
        %s537 = scalar_lea.vmem %s2, %s536
        %s538 = smul.u32 2, %s25
      $region80: #{encoder_block_forward.8} parent=67 // pred_fallthru
        _
      // Predicated region
      $region81: #{encoder_block_forward.8} parent=67 // pred_check
        %p539 = pneg %p123
      $region82: #{encoder_block_forward.8} parent=67 // pred_check_branch
        %541 = sbr.rel (%p539) target = $region84
      $region83: #{encoder_block_forward.8} parent=67 // pred_region
        %s542 = smul.u32 2, %s25
        %p543 = scmp.lt.s32.totalorder %s542, 3
        %s544 = scalar_select %p543, %s542, 3
        %s545 = smul.addr %s544, 4
        %s546 = scalar_lea.vmem %s3, %s545
        %s547 = smul.u32 2, %s25
      $region84: #{encoder_block_forward.8} parent=67 // pred_fallthru
        _
    $region68: #{encoder_block_forward.8} parent=5 // pred_fallthru
      _
    %p548 = scmp.le.s32.totalorder 1, %s25
    %p549 = scmp.lt.s32.totalorder %s25, 3
    %p550 = pnand %p548, %p549
    %p551 = pneg %p550
    // Predicated region
    $region85: #{encoder_block_forward.8} parent=5 // pred_check
      _
    $region86: #{encoder_block_forward.8} parent=5 // pred_check_branch
      %553 = sbr.rel (%p550) target = $region88
    $region87: #{encoder_block_forward.8} parent=5 // pred_region
      %s554 = ssub.s32 %s25, 1
      %s555 = smul.u32 2, %s30
      %p556 = scmp.lt.s32.totalorder %s555, 3
      %s557 = scalar_select %p556, %s555, 3
      %s558 = smul.addr %s557, 4
      %s559 = scalar_lea.vmem %s0, %s558
      %p560 = pneg %p51
      %p561 = pneg %p48
      %s562 = smul.u32 2, %s30
      %p563 = scmp.lt.s32.totalorder %s562, 3
      %s564 = scalar_select %p563, %s562, 3
      %s565 = smul.addr %s564, 4
      %s566 = scalar_lea.vmem %s1, %s565
      %p567 = pneg %p77
      %p568 = pneg %p74
      %s569 = smul.u32 2, %s30
      %p570 = scmp.lt.s32.totalorder %s569, 3
      %s571 = scalar_select %p570, %s569, 3
      %s572 = smul.addr %s571, 4
      %s573 = scalar_lea.vmem %s2, %s572
      %p574 = pneg %p103
      %p575 = pneg %p100
      %s576 = smul.u32 2, %s30
      %p577 = scmp.lt.s32.totalorder %s576, 3
      %s578 = scalar_select %p577, %s576, 3
      %s579 = smul.addr %s578, 4
      %s580 = scalar_lea.vmem %s3, %s579
      %p581 = pneg %p129
      %p582 = pneg %p126
      %p583 = pneg %p150
      %p584 = pneg %p147
      %p585 = pneg %p171
      %p586 = pneg %p168
      %p587 = pneg %p192
      %p588 = pneg %p189
      %p589 = pneg %p213
      %p590 = pneg %p210
      %p591 = pneg %p234
      %p592 = pneg %p231
      %p593 = pneg %p255
      %p594 = pneg %p252
      %p595 = pneg %p276
      %p596 = pneg %p273
      %p597 = pneg %p297
      %p598 = pneg %p294
      %p599 = pneg %p318
      %p600 = pneg %p315
      %p601 = pneg %p339
      %p602 = pneg %p336
      %p603 = pneg %p360
      %p604 = pneg %p357
      %p605 = pneg %p381
      %p606 = pneg %p378
      %p607 = pneg %p402
      %p608 = pneg %p399
      %p609 = pneg %p428
      %p610 = pneg %p425
      %s611 = smul.u32 2, %s30
      %p612 = scmp.lt.s32.totalorder %s611, 3
      %s613 = scalar_select %p612, %s611, 3
      %s614 = smul.addr %s613, 4
      %s615 = scalar_lea.vmem %s17, %s614
      %p616 = pneg %p454
      %p617 = pneg %p451
      %p618 = scmp.lt.s32.totalorder %s30, 1
      %s619 = scalar_select %p618, %s30, 1
      %s620 = smul.addr %s619, 4
      %s621 = scalar_lea.vmem %s18, %s620
      %s622 = smul.u32 2, %s30
      %p623 = scmp.lt.s32.totalorder %s622, 3
      %s624 = scalar_select %p623, %s622, 3
      %s625 = smul.addr %s624, 4
      %s626 = scalar_lea.vmem %s0, %s625
      %s627 = smul.u32 2, %s30
      %s628 = smul.u32 2, %s30
      %p629 = scmp.lt.s32.totalorder %s628, 3
      %s630 = scalar_select %p629, %s628, 3
      %s631 = smul.addr %s630, 4
      %s632 = scalar_lea.vmem %s1, %s631
      %s633 = smul.u32 2, %s30
      %s634 = smul.u32 2, %s30
      %p635 = scmp.lt.s32.totalorder %s634, 3
      %s636 = scalar_select %p635, %s634, 3
      %s637 = smul.addr %s636, 4
      %s638 = scalar_lea.vmem %s2, %s637
      %s639 = smul.u32 2, %s30
      %s640 = smul.u32 2, %s30
      %p641 = scmp.lt.s32.totalorder %s640, 3
      %s642 = scalar_select %p641, %s640, 3
      %s643 = smul.addr %s642, 4
      %s644 = scalar_lea.vmem %s3, %s643
      %s645 = smul.u32 2, %s30
      %s646 = smul.u32 2, %s30
      %p647 = scmp.lt.s32.totalorder %s646, 3
      %s648 = scalar_select %p647, %s646, 3
      %s649 = smul.addr %s648, 4
      %s650 = scalar_lea.vmem %s17, %s649
      %s651 = smul.u32 2, %s30
      %p652 = scmp.lt.s32.totalorder %s30, 1
      %s653 = scalar_select %p652, %s30, 1
      %s654 = smul.addr %s653, 4
      %s655 = scalar_lea.vmem %s18, %s654
      %v656 = vld [vmem:[%s626] sm:$0xff]
      %v657 = vld [vmem:[%s4] sm:$0xf]
      %659 = vset.pattern.permute.xlu0 0
      %660 = vperm.xlu0 %659, %v657
      %v661 = vpop.permute.xlu0 %660
      %v663 = vunpack.c.l.s4 839922192
      %v664 = vunpack.c.0.s8 %v663
      %v665 = vperm.slane %v661, %v664
      %v667 = vmul.f32 %v656, %v665
      %v668 = vld [vmem:[%s8] sm:$0xf]
      %670 = vset.pattern.permute.xlu0 0
      %671 = vperm.xlu0 %670, %v668
      %v672 = vpop.permute.xlu0 %671
      %v674 = vunpack.c.l.s4 839922192
      %v675 = vunpack.c.0.s8 %v674
      %v676 = vperm.slane %v672, %v675
      %v678 = vadd.f32 %v667, %v676
      %v679 = vmax.f32 %v678, 0.0
      %v680 = vld [vmem:[%s12] sm:$0xf]
      %v681 = vld [vmem:[%s632] sm:$0xff]
      %v682 = vld [vmem:[%s5] sm:$0xf]
      %684 = vset.pattern.permute.xlu0 0
      %685 = vperm.xlu0 %684, %v682
      %v686 = vpop.permute.xlu0 %685
      %v688 = vunpack.c.l.s4 839922192
      %v689 = vunpack.c.0.s8 %v688
      %v690 = vperm.slane %v686, %v689
      %v692 = vmul.f32 %v681, %v690
      %v693 = vld [vmem:[%s9] sm:$0xf]
      %695 = vset.pattern.permute.xlu0 0
      %696 = vperm.xlu0 %695, %v693
      %v697 = vpop.permute.xlu0 %696
      %v699 = vunpack.c.l.s4 839922192
      %v700 = vunpack.c.0.s8 %v699
      %v701 = vperm.slane %v697, %v700
      %v703 = vadd.f32 %v692, %v701
      %v704 = vmax.f32 %v703, 0.0
      %v705 = vld [vmem:[%s13] sm:$0xf]
      %707 = vst [vmem:[#allocation1] ss:$2 sm:$0xff] %v704
      %v708 = vld.sshfl [vmem:[#allocation1] sm:$0xff pattern:$0x75316420]
      %v709 = vld.sshfl [vmem:[#allocation1 + $0x8] sm:$0xff pattern:$0x75316420]
      %vm710 = vcmask 31744
      %v712 = vsel %vm710, %v705, 0
      %vm714 = vcmask 1043456
      %v715 = vsel %vm714, %v708, 0
      %v717 = vsel %vm714, %v709, 0
      %719 = vmatpush.msra.mxu0 0.0
      %720 = vmatpush.msra.mxu0 0.0
      %721 = vmatpush.msra.mxu0 0.0
      %722 = vmatpush.msra.mxu0 0.0
      %723 = vmatpush.msra.mxu0 0.0
      %724 = vmatpush.msra.mxu0 0.0
      %725 = vmatpush.msra.mxu0 0.0
      %726 = vmatpush.msra.mxu0 0.0
      %727 = vmatpush.msra.mxu0 0.0
      %728 = vmatpush.msra.mxu0 0.0
      %729 = vmatpush.msra.mxu0 0.0
      %730 = vmatpush.msra.mxu0 0.0
      %731 = vmatpush.msra.mxu0 0.0
      %732 = vmatpush.msra.mxu0 0.0
      %733 = vmatpush.msra.mxu0 0.0
      %734 = vmatpush.msra.mxu0 %v715
      %735 = vmatmul.f32.gmra.mxu0 %v712
      %v736 = vpop.f32.mrf.mxu0
      %v737 = vadd.f32 0.0, %v736
      %738 = vdwg.mxu0
      %739 = vmatpush.msra.mxu0 0.0
      %740 = vmatpush.msra.mxu0 0.0
      %741 = vmatpush.msra.mxu0 0.0
      %742 = vmatpush.msra.mxu0 0.0
      %743 = vmatpush.msra.mxu0 0.0
      %744 = vmatpush.msra.mxu0 0.0
      %745 = vmatpush.msra.mxu0 0.0
      %746 = vmatpush.msra.mxu0 0.0
      %747 = vmatpush.msra.mxu0 0.0
      %748 = vmatpush.msra.mxu0 0.0
      %749 = vmatpush.msra.mxu0 0.0
      %750 = vmatpush.msra.mxu0 0.0
      %751 = vmatpush.msra.mxu0 0.0
      %752 = vmatpush.msra.mxu0 0.0
      %753 = vmatpush.msra.mxu0 0.0
      %754 = vmatpush.msra.mxu0 %v717
      %755 = vmatmul.f32.gmra.mxu0 %v712
      %v756 = vpop.f32.mrf.mxu0
      %v757 = vadd.f32 0.0, %v756
      %758 = vdwg.mxu0
      %760 = vst [vmem:[#allocation1] ss:$2 sm:$0xff] %v679
      %v761 = vld.sshfl [vmem:[#allocation1] sm:$0xff pattern:$0x75316420]
      %v762 = vld.sshfl [vmem:[#allocation1 + $0x8] sm:$0xff pattern:$0x75316420]
      %v764 = vsel %vm710, %v680, 0
      %v766 = vsel %vm714, %v761, 0
      %v768 = vsel %vm714, %v762, 0
      %770 = vmatpush.msra.mxu0 0.0
      %771 = vmatpush.msra.mxu0 0.0
      %772 = vmatpush.msra.mxu0 0.0
      %773 = vmatpush.msra.mxu0 0.0
      %774 = vmatpush.msra.mxu0 0.0
      %775 = vmatpush.msra.mxu0 0.0
      %776 = vmatpush.msra.mxu0 0.0
      %777 = vmatpush.msra.mxu0 0.0
      %778 = vmatpush.msra.mxu0 0.0
      %779 = vmatpush.msra.mxu0 0.0
      %780 = vmatpush.msra.mxu0 0.0
      %781 = vmatpush.msra.mxu0 0.0
      %782 = vmatpush.msra.mxu0 0.0
      %783 = vmatpush.msra.mxu0 0.0
      %784 = vmatpush.msra.mxu0 0.0
      %785 = vmatpush.msra.mxu0 %v766
      %786 = vmatmul.f32.gmra.mxu0 %v764
      %v787 = vpop.f32.mrf.mxu0
      %v788 = vadd.f32 %v737, %v787
      %789 = vdwg.mxu0
      %790 = vmatpush.msra.mxu0 0.0
      %791 = vmatpush.msra.mxu0 0.0
      %792 = vmatpush.msra.mxu0 0.0
      %793 = vmatpush.msra.mxu0 0.0
      %794 = vmatpush.msra.mxu0 0.0
      %795 = vmatpush.msra.mxu0 0.0
      %796 = vmatpush.msra.mxu0 0.0
      %797 = vmatpush.msra.mxu0 0.0
      %798 = vmatpush.msra.mxu0 0.0
      %799 = vmatpush.msra.mxu0 0.0
      %800 = vmatpush.msra.mxu0 0.0
      %801 = vmatpush.msra.mxu0 0.0
      %802 = vmatpush.msra.mxu0 0.0
      %803 = vmatpush.msra.mxu0 0.0
      %804 = vmatpush.msra.mxu0 0.0
      %805 = vmatpush.msra.mxu0 %v768
      %806 = vmatmul.f32.gmra.mxu0 %v764
      %v807 = vpop.f32.mrf.mxu0
      %v808 = vadd.f32 %v757, %v807
      %809 = vdwg.mxu0
      %v810 = vld [vmem:[%s638] sm:$0xff]
      %v811 = vld [vmem:[%s6] sm:$0xf]
      %813 = vset.pattern.permute.xlu0 0
      %814 = vperm.xlu0 %813, %v811
      %v815 = vpop.permute.xlu0 %814
      %v817 = vunpack.c.l.s4 839922192
      %v818 = vunpack.c.0.s8 %v817
      %v819 = vperm.slane %v815, %v818
      %v821 = vmul.f32 %v810, %v819
      %v822 = vld [vmem:[%s10] sm:$0xf]
      %824 = vset.pattern.permute.xlu0 0
      %825 = vperm.xlu0 %824, %v822
      %v826 = vpop.permute.xlu0 %825
      %v828 = vunpack.c.l.s4 839922192
      %v829 = vunpack.c.0.s8 %v828
      %v830 = vperm.slane %v826, %v829
      %v832 = vadd.f32 %v821, %v830
      %v833 = vmax.f32 %v832, 0.0
      %v834 = vld [vmem:[%s14] sm:$0xf]
      %836 = vst [vmem:[#allocation1] ss:$2 sm:$0xff] %v833
      %v837 = vld.sshfl [vmem:[#allocation1] sm:$0xff pattern:$0x75316420]
      %v838 = vld.sshfl [vmem:[#allocation1 + $0x8] sm:$0xff pattern:$0x75316420]
      %v840 = vsel %vm710, %v834, 0
      %v842 = vsel %vm714, %v837, 0
      %v844 = vsel %vm714, %v838, 0
      %846 = vmatpush.msra.mxu0 0.0
      %847 = vmatpush.msra.mxu0 0.0
      %848 = vmatpush.msra.mxu0 0.0
      %849 = vmatpush.msra.mxu0 0.0
      %850 = vmatpush.msra.mxu0 0.0
      %851 = vmatpush.msra.mxu0 0.0
      %852 = vmatpush.msra.mxu0 0.0
      %853 = vmatpush.msra.mxu0 0.0
      %854 = vmatpush.msra.mxu0 0.0
      %855 = vmatpush.msra.mxu0 0.0
      %856 = vmatpush.msra.mxu0 0.0
      %857 = vmatpush.msra.mxu0 0.0
      %858 = vmatpush.msra.mxu0 0.0
      %859 = vmatpush.msra.mxu0 0.0
      %860 = vmatpush.msra.mxu0 0.0
      %861 = vmatpush.msra.mxu0 %v842
      %862 = vmatmul.f32.gmra.mxu0 %v840
      %v863 = vpop.f32.mrf.mxu0
      %v864 = vadd.f32 0.0, %v863
      %865 = vdwg.mxu0
      %866 = vmatpush.msra.mxu0 0.0
      %867 = vmatpush.msra.mxu0 0.0
      %868 = vmatpush.msra.mxu0 0.0
      %869 = vmatpush.msra.mxu0 0.0
      %870 = vmatpush.msra.mxu0 0.0
      %871 = vmatpush.msra.mxu0 0.0
      %872 = vmatpush.msra.mxu0 0.0
      %873 = vmatpush.msra.mxu0 0.0
      %874 = vmatpush.msra.mxu0 0.0
      %875 = vmatpush.msra.mxu0 0.0
      %876 = vmatpush.msra.mxu0 0.0
      %877 = vmatpush.msra.mxu0 0.0
      %878 = vmatpush.msra.mxu0 0.0
      %879 = vmatpush.msra.mxu0 0.0
      %880 = vmatpush.msra.mxu0 0.0
      %881 = vmatpush.msra.mxu0 %v844
      %882 = vmatmul.f32.gmra.mxu0 %v840
      %v883 = vpop.f32.mrf.mxu0
      %v884 = vadd.f32 0.0, %v883
      %885 = vdwg.mxu0
      %v886 = vadd.f32 %v788, %v864
      %v887 = vadd.f32 %v808, %v884
      %v888 = vld [vmem:[%s644] sm:$0xff]
      %v889 = vld [vmem:[%s7] sm:$0xf]
      %891 = vset.pattern.permute.xlu0 0
      %892 = vperm.xlu0 %891, %v889
      %v893 = vpop.permute.xlu0 %892
      %v895 = vunpack.c.l.s4 839922192
      %v896 = vunpack.c.0.s8 %v895
      %v897 = vperm.slane %v893, %v896
      %v899 = vmul.f32 %v888, %v897
      %v900 = vld [vmem:[%s11] sm:$0xf]
      %902 = vset.pattern.permute.xlu0 0
      %903 = vperm.xlu0 %902, %v900
      %v904 = vpop.permute.xlu0 %903
      %v906 = vunpack.c.l.s4 839922192
      %v907 = vunpack.c.0.s8 %v906
      %v908 = vperm.slane %v904, %v907
      %v910 = vadd.f32 %v899, %v908
      %v911 = vmax.f32 %v910, 0.0
      %v912 = vld [vmem:[%s15] sm:$0xf]
      %914 = vst [vmem:[#allocation1] ss:$2 sm:$0xff] %v911
      %v915 = vld.sshfl [vmem:[#allocation1] sm:$0xff pattern:$0x75316420]
      %v916 = vld.sshfl [vmem:[#allocation1 + $0x8] sm:$0xff pattern:$0x75316420]
      %v918 = vsel %vm710, %v912, 0
      %v920 = vsel %vm714, %v915, 0
      %v922 = vsel %vm714, %v916, 0
      %924 = vmatpush.msra.mxu0 0.0
      %925 = vmatpush.msra.mxu0 0.0
      %926 = vmatpush.msra.mxu0 0.0
      %927 = vmatpush.msra.mxu0 0.0
      %928 = vmatpush.msra.mxu0 0.0
      %929 = vmatpush.msra.mxu0 0.0
      %930 = vmatpush.msra.mxu0 0.0
      %931 = vmatpush.msra.mxu0 0.0
      %932 = vmatpush.msra.mxu0 0.0
      %933 = vmatpush.msra.mxu0 0.0
      %934 = vmatpush.msra.mxu0 0.0
      %935 = vmatpush.msra.mxu0 0.0
      %936 = vmatpush.msra.mxu0 0.0
      %937 = vmatpush.msra.mxu0 0.0
      %938 = vmatpush.msra.mxu0 0.0
      %939 = vmatpush.msra.mxu0 %v920
      %940 = vmatmul.f32.gmra.mxu0 %v918
      %v941 = vpop.f32.mrf.mxu0
      %v942 = vadd.f32 0.0, %v941
      %943 = vdwg.mxu0
      %944 = vmatpush.msra.mxu0 0.0
      %945 = vmatpush.msra.mxu0 0.0
      %946 = vmatpush.msra.mxu0 0.0
      %947 = vmatpush.msra.mxu0 0.0
      %948 = vmatpush.msra.mxu0 0.0
      %949 = vmatpush.msra.mxu0 0.0
      %950 = vmatpush.msra.mxu0 0.0
      %951 = vmatpush.msra.mxu0 0.0
      %952 = vmatpush.msra.mxu0 0.0
      %953 = vmatpush.msra.mxu0 0.0
      %954 = vmatpush.msra.mxu0 0.0
      %955 = vmatpush.msra.mxu0 0.0
      %956 = vmatpush.msra.mxu0 0.0
      %957 = vmatpush.msra.mxu0 0.0
      %958 = vmatpush.msra.mxu0 0.0
      %959 = vmatpush.msra.mxu0 %v922
      %960 = vmatmul.f32.gmra.mxu0 %v918
      %v961 = vpop.f32.mrf.mxu0
      %v962 = vadd.f32 0.0, %v961
      %963 = vdwg.mxu0
      %v964 = vadd.f32 %v886, %v942
      %v965 = vadd.f32 %v887, %v962
      %v966 = vld [vmem:[%s16] sm:$0xf]
      %968 = vset.pattern.permute.xlu0 0
      %969 = vperm.xlu0 %968, %v966
      %v970 = vpop.permute.xlu0 %969
      %v972 = vadd.f32 %v964, %v970
      %v973 = vadd.f32 %v965, %v970
      %v976 = vrot.slane %v973, 4
      %v977 = vsel %vm714, %v972, %v976
      %979 = vst [vmem:[%s650] sm:$0xff] %v977
      %v980 = vsel %vm714, %v972, 0.0
      %v981 = vsel %vm714, %v973, 0.0
      %v982 = vadd.f32 %v980, %v981
      %983 = vadd.xlane.f32.xlu0 %v982
      %v984 = vpop.xlane.xlu0 %983
      %v985 = vmul.f32 %v972, %v972
      %v986 = vmul.f32 %v973, %v973
      %v987 = vsel %vm714, %v985, 0.0
      %v988 = vsel %vm714, %v986, 0.0
      %v989 = vadd.f32 %v987, %v988
      %990 = vadd.xlane.f32.xlu0 %v989
      %v991 = vpop.xlane.xlu0 %990
      %vm992 = vcmask 7168
      %v993 = vsel %vm992, %v984, %v991
      %vm994 = vcmask 11264
      %995 = vst.msk [vmem:[%s655] sm:$0xf] %vm994, %v993
      %s996 = smul.u32 2, %s30
      %p997 = scmp.lt.s32.totalorder %s996, 3
      %s998 = scalar_select %p997, %s996, 3
      %s999 = smul.addr %s998, 4
      %s1000 = scalar_lea.vmem %s17, %s999
      %p1001 = scmp.lt.s32.totalorder %s30, 1
      %s1002 = scalar_select %p1001, %s30, 1
      %s1003 = smul.addr %s1002, 4
      %s1004 = scalar_lea.vmem %s18, %s1003
      // Predicated region
      $region89: #{encoder_block_forward.8} parent=87 // pred_check
        %p1005 = pneg %p425
      $region90: #{encoder_block_forward.8} parent=87 // pred_check_branch
        %1007 = sbr.rel (%p1005) target = $region92
      $region91: #{encoder_block_forward.8} parent=87 // pred_region
        %s1008 = smul.u32 2, %s30
      $region92: #{encoder_block_forward.8} parent=87 // pred_fallthru
        _
      // Predicated region
      $region93: #{encoder_block_forward.8} parent=87 // pred_check
        %p1009 = pneg %p451
      $region94: #{encoder_block_forward.8} parent=87 // pred_check_branch
        %1011 = sbr.rel (%p1009) target = $region96
      $region95: #{encoder_block_forward.8} parent=87 // pred_region
        _
      $region96: #{encoder_block_forward.8} parent=87 // pred_fallthru
        _
    $region88: #{encoder_block_forward.8} parent=5 // pred_fallthru
      _
    %p1012 = scmp.le.s32.totalorder 2, %s25
    // Predicated region
    $region97: #{encoder_block_forward.8} parent=5 // pred_check
      %p1013 = pneg %p1012
    $region98: #{encoder_block_forward.8} parent=5 // pred_check_branch
      %1015 = sbr.rel (%p1013) target = $region100
    $region99: #{encoder_block_forward.8} parent=5 // pred_region
      %s1016 = ssub.s32 %s25, 2
      // Predicated region
      $region101: #{encoder_block_forward.8} parent=99 // pred_check
        %p1017 = pneg %p431
      $region102: #{encoder_block_forward.8} parent=99 // pred_check_branch
        %1019 = sbr.rel (%p1017) target = $region104
      $region103: #{encoder_block_forward.8} parent=99 // pred_region
        %s1020 = smul.u32 2, %s31
        %p1021 = scmp.lt.s32.totalorder %s1020, 3
        %s1022 = scalar_select %p1021, %s1020, 3
        %s1023 = smul.addr %s1022, 4
        %s1024 = scalar_lea.vmem %s17, %s1023
      $region104: #{encoder_block_forward.8} parent=99 // pred_fallthru
        _
      // Predicated region
      $region105: #{encoder_block_forward.8} parent=99 // pred_check
        %p1025 = pneg %p457
      $region106: #{encoder_block_forward.8} parent=99 // pred_check_branch
        %1027 = sbr.rel (%p1025) target = $region108
      $region107: #{encoder_block_forward.8} parent=99 // pred_region
        %p1028 = scmp.lt.s32.totalorder %s31, 1
        %s1029 = scalar_select %p1028, %s31, 1
        %s1030 = smul.addr %s1029, 4
        %s1031 = scalar_lea.vmem %s18, %s1030
      $region108: #{encoder_block_forward.8} parent=99 // pred_fallthru
        _
    $region100: #{encoder_block_forward.8} parent=5 // pred_fallthru
      _
  $region6: #{encoder_block_forward.8} parent=0 // loop_footer
    %s29 = sadd.s32 1, %s25
  $region7: #{encoder_block_forward.8} parent=0 // loop_footer_branch
    %24 = sbr.rel target = $region3
  $region8: #{encoder_block_forward.8} parent=0 // loop_exit
    _

// kernel: encoder_block_forward.9
$region0: #{encoder_block_forward.9}
  #allocation0 [shape = 'u32[]', space=smem, size = 0x4, offset = 0x4, fixed_abs, tag = 'smem constant byte address 0x4 - core index']
  #allocation1 [shape = 'u32[72,128]{1,0:T(1,128)}', space=vmem, size = 0x9000, scoped, tag = 'internal scratch']
  %s0 = inlined_call_operand.vmem [shape: f32[4,512], index: 0, kind: input, shape index: {}]
  %s1 = inlined_call_operand.vmem [shape: f32[4,512], index: 1, kind: input, shape index: {}]
  %s2 = inlined_call_operand.vmem [shape: f32[4,512], index: 2, kind: input, shape index: {}]
  %s3 = inlined_call_operand.vmem [shape: f32[4,512], index: 3, kind: input, shape index: {}]
  %s4 = inlined_call_operand.vmem [shape: f32[4,512], index: 4, kind: input, shape index: {}]
  %s5 = inlined_call_operand.vmem [shape: f32[4,1], index: 5, kind: input, shape index: {}]
  %s6 = inlined_call_operand.vmem [shape: f32[4,1], index: 6, kind: input, shape index: {}]
  %s7 = inlined_call_operand.vmem [shape: f32[4,1], index: 7, kind: input, shape index: {}]
  %s8 = inlined_call_operand.vmem [shape: f32[4,1], index: 8, kind: input, shape index: {}]
  %s9 = inlined_call_operand.vmem [shape: f32[4,1], index: 9, kind: input, shape index: {}]
  %s10 = inlined_call_operand.vmem [shape: f32[4,1], index: 10, kind: input, shape index: {}]
  %s11 = inlined_call_operand.vmem [shape: f32[4,1], index: 11, kind: input, shape index: {}]
  %s12 = inlined_call_operand.vmem [shape: f32[4,1], index: 12, kind: input, shape index: {}]
  %s13 = inlined_call_operand.vmem [shape: f32[4,1], index: 13, kind: input, shape index: {}]
  %s14 = inlined_call_operand.vmem [shape: f32[4,1], index: 14, kind: input, shape index: {}]
  %s15 = inlined_call_operand.vmem [shape: f32[4,4], index: 15, kind: input, shape index: {}]
  %s16 = inlined_call_operand.vmem [shape: f32[4,4], index: 16, kind: input, shape index: {}]
  %s17 = inlined_call_operand.vmem [shape: f32[4,4], index: 17, kind: input, shape index: {}]
  %s18 = inlined_call_operand.vmem [shape: f32[4,4], index: 18, kind: input, shape index: {}]
  %s19 = inlined_call_operand.vmem [shape: f32[4,4], index: 19, kind: input, shape index: {}]
  %s20 = inlined_call_operand.vmem [shape: f32[4,1], index: 20, kind: input, shape index: {}]
  %s21 = inlined_call_operand.vmem [shape: f32[4,512], index: 21, kind: output, shape index: {}]
  %s22 = sld [smem:[#allocation0]]
  $region117: #{encoder_block_forward.9} parent=0
    _
  %s24 = ssub.s32 1, %s22
  %s25 = scalar_select 0, %s24, %s22
  loop: start=0, step=1, limit=4
  $region2: #{encoder_block_forward.9} parent=0 // loop_pre_header
    _
  $region3: #{encoder_block_forward.9} parent=0 // loop_header
    %s27 = sphi 0, %s31
    %p28 = scmp.ge.s32.totalorder %s27, 4
    %s37 = sphi 0, %s39
    %s40 = sphi 0, %s37
    %s41 = sphi 0, %s40
    %s57 = sphi 0, %s41
    %s63 = sphi 0, %s65
    %s66 = sphi 0, %s63
    %s67 = sphi 0, %s66
    %s83 = sphi 0, %s67
    %s89 = sphi 0, %s91
    %s92 = sphi 0, %s89
    %s93 = sphi 0, %s92
    %s109 = sphi 0, %s93
    %s115 = sphi 0, %s117
    %s118 = sphi 0, %s115
    %s119 = sphi 0, %s118
    %s135 = sphi 0, %s119
    %s141 = sphi 0, %s143
    %s144 = sphi 0, %s141
    %s145 = sphi 0, %s144
    %s161 = sphi 0, %s145
    %s165 = sphi 0, %s165
    %s167 = sphi 0, %s165
    %s168 = sphi 0, %s167
    %s182 = sphi 0, %s168
    %s186 = sphi 0, %s186
    %s188 = sphi 0, %s186
    %s189 = sphi 0, %s188
    %s203 = sphi 0, %s189
    %s207 = sphi 0, %s207
    %s209 = sphi 0, %s207
    %s210 = sphi 0, %s209
    %s224 = sphi 0, %s210
    %s228 = sphi 0, %s228
    %s230 = sphi 0, %s228
    %s231 = sphi 0, %s230
    %s245 = sphi 0, %s231
    %s249 = sphi 0, %s249
    %s251 = sphi 0, %s249
    %s252 = sphi 0, %s251
    %s266 = sphi 0, %s252
    %s270 = sphi 0, %s270
    %s272 = sphi 0, %s270
    %s273 = sphi 0, %s272
    %s287 = sphi 0, %s273
    %s291 = sphi 0, %s291
    %s293 = sphi 0, %s291
    %s294 = sphi 0, %s293
    %s308 = sphi 0, %s294
    %s312 = sphi 0, %s312
    %s314 = sphi 0, %s312
    %s315 = sphi 0, %s314
    %s329 = sphi 0, %s315
    %s333 = sphi 0, %s333
    %s335 = sphi 0, %s333
    %s336 = sphi 0, %s335
    %s350 = sphi 0, %s336
    %s354 = sphi 0, %s354
    %s356 = sphi 0, %s354
    %s357 = sphi 0, %s356
    %s371 = sphi 0, %s357
    %s375 = sphi 0, %s375
    %s377 = sphi 0, %s375
    %s378 = sphi 0, %s377
    %s392 = sphi 0, %s378
    %s396 = sphi 0, %s396
    %s398 = sphi 0, %s396
    %s399 = sphi 0, %s398
    %s413 = sphi 0, %s399
    %s417 = sphi 0, %s417
    %s419 = sphi 0, %s417
    %s420 = sphi 0, %s419
    %s434 = sphi 0, %s420
    %s438 = sphi 0, %s438
    %s440 = sphi 0, %s438
    %s441 = sphi 0, %s440
    %s455 = sphi 0, %s441
    %s459 = sphi 0, %s459
    %s461 = sphi 0, %s459
    %s462 = sphi 0, %s461
    %s476 = sphi 0, %s462
    %s480 = sphi 0, %s480
    %s482 = sphi 0, %s480
    %s483 = sphi 0, %s482
    %s497 = sphi 0, %s483
    %s503 = sphi 0, %s505
    %s506 = sphi 0, %s503
    %s507 = sphi 0, %s506
    %s523 = sphi 0, %s507
  $region4: #{encoder_block_forward.9} parent=0 // loop_header_branch
    %30 = sbr.rel (%p28) target = $region8
  $region5: #{encoder_block_forward.9} parent=0 // loop_body
    %s32 = ssub.s32 %s27, 1
    %s33 = ssub.s32 %s27, 2
    %s34 = sadd.s32 %s27, 1
    %s35 = ssub.s32 %s27, %s34
    %p36 = scmp.eq.s32.totalorder %s35, 0
    %s38 = sadd.s32 %s37, 1
    %s39 = scalar_select %p36, %s37, %s38
    %p42 = pneg %p36
    %p43 = scmp.eq.s32.totalorder %s27, 1
    %p44 = por %p42, %p43
    %p45 = scmp.ne.s32.totalorder %s37, %s40
    %p46 = scmp.eq.s32.totalorder %s27, 0
    %p47 = por %p45, %p46
    %p48 = scmp.ne.s32.totalorder %s37, %s40
    %p49 = scmp.eq.s32.totalorder %s32, 1
    %p50 = por %p48, %p49
    %p51 = scmp.ne.s32.totalorder %s40, %s41
    %p52 = scmp.eq.s32.totalorder %s32, 0
    %p53 = por %p51, %p52
    %p54 = scmp.ne.s32.totalorder %s40, %s41
    %p55 = scmp.eq.s32.totalorder %s33, 1
    %p56 = por %p54, %p55
    %p58 = scmp.ne.s32.totalorder %s41, %s57
    %p59 = scmp.eq.s32.totalorder %s33, 0
    %p60 = por %p58, %p59
    %s61 = ssub.s32 %s27, %s34
    %p62 = scmp.eq.s32.totalorder %s61, 0
    %s64 = sadd.s32 %s63, 1
    %s65 = scalar_select %p62, %s63, %s64
    %p68 = pneg %p62
    %p69 = scmp.eq.s32.totalorder %s27, 1
    %p70 = por %p68, %p69
    %p71 = scmp.ne.s32.totalorder %s63, %s66
    %p72 = scmp.eq.s32.totalorder %s27, 0
    %p73 = por %p71, %p72
    %p74 = scmp.ne.s32.totalorder %s63, %s66
    %p75 = scmp.eq.s32.totalorder %s32, 1
    %p76 = por %p74, %p75
    %p77 = scmp.ne.s32.totalorder %s66, %s67
    %p78 = scmp.eq.s32.totalorder %s32, 0
    %p79 = por %p77, %p78
    %p80 = scmp.ne.s32.totalorder %s66, %s67
    %p81 = scmp.eq.s32.totalorder %s33, 1
    %p82 = por %p80, %p81
    %p84 = scmp.ne.s32.totalorder %s67, %s83
    %p85 = scmp.eq.s32.totalorder %s33, 0
    %p86 = por %p84, %p85
    %s87 = ssub.s32 %s27, %s34
    %p88 = scmp.eq.s32.totalorder %s87, 0
    %s90 = sadd.s32 %s89, 1
    %s91 = scalar_select %p88, %s89, %s90
    %p94 = pneg %p88
    %p95 = scmp.eq.s32.totalorder %s27, 1
    %p96 = por %p94, %p95
    %p97 = scmp.ne.s32.totalorder %s89, %s92
    %p98 = scmp.eq.s32.totalorder %s27, 0
    %p99 = por %p97, %p98
    %p100 = scmp.ne.s32.totalorder %s89, %s92
    %p101 = scmp.eq.s32.totalorder %s32, 1
    %p102 = por %p100, %p101
    %p103 = scmp.ne.s32.totalorder %s92, %s93
    %p104 = scmp.eq.s32.totalorder %s32, 0
    %p105 = por %p103, %p104
    %p106 = scmp.ne.s32.totalorder %s92, %s93
    %p107 = scmp.eq.s32.totalorder %s33, 1
    %p108 = por %p106, %p107
    %p110 = scmp.ne.s32.totalorder %s93, %s109
    %p111 = scmp.eq.s32.totalorder %s33, 0
    %p112 = por %p110, %p111
    %s113 = ssub.s32 %s27, %s34
    %p114 = scmp.eq.s32.totalorder %s113, 0
    %s116 = sadd.s32 %s115, 1
    %s117 = scalar_select %p114, %s115, %s116
    %p120 = pneg %p114
    %p121 = scmp.eq.s32.totalorder %s27, 1
    %p122 = por %p120, %p121
    %p123 = scmp.ne.s32.totalorder %s115, %s118
    %p124 = scmp.eq.s32.totalorder %s27, 0
    %p125 = por %p123, %p124
    %p126 = scmp.ne.s32.totalorder %s115, %s118
    %p127 = scmp.eq.s32.totalorder %s32, 1
    %p128 = por %p126, %p127
    %p129 = scmp.ne.s32.totalorder %s118, %s119
    %p130 = scmp.eq.s32.totalorder %s32, 0
    %p131 = por %p129, %p130
    %p132 = scmp.ne.s32.totalorder %s118, %s119
    %p133 = scmp.eq.s32.totalorder %s33, 1
    %p134 = por %p132, %p133
    %p136 = scmp.ne.s32.totalorder %s119, %s135
    %p137 = scmp.eq.s32.totalorder %s33, 0
    %p138 = por %p136, %p137
    %s139 = ssub.s32 %s27, %s34
    %p140 = scmp.eq.s32.totalorder %s139, 0
    %s142 = sadd.s32 %s141, 1
    %s143 = scalar_select %p140, %s141, %s142
    %p146 = pneg %p140
    %p147 = scmp.eq.s32.totalorder %s27, 1
    %p148 = por %p146, %p147
    %p149 = scmp.ne.s32.totalorder %s141, %s144
    %p150 = scmp.eq.s32.totalorder %s27, 0
    %p151 = por %p149, %p150
    %p152 = scmp.ne.s32.totalorder %s141, %s144
    %p153 = scmp.eq.s32.totalorder %s32, 1
    %p154 = por %p152, %p153
    %p155 = scmp.ne.s32.totalorder %s144, %s145
    %p156 = scmp.eq.s32.totalorder %s32, 0
    %p157 = por %p155, %p156
    %p158 = scmp.ne.s32.totalorder %s144, %s145
    %p159 = scmp.eq.s32.totalorder %s33, 1
    %p160 = por %p158, %p159
    %p162 = scmp.ne.s32.totalorder %s145, %s161
    %p163 = scmp.eq.s32.totalorder %s33, 0
    %p164 = por %p162, %p163
    %s166 = sadd.s32 %s165, 1
    %p169 = scmp.eq.s32.totalorder %s27, 1
    %p170 = scmp.ne.s32.totalorder %s165, %s167
    %p171 = scmp.eq.s32.totalorder %s27, 0
    %p172 = por %p170, %p171
    %p173 = scmp.ne.s32.totalorder %s165, %s167
    %p174 = scmp.eq.s32.totalorder %s32, 1
    %p175 = por %p173, %p174
    %p176 = scmp.ne.s32.totalorder %s167, %s168
    %p177 = scmp.eq.s32.totalorder %s32, 0
    %p178 = por %p176, %p177
    %p179 = scmp.ne.s32.totalorder %s167, %s168
    %p180 = scmp.eq.s32.totalorder %s33, 1
    %p181 = por %p179, %p180
    %p183 = scmp.ne.s32.totalorder %s168, %s182
    %p184 = scmp.eq.s32.totalorder %s33, 0
    %p185 = por %p183, %p184
    %s187 = sadd.s32 %s186, 1
    %p190 = scmp.eq.s32.totalorder %s27, 1
    %p191 = scmp.ne.s32.totalorder %s186, %s188
    %p192 = scmp.eq.s32.totalorder %s27, 0
    %p193 = por %p191, %p192
    %p194 = scmp.ne.s32.totalorder %s186, %s188
    %p195 = scmp.eq.s32.totalorder %s32, 1
    %p196 = por %p194, %p195
    %p197 = scmp.ne.s32.totalorder %s188, %s189
    %p198 = scmp.eq.s32.totalorder %s32, 0
    %p199 = por %p197, %p198
    %p200 = scmp.ne.s32.totalorder %s188, %s189
    %p201 = scmp.eq.s32.totalorder %s33, 1
    %p202 = por %p200, %p201
    %p204 = scmp.ne.s32.totalorder %s189, %s203
    %p205 = scmp.eq.s32.totalorder %s33, 0
    %p206 = por %p204, %p205
    %s208 = sadd.s32 %s207, 1
    %p211 = scmp.eq.s32.totalorder %s27, 1
    %p212 = scmp.ne.s32.totalorder %s207, %s209
    %p213 = scmp.eq.s32.totalorder %s27, 0
    %p214 = por %p212, %p213
    %p215 = scmp.ne.s32.totalorder %s207, %s209
    %p216 = scmp.eq.s32.totalorder %s32, 1
    %p217 = por %p215, %p216
    %p218 = scmp.ne.s32.totalorder %s209, %s210
    %p219 = scmp.eq.s32.totalorder %s32, 0
    %p220 = por %p218, %p219
    %p221 = scmp.ne.s32.totalorder %s209, %s210
    %p222 = scmp.eq.s32.totalorder %s33, 1
    %p223 = por %p221, %p222
    %p225 = scmp.ne.s32.totalorder %s210, %s224
    %p226 = scmp.eq.s32.totalorder %s33, 0
    %p227 = por %p225, %p226
    %s229 = sadd.s32 %s228, 1
    %p232 = scmp.eq.s32.totalorder %s27, 1
    %p233 = scmp.ne.s32.totalorder %s228, %s230
    %p234 = scmp.eq.s32.totalorder %s27, 0
    %p235 = por %p233, %p234
    %p236 = scmp.ne.s32.totalorder %s228, %s230
    %p237 = scmp.eq.s32.totalorder %s32, 1
    %p238 = por %p236, %p237
    %p239 = scmp.ne.s32.totalorder %s230, %s231
    %p240 = scmp.eq.s32.totalorder %s32, 0
    %p241 = por %p239, %p240
    %p242 = scmp.ne.s32.totalorder %s230, %s231
    %p243 = scmp.eq.s32.totalorder %s33, 1
    %p244 = por %p242, %p243
    %p246 = scmp.ne.s32.totalorder %s231, %s245
    %p247 = scmp.eq.s32.totalorder %s33, 0
    %p248 = por %p246, %p247
    %s250 = sadd.s32 %s249, 1
    %p253 = scmp.eq.s32.totalorder %s27, 1
    %p254 = scmp.ne.s32.totalorder %s249, %s251
    %p255 = scmp.eq.s32.totalorder %s27, 0
    %p256 = por %p254, %p255
    %p257 = scmp.ne.s32.totalorder %s249, %s251
    %p258 = scmp.eq.s32.totalorder %s32, 1
    %p259 = por %p257, %p258
    %p260 = scmp.ne.s32.totalorder %s251, %s252
    %p261 = scmp.eq.s32.totalorder %s32, 0
    %p262 = por %p260, %p261
    %p263 = scmp.ne.s32.totalorder %s251, %s252
    %p264 = scmp.eq.s32.totalorder %s33, 1
    %p265 = por %p263, %p264
    %p267 = scmp.ne.s32.totalorder %s252, %s266
    %p268 = scmp.eq.s32.totalorder %s33, 0
    %p269 = por %p267, %p268
    %s271 = sadd.s32 %s270, 1
    %p274 = scmp.eq.s32.totalorder %s27, 1
    %p275 = scmp.ne.s32.totalorder %s270, %s272
    %p276 = scmp.eq.s32.totalorder %s27, 0
    %p277 = por %p275, %p276
    %p278 = scmp.ne.s32.totalorder %s270, %s272
    %p279 = scmp.eq.s32.totalorder %s32, 1
    %p280 = por %p278, %p279
    %p281 = scmp.ne.s32.totalorder %s272, %s273
    %p282 = scmp.eq.s32.totalorder %s32, 0
    %p283 = por %p281, %p282
    %p284 = scmp.ne.s32.totalorder %s272, %s273
    %p285 = scmp.eq.s32.totalorder %s33, 1
    %p286 = por %p284, %p285
    %p288 = scmp.ne.s32.totalorder %s273, %s287
    %p289 = scmp.eq.s32.totalorder %s33, 0
    %p290 = por %p288, %p289
    %s292 = sadd.s32 %s291, 1
    %p295 = scmp.eq.s32.totalorder %s27, 1
    %p296 = scmp.ne.s32.totalorder %s291, %s293
    %p297 = scmp.eq.s32.totalorder %s27, 0
    %p298 = por %p296, %p297
    %p299 = scmp.ne.s32.totalorder %s291, %s293
    %p300 = scmp.eq.s32.totalorder %s32, 1
    %p301 = por %p299, %p300
    %p302 = scmp.ne.s32.totalorder %s293, %s294
    %p303 = scmp.eq.s32.totalorder %s32, 0
    %p304 = por %p302, %p303
    %p305 = scmp.ne.s32.totalorder %s293, %s294
    %p306 = scmp.eq.s32.totalorder %s33, 1
    %p307 = por %p305, %p306
    %p309 = scmp.ne.s32.totalorder %s294, %s308
    %p310 = scmp.eq.s32.totalorder %s33, 0
    %p311 = por %p309, %p310
    %s313 = sadd.s32 %s312, 1
    %p316 = scmp.eq.s32.totalorder %s27, 1
    %p317 = scmp.ne.s32.totalorder %s312, %s314
    %p318 = scmp.eq.s32.totalorder %s27, 0
    %p319 = por %p317, %p318
    %p320 = scmp.ne.s32.totalorder %s312, %s314
    %p321 = scmp.eq.s32.totalorder %s32, 1
    %p322 = por %p320, %p321
    %p323 = scmp.ne.s32.totalorder %s314, %s315
    %p324 = scmp.eq.s32.totalorder %s32, 0
    %p325 = por %p323, %p324
    %p326 = scmp.ne.s32.totalorder %s314, %s315
    %p327 = scmp.eq.s32.totalorder %s33, 1
    %p328 = por %p326, %p327
    %p330 = scmp.ne.s32.totalorder %s315, %s329
    %p331 = scmp.eq.s32.totalorder %s33, 0
    %p332 = por %p330, %p331
    %s334 = sadd.s32 %s333, 1
    %p337 = scmp.eq.s32.totalorder %s27, 1
    %p338 = scmp.ne.s32.totalorder %s333, %s335
    %p339 = scmp.eq.s32.totalorder %s27, 0
    %p340 = por %p338, %p339
    %p341 = scmp.ne.s32.totalorder %s333, %s335
    %p342 = scmp.eq.s32.totalorder %s32, 1
    %p343 = por %p341, %p342
    %p344 = scmp.ne.s32.totalorder %s335, %s336
    %p345 = scmp.eq.s32.totalorder %s32, 0
    %p346 = por %p344, %p345
    %p347 = scmp.ne.s32.totalorder %s335, %s336
    %p348 = scmp.eq.s32.totalorder %s33, 1
    %p349 = por %p347, %p348
    %p351 = scmp.ne.s32.totalorder %s336, %s350
    %p352 = scmp.eq.s32.totalorder %s33, 0
    %p353 = por %p351, %p352
    %s355 = sadd.s32 %s354, 1
    %p358 = scmp.eq.s32.totalorder %s27, 1
    %p359 = scmp.ne.s32.totalorder %s354, %s356
    %p360 = scmp.eq.s32.totalorder %s27, 0
    %p361 = por %p359, %p360
    %p362 = scmp.ne.s32.totalorder %s354, %s356
    %p363 = scmp.eq.s32.totalorder %s32, 1
    %p364 = por %p362, %p363
    %p365 = scmp.ne.s32.totalorder %s356, %s357
    %p366 = scmp.eq.s32.totalorder %s32, 0
    %p367 = por %p365, %p366
    %p368 = scmp.ne.s32.totalorder %s356, %s357
    %p369 = scmp.eq.s32.totalorder %s33, 1
    %p370 = por %p368, %p369
    %p372 = scmp.ne.s32.totalorder %s357, %s371
    %p373 = scmp.eq.s32.totalorder %s33, 0
    %p374 = por %p372, %p373
    %s376 = sadd.s32 %s375, 1
    %p379 = scmp.eq.s32.totalorder %s27, 1
    %p380 = scmp.ne.s32.totalorder %s375, %s377
    %p381 = scmp.eq.s32.totalorder %s27, 0
    %p382 = por %p380, %p381
    %p383 = scmp.ne.s32.totalorder %s375, %s377
    %p384 = scmp.eq.s32.totalorder %s32, 1
    %p385 = por %p383, %p384
    %p386 = scmp.ne.s32.totalorder %s377, %s378
    %p387 = scmp.eq.s32.totalorder %s32, 0
    %p388 = por %p386, %p387
    %p389 = scmp.ne.s32.totalorder %s377, %s378
    %p390 = scmp.eq.s32.totalorder %s33, 1
    %p391 = por %p389, %p390
    %p393 = scmp.ne.s32.totalorder %s378, %s392
    %p394 = scmp.eq.s32.totalorder %s33, 0
    %p395 = por %p393, %p394
    %s397 = sadd.s32 %s396, 1
    %p400 = scmp.eq.s32.totalorder %s27, 1
    %p401 = scmp.ne.s32.totalorder %s396, %s398
    %p402 = scmp.eq.s32.totalorder %s27, 0
    %p403 = por %p401, %p402
    %p404 = scmp.ne.s32.totalorder %s396, %s398
    %p405 = scmp.eq.s32.totalorder %s32, 1
    %p406 = por %p404, %p405
    %p407 = scmp.ne.s32.totalorder %s398, %s399
    %p408 = scmp.eq.s32.totalorder %s32, 0
    %p409 = por %p407, %p408
    %p410 = scmp.ne.s32.totalorder %s398, %s399
    %p411 = scmp.eq.s32.totalorder %s33, 1
    %p412 = por %p410, %p411
    %p414 = scmp.ne.s32.totalorder %s399, %s413
    %p415 = scmp.eq.s32.totalorder %s33, 0
    %p416 = por %p414, %p415
    %s418 = sadd.s32 %s417, 1
    %p421 = scmp.eq.s32.totalorder %s27, 1
    %p422 = scmp.ne.s32.totalorder %s417, %s419
    %p423 = scmp.eq.s32.totalorder %s27, 0
    %p424 = por %p422, %p423
    %p425 = scmp.ne.s32.totalorder %s417, %s419
    %p426 = scmp.eq.s32.totalorder %s32, 1
    %p427 = por %p425, %p426
    %p428 = scmp.ne.s32.totalorder %s419, %s420
    %p429 = scmp.eq.s32.totalorder %s32, 0
    %p430 = por %p428, %p429
    %p431 = scmp.ne.s32.totalorder %s419, %s420
    %p432 = scmp.eq.s32.totalorder %s33, 1
    %p433 = por %p431, %p432
    %p435 = scmp.ne.s32.totalorder %s420, %s434
    %p436 = scmp.eq.s32.totalorder %s33, 0
    %p437 = por %p435, %p436
    %s439 = sadd.s32 %s438, 1
    %p442 = scmp.eq.s32.totalorder %s27, 1
    %p443 = scmp.ne.s32.totalorder %s438, %s440
    %p444 = scmp.eq.s32.totalorder %s27, 0
    %p445 = por %p443, %p444
    %p446 = scmp.ne.s32.totalorder %s438, %s440
    %p447 = scmp.eq.s32.totalorder %s32, 1
    %p448 = por %p446, %p447
    %p449 = scmp.ne.s32.totalorder %s440, %s441
    %p450 = scmp.eq.s32.totalorder %s32, 0
    %p451 = por %p449, %p450
    %p452 = scmp.ne.s32.totalorder %s440, %s441
    %p453 = scmp.eq.s32.totalorder %s33, 1
    %p454 = por %p452, %p453
    %p456 = scmp.ne.s32.totalorder %s441, %s455
    %p457 = scmp.eq.s32.totalorder %s33, 0
    %p458 = por %p456, %p457
    %s460 = sadd.s32 %s459, 1
    %p463 = scmp.eq.s32.totalorder %s27, 1
    %p464 = scmp.ne.s32.totalorder %s459, %s461
    %p465 = scmp.eq.s32.totalorder %s27, 0
    %p466 = por %p464, %p465
    %p467 = scmp.ne.s32.totalorder %s459, %s461
    %p468 = scmp.eq.s32.totalorder %s32, 1
    %p469 = por %p467, %p468
    %p470 = scmp.ne.s32.totalorder %s461, %s462
    %p471 = scmp.eq.s32.totalorder %s32, 0
    %p472 = por %p470, %p471
    %p473 = scmp.ne.s32.totalorder %s461, %s462
    %p474 = scmp.eq.s32.totalorder %s33, 1
    %p475 = por %p473, %p474
    %p477 = scmp.ne.s32.totalorder %s462, %s476
    %p478 = scmp.eq.s32.totalorder %s33, 0
    %p479 = por %p477, %p478
    %s481 = sadd.s32 %s480, 1
    %p484 = scmp.eq.s32.totalorder %s27, 1
    %p485 = scmp.ne.s32.totalorder %s480, %s482
    %p486 = scmp.eq.s32.totalorder %s27, 0
    %p487 = por %p485, %p486
    %p488 = scmp.ne.s32.totalorder %s480, %s482
    %p489 = scmp.eq.s32.totalorder %s32, 1
    %p490 = por %p488, %p489
    %p491 = scmp.ne.s32.totalorder %s482, %s483
    %p492 = scmp.eq.s32.totalorder %s32, 0
    %p493 = por %p491, %p492
    %p494 = scmp.ne.s32.totalorder %s482, %s483
    %p495 = scmp.eq.s32.totalorder %s33, 1
    %p496 = por %p494, %p495
    %p498 = scmp.ne.s32.totalorder %s483, %s497
    %p499 = scmp.eq.s32.totalorder %s33, 0
    %p500 = por %p498, %p499
    %s501 = ssub.s32 %s27, %s34
    %p502 = scmp.eq.s32.totalorder %s501, 0
    %s504 = sadd.s32 %s503, 1
    %s505 = scalar_select %p502, %s503, %s504
    %p508 = pneg %p502
    %p509 = scmp.eq.s32.totalorder %s27, 1
    %p510 = por %p508, %p509
    %p511 = scmp.ne.s32.totalorder %s503, %s506
    %p512 = scmp.eq.s32.totalorder %s27, 0
    %p513 = por %p511, %p512
    %p514 = scmp.ne.s32.totalorder %s503, %s506
    %p515 = scmp.eq.s32.totalorder %s32, 1
    %p516 = por %p514, %p515
    %p517 = scmp.ne.s32.totalorder %s506, %s507
    %p518 = scmp.eq.s32.totalorder %s32, 0
    %p519 = por %p517, %p518
    %p520 = scmp.ne.s32.totalorder %s506, %s507
    %p521 = scmp.eq.s32.totalorder %s33, 1
    %p522 = por %p520, %p521
    %p524 = scmp.ne.s32.totalorder %s507, %s523
    %p525 = scmp.eq.s32.totalorder %s33, 0
    %p526 = por %p524, %p525
    %p527 = scmp.le.s32.totalorder 1, %s27
    %p528 = scmp.lt.s32.totalorder %s27, 3
    %p529 = pnand %p527, %p528
    %p530 = pneg %p529
    // Predicated region
    $region9: #{encoder_block_forward.9} parent=5 // pred_check
      _
    $region10: #{encoder_block_forward.9} parent=5 // pred_check_branch
      %532 = sbr.rel (%p529) target = $region12
    $region11: #{encoder_block_forward.9} parent=5 // pred_region
      %s533 = ssub.s32 %s27, 1
      // Predicated region
      $region13: #{encoder_block_forward.9} parent=11 // pred_check
        %p534 = pneg %p178
      $region14: #{encoder_block_forward.9} parent=11 // pred_check_branch
        %536 = sbr.rel (%p534) target = $region16
      $region15: #{encoder_block_forward.9} parent=11 // pred_region
        _
      $region16: #{encoder_block_forward.9} parent=11 // pred_fallthru
        _
      // Predicated region
      $region17: #{encoder_block_forward.9} parent=11 // pred_check
        %p537 = pneg %p199
      $region18: #{encoder_block_forward.9} parent=11 // pred_check_branch
        %539 = sbr.rel (%p537) target = $region20
      $region19: #{encoder_block_forward.9} parent=11 // pred_region
        _
      $region20: #{encoder_block_forward.9} parent=11 // pred_fallthru
        _
      // Predicated region
      $region21: #{encoder_block_forward.9} parent=11 // pred_check
        %p540 = pneg %p220
      $region22: #{encoder_block_forward.9} parent=11 // pred_check_branch
        %542 = sbr.rel (%p540) target = $region24
      $region23: #{encoder_block_forward.9} parent=11 // pred_region
        _
      $region24: #{encoder_block_forward.9} parent=11 // pred_fallthru
        _
      // Predicated region
      $region25: #{encoder_block_forward.9} parent=11 // pred_check
        %p543 = pneg %p241
      $region26: #{encoder_block_forward.9} parent=11 // pred_check_branch
        %545 = sbr.rel (%p543) target = $region28
      $region27: #{encoder_block_forward.9} parent=11 // pred_region
        _
      $region28: #{encoder_block_forward.9} parent=11 // pred_fallthru
        _
      // Predicated region
      $region29: #{encoder_block_forward.9} parent=11 // pred_check
        %p546 = pneg %p262
      $region30: #{encoder_block_forward.9} parent=11 // pred_check_branch
        %548 = sbr.rel (%p546) target = $region32
      $region31: #{encoder_block_forward.9} parent=11 // pred_region
        _
      $region32: #{encoder_block_forward.9} parent=11 // pred_fallthru
        _
      // Predicated region
      $region33: #{encoder_block_forward.9} parent=11 // pred_check
        %p549 = pneg %p283
      $region34: #{encoder_block_forward.9} parent=11 // pred_check_branch
        %551 = sbr.rel (%p549) target = $region36
      $region35: #{encoder_block_forward.9} parent=11 // pred_region
        _
      $region36: #{encoder_block_forward.9} parent=11 // pred_fallthru
        _
      // Predicated region
      $region37: #{encoder_block_forward.9} parent=11 // pred_check
        %p552 = pneg %p304
      $region38: #{encoder_block_forward.9} parent=11 // pred_check_branch
        %554 = sbr.rel (%p552) target = $region40
      $region39: #{encoder_block_forward.9} parent=11 // pred_region
        _
      $region40: #{encoder_block_forward.9} parent=11 // pred_fallthru
        _
      // Predicated region
      $region41: #{encoder_block_forward.9} parent=11 // pred_check
        %p555 = pneg %p325
      $region42: #{encoder_block_forward.9} parent=11 // pred_check_branch
        %557 = sbr.rel (%p555) target = $region44
      $region43: #{encoder_block_forward.9} parent=11 // pred_region
        _
      $region44: #{encoder_block_forward.9} parent=11 // pred_fallthru
        _
      // Predicated region
      $region45: #{encoder_block_forward.9} parent=11 // pred_check
        %p558 = pneg %p346
      $region46: #{encoder_block_forward.9} parent=11 // pred_check_branch
        %560 = sbr.rel (%p558) target = $region48
      $region47: #{encoder_block_forward.9} parent=11 // pred_region
        _
      $region48: #{encoder_block_forward.9} parent=11 // pred_fallthru
        _
      // Predicated region
      $region49: #{encoder_block_forward.9} parent=11 // pred_check
        %p561 = pneg %p367
      $region50: #{encoder_block_forward.9} parent=11 // pred_check_branch
        %563 = sbr.rel (%p561) target = $region52
      $region51: #{encoder_block_forward.9} parent=11 // pred_region
        _
      $region52: #{encoder_block_forward.9} parent=11 // pred_fallthru
        _
      // Predicated region
      $region53: #{encoder_block_forward.9} parent=11 // pred_check
        %p564 = pneg %p388
      $region54: #{encoder_block_forward.9} parent=11 // pred_check_branch
        %566 = sbr.rel (%p564) target = $region56
      $region55: #{encoder_block_forward.9} parent=11 // pred_region
        _
      $region56: #{encoder_block_forward.9} parent=11 // pred_fallthru
        _
      // Predicated region
      $region57: #{encoder_block_forward.9} parent=11 // pred_check
        %p567 = pneg %p409
      $region58: #{encoder_block_forward.9} parent=11 // pred_check_branch
        %569 = sbr.rel (%p567) target = $region60
      $region59: #{encoder_block_forward.9} parent=11 // pred_region
        _
      $region60: #{encoder_block_forward.9} parent=11 // pred_fallthru
        _
      // Predicated region
      $region61: #{encoder_block_forward.9} parent=11 // pred_check
        %p570 = pneg %p430
      $region62: #{encoder_block_forward.9} parent=11 // pred_check_branch
        %572 = sbr.rel (%p570) target = $region64
      $region63: #{encoder_block_forward.9} parent=11 // pred_region
        _
      $region64: #{encoder_block_forward.9} parent=11 // pred_fallthru
        _
      // Predicated region
      $region65: #{encoder_block_forward.9} parent=11 // pred_check
        %p573 = pneg %p451
      $region66: #{encoder_block_forward.9} parent=11 // pred_check_branch
        %575 = sbr.rel (%p573) target = $region68
      $region67: #{encoder_block_forward.9} parent=11 // pred_region
        _
      $region68: #{encoder_block_forward.9} parent=11 // pred_fallthru
        _
      // Predicated region
      $region69: #{encoder_block_forward.9} parent=11 // pred_check
        %p576 = pneg %p472
      $region70: #{encoder_block_forward.9} parent=11 // pred_check_branch
        %578 = sbr.rel (%p576) target = $region72
      $region71: #{encoder_block_forward.9} parent=11 // pred_region
        _
      $region72: #{encoder_block_forward.9} parent=11 // pred_fallthru
        _
      // Predicated region
      $region73: #{encoder_block_forward.9} parent=11 // pred_check
        %p579 = pneg %p493
      $region74: #{encoder_block_forward.9} parent=11 // pred_check_branch
        %581 = sbr.rel (%p579) target = $region76
      $region75: #{encoder_block_forward.9} parent=11 // pred_region
        _
      $region76: #{encoder_block_forward.9} parent=11 // pred_fallthru
        _
    $region12: #{encoder_block_forward.9} parent=5 // pred_fallthru
      _
    %p582 = scmp.lt.s32.totalorder %s27, 2
    // Predicated region
    $region77: #{encoder_block_forward.9} parent=5 // pred_check
      %p583 = pneg %p582
    $region78: #{encoder_block_forward.9} parent=5 // pred_check_branch
      %585 = sbr.rel (%p583) target = $region80
    $region79: #{encoder_block_forward.9} parent=5 // pred_region
      // Predicated region
      $region81: #{encoder_block_forward.9} parent=79 // pred_check
        %p586 = pneg %p47
      $region82: #{encoder_block_forward.9} parent=79 // pred_check_branch
        %588 = sbr.rel (%p586) target = $region84
      $region83: #{encoder_block_forward.9} parent=79 // pred_region
        %s589 = smul.u32 2, %s27
        %p590 = scmp.lt.s32.totalorder %s589, 3
        %s591 = scalar_select %p590, %s589, 3
        %s592 = smul.addr %s591, 4
        %s593 = scalar_lea.vmem %s0, %s592
        %s594 = smul.u32 2, %s27
      $region84: #{encoder_block_forward.9} parent=79 // pred_fallthru
        _
      // Predicated region
      $region85: #{encoder_block_forward.9} parent=79 // pred_check
        %p595 = pneg %p73
      $region86: #{encoder_block_forward.9} parent=79 // pred_check_branch
        %597 = sbr.rel (%p595) target = $region88
      $region87: #{encoder_block_forward.9} parent=79 // pred_region
        %s598 = smul.u32 2, %s27
        %p599 = scmp.lt.s32.totalorder %s598, 3
        %s600 = scalar_select %p599, %s598, 3
        %s601 = smul.addr %s600, 4
        %s602 = scalar_lea.vmem %s1, %s601
        %s603 = smul.u32 2, %s27
      $region88: #{encoder_block_forward.9} parent=79 // pred_fallthru
        _
      // Predicated region
      $region89: #{encoder_block_forward.9} parent=79 // pred_check
        %p604 = pneg %p99
      $region90: #{encoder_block_forward.9} parent=79 // pred_check_branch
        %606 = sbr.rel (%p604) target = $region92
      $region91: #{encoder_block_forward.9} parent=79 // pred_region
        %s607 = smul.u32 2, %s27
        %p608 = scmp.lt.s32.totalorder %s607, 3
        %s609 = scalar_select %p608, %s607, 3
        %s610 = smul.addr %s609, 4
        %s611 = scalar_lea.vmem %s2, %s610
        %s612 = smul.u32 2, %s27
      $region92: #{encoder_block_forward.9} parent=79 // pred_fallthru
        _
      // Predicated region
      $region93: #{encoder_block_forward.9} parent=79 // pred_check
        %p613 = pneg %p125
      $region94: #{encoder_block_forward.9} parent=79 // pred_check_branch
        %615 = sbr.rel (%p613) target = $region96
      $region95: #{encoder_block_forward.9} parent=79 // pred_region
        %s616 = smul.u32 2, %s27
        %p617 = scmp.lt.s32.totalorder %s616, 3
        %s618 = scalar_select %p617, %s616, 3
        %s619 = smul.addr %s618, 4
        %s620 = scalar_lea.vmem %s3, %s619
        %s621 = smul.u32 2, %s27
      $region96: #{encoder_block_forward.9} parent=79 // pred_fallthru
        _
      // Predicated region
      $region97: #{encoder_block_forward.9} parent=79 // pred_check
        %p622 = pneg %p151
      $region98: #{encoder_block_forward.9} parent=79 // pred_check_branch
        %624 = sbr.rel (%p622) target = $region100
      $region99: #{encoder_block_forward.9} parent=79 // pred_region
        %s625 = smul.u32 2, %s27
        %p626 = scmp.lt.s32.totalorder %s625, 3
        %s627 = scalar_select %p626, %s625, 3
        %s628 = smul.addr %s627, 4
        %s629 = scalar_lea.vmem %s4, %s628
        %s630 = smul.u32 2, %s27
      $region100: #{encoder_block_forward.9} parent=79 // pred_fallthru
        _
    $region80: #{encoder_block_forward.9} parent=5 // pred_fallthru
      _
    %p631 = scmp.le.s32.totalorder 1, %s27
    %p632 = scmp.lt.s32.totalorder %s27, 3
    %p633 = pnand %p631, %p632
    %p634 = pneg %p633
    // Predicated region
    $region101: #{encoder_block_forward.9} parent=5 // pred_check
      _
    $region102: #{encoder_block_forward.9} parent=5 // pred_check_branch
      %636 = sbr.rel (%p633) target = $region104
    $region103: #{encoder_block_forward.9} parent=5 // pred_region
      %s637 = ssub.s32 %s27, 1
      %s638 = smul.u32 2, %s32
      %p639 = scmp.lt.s32.totalorder %s638, 3
      %s640 = scalar_select %p639, %s638, 3
      %s641 = smul.addr %s640, 4
      %s642 = scalar_lea.vmem %s0, %s641
      %p643 = pneg %p53
      %p644 = pneg %p50
      %s645 = smul.u32 2, %s32
      %p646 = scmp.lt.s32.totalorder %s645, 3
      %s647 = scalar_select %p646, %s645, 3
      %s648 = smul.addr %s647, 4
      %s649 = scalar_lea.vmem %s1, %s648
      %p650 = pneg %p79
      %p651 = pneg %p76
      %s652 = smul.u32 2, %s32
      %p653 = scmp.lt.s32.totalorder %s652, 3
      %s654 = scalar_select %p653, %s652, 3
      %s655 = smul.addr %s654, 4
      %s656 = scalar_lea.vmem %s2, %s655
      %p657 = pneg %p105
      %p658 = pneg %p102
      %s659 = smul.u32 2, %s32
      %p660 = scmp.lt.s32.totalorder %s659, 3
      %s661 = scalar_select %p660, %s659, 3
      %s662 = smul.addr %s661, 4
      %s663 = scalar_lea.vmem %s3, %s662
      %p664 = pneg %p131
      %p665 = pneg %p128
      %s666 = smul.u32 2, %s32
      %p667 = scmp.lt.s32.totalorder %s666, 3
      %s668 = scalar_select %p667, %s666, 3
      %s669 = smul.addr %s668, 4
      %s670 = scalar_lea.vmem %s4, %s669
      %p671 = pneg %p157
      %p672 = pneg %p154
      %p673 = pneg %p178
      %p674 = pneg %p175
      %p675 = pneg %p199
      %p676 = pneg %p196
      %p677 = pneg %p220
      %p678 = pneg %p217
      %p679 = pneg %p241
      %p680 = pneg %p238
      %p681 = pneg %p262
      %p682 = pneg %p259
      %p683 = pneg %p283
      %p684 = pneg %p280
      %p685 = pneg %p304
      %p686 = pneg %p301
      %p687 = pneg %p325
      %p688 = pneg %p322
      %p689 = pneg %p346
      %p690 = pneg %p343
      %p691 = pneg %p367
      %p692 = pneg %p364
      %p693 = pneg %p388
      %p694 = pneg %p385
      %p695 = pneg %p409
      %p696 = pneg %p406
      %p697 = pneg %p430
      %p698 = pneg %p427
      %p699 = pneg %p451
      %p700 = pneg %p448
      %p701 = pneg %p472
      %p702 = pneg %p469
      %p703 = pneg %p493
      %p704 = pneg %p490
      %p705 = pneg %p519
      %p706 = pneg %p516
      %s707 = smul.u32 2, %s32
      %p708 = scmp.lt.s32.totalorder %s707, 3
      %s709 = scalar_select %p708, %s707, 3
      %s710 = smul.addr %s709, 4
      %s711 = scalar_lea.vmem %s21, %s710
      %s712 = smul.u32 2, %s32
      %p713 = scmp.lt.s32.totalorder %s712, 3
      %s714 = scalar_select %p713, %s712, 3
      %s715 = smul.addr %s714, 4
      %s716 = scalar_lea.vmem %s0, %s715
      %s717 = smul.u32 2, %s32
      %s718 = smul.u32 2, %s32
      %p719 = scmp.lt.s32.totalorder %s718, 3
      %s720 = scalar_select %p719, %s718, 3
      %s721 = smul.addr %s720, 4
      %s722 = scalar_lea.vmem %s1, %s721
      %s723 = smul.u32 2, %s32
      %s724 = smul.u32 2, %s32
      %p725 = scmp.lt.s32.totalorder %s724, 3
      %s726 = scalar_select %p725, %s724, 3
      %s727 = smul.addr %s726, 4
      %s728 = scalar_lea.vmem %s2, %s727
      %s729 = smul.u32 2, %s32
      %s730 = smul.u32 2, %s32
      %p731 = scmp.lt.s32.totalorder %s730, 3
      %s732 = scalar_select %p731, %s730, 3
      %s733 = smul.addr %s732, 4
      %s734 = scalar_lea.vmem %s3, %s733
      %s735 = smul.u32 2, %s32
      %s736 = smul.u32 2, %s32
      %p737 = scmp.lt.s32.totalorder %s736, 3
      %s738 = scalar_select %p737, %s736, 3
      %s739 = smul.addr %s738, 4
      %s740 = scalar_lea.vmem %s4, %s739
      %s741 = smul.u32 2, %s32
      %s742 = smul.u32 2, %s32
      %p743 = scmp.lt.s32.totalorder %s742, 3
      %s744 = scalar_select %p743, %s742, 3
      %s745 = smul.addr %s744, 4
      %s746 = scalar_lea.vmem %s21, %s745
      %s747 = smul.u32 2, %s32
      %v748 = vld [vmem:[%s716] sm:$0xff]
      %v749 = vld [vmem:[%s5] sm:$0xf]
      %751 = vset.pattern.permute.xlu0 0
      %752 = vperm.xlu0 %751, %v749
      %v753 = vpop.permute.xlu0 %752
      %v755 = vunpack.c.l.s4 839922192
      %v756 = vunpack.c.0.s8 %v755
      %v757 = vperm.slane %v753, %v756
      %v759 = vmul.f32 %v748, %v757
      %v760 = vld [vmem:[%s10] sm:$0xf]
      %762 = vset.pattern.permute.xlu0 0
      %763 = vperm.xlu0 %762, %v760
      %v764 = vpop.permute.xlu0 %763
      %v766 = vunpack.c.l.s4 839922192
      %v767 = vunpack.c.0.s8 %v766
      %v768 = vperm.slane %v764, %v767
      %v770 = vadd.f32 %v759, %v768
      %v771 = vmax.f32 %v770, 0.0
      %v772 = vld [vmem:[%s15] sm:$0xf]
      %v773 = vld [vmem:[%s722] sm:$0xff]
      %v774 = vld [vmem:[%s6] sm:$0xf]
      %776 = vset.pattern.permute.xlu0 0
      %777 = vperm.xlu0 %776, %v774
      %v778 = vpop.permute.xlu0 %777
      %v780 = vunpack.c.l.s4 839922192
      %v781 = vunpack.c.0.s8 %v780
      %v782 = vperm.slane %v778, %v781
      %v784 = vmul.f32 %v773, %v782
      %v785 = vld [vmem:[%s11] sm:$0xf]
      %787 = vset.pattern.permute.xlu0 0
      %788 = vperm.xlu0 %787, %v785
      %v789 = vpop.permute.xlu0 %788
      %v791 = vunpack.c.l.s4 839922192
      %v792 = vunpack.c.0.s8 %v791
      %v793 = vperm.slane %v789, %v792
      %v795 = vadd.f32 %v784, %v793
      %v796 = vmax.f32 %v795, 0.0
      %v797 = vld [vmem:[%s16] sm:$0xf]
      %799 = vst [vmem:[#allocation1] ss:$2 sm:$0xff] %v796
      %v800 = vld.sshfl [vmem:[#allocation1] sm:$0xff pattern:$0x75316420]
      %v801 = vld.sshfl [vmem:[#allocation1 + $0x8] sm:$0xff pattern:$0x75316420]
      %vm802 = vcmask 31744
      %v804 = vsel %vm802, %v797, 0
      %vm806 = vcmask 1043456
      %v807 = vsel %vm806, %v800, 0
      %v809 = vsel %vm806, %v801, 0
      %811 = vmatpush.msra.mxu0 0.0
      %812 = vmatpush.msra.mxu0 0.0
      %813 = vmatpush.msra.mxu0 0.0
      %814 = vmatpush.msra.mxu0 0.0
      %815 = vmatpush.msra.mxu0 0.0
      %816 = vmatpush.msra.mxu0 0.0
      %817 = vmatpush.msra.mxu0 0.0
      %818 = vmatpush.msra.mxu0 0.0
      %819 = vmatpush.msra.mxu0 0.0
      %820 = vmatpush.msra.mxu0 0.0
      %821 = vmatpush.msra.mxu0 0.0
      %822 = vmatpush.msra.mxu0 0.0
      %823 = vmatpush.msra.mxu0 0.0
      %824 = vmatpush.msra.mxu0 0.0
      %825 = vmatpush.msra.mxu0 0.0
      %826 = vmatpush.msra.mxu0 %v807
      %827 = vmatmul.f32.gmra.mxu0 %v804
      %v828 = vpop.f32.mrf.mxu0
      %v829 = vadd.f32 0.0, %v828
      %830 = vdwg.mxu0
      %831 = vmatpush.msra.mxu0 0.0
      %832 = vmatpush.msra.mxu0 0.0
      %833 = vmatpush.msra.mxu0 0.0
      %834 = vmatpush.msra.mxu0 0.0
      %835 = vmatpush.msra.mxu0 0.0
      %836 = vmatpush.msra.mxu0 0.0
      %837 = vmatpush.msra.mxu0 0.0
      %838 = vmatpush.msra.mxu0 0.0
      %839 = vmatpush.msra.mxu0 0.0
      %840 = vmatpush.msra.mxu0 0.0
      %841 = vmatpush.msra.mxu0 0.0
      %842 = vmatpush.msra.mxu0 0.0
      %843 = vmatpush.msra.mxu0 0.0
      %844 = vmatpush.msra.mxu0 0.0
      %845 = vmatpush.msra.mxu0 0.0
      %846 = vmatpush.msra.mxu0 %v809
      %847 = vmatmul.f32.gmra.mxu0 %v804
      %v848 = vpop.f32.mrf.mxu0
      %v849 = vadd.f32 0.0, %v848
      %850 = vdwg.mxu0
      %852 = vst [vmem:[#allocation1] ss:$2 sm:$0xff] %v771
      %v853 = vld.sshfl [vmem:[#allocation1] sm:$0xff pattern:$0x75316420]
      %v854 = vld.sshfl [vmem:[#allocation1 + $0x8] sm:$0xff pattern:$0x75316420]
      %v856 = vsel %vm802, %v772, 0
      %v858 = vsel %vm806, %v853, 0
      %v860 = vsel %vm806, %v854, 0
      %862 = vmatpush.msra.mxu0 0.0
      %863 = vmatpush.msra.mxu0 0.0
      %864 = vmatpush.msra.mxu0 0.0
      %865 = vmatpush.msra.mxu0 0.0
      %866 = vmatpush.msra.mxu0 0.0
      %867 = vmatpush.msra.mxu0 0.0
      %868 = vmatpush.msra.mxu0 0.0
      %869 = vmatpush.msra.mxu0 0.0
      %870 = vmatpush.msra.mxu0 0.0
      %871 = vmatpush.msra.mxu0 0.0
      %872 = vmatpush.msra.mxu0 0.0
      %873 = vmatpush.msra.mxu0 0.0
      %874 = vmatpush.msra.mxu0 0.0
      %875 = vmatpush.msra.mxu0 0.0
      %876 = vmatpush.msra.mxu0 0.0
      %877 = vmatpush.msra.mxu0 %v858
      %878 = vmatmul.f32.gmra.mxu0 %v856
      %v879 = vpop.f32.mrf.mxu0
      %v880 = vadd.f32 %v829, %v879
      %881 = vdwg.mxu0
      %882 = vmatpush.msra.mxu0 0.0
      %883 = vmatpush.msra.mxu0 0.0
      %884 = vmatpush.msra.mxu0 0.0
      %885 = vmatpush.msra.mxu0 0.0
      %886 = vmatpush.msra.mxu0 0.0
      %887 = vmatpush.msra.mxu0 0.0
      %888 = vmatpush.msra.mxu0 0.0
      %889 = vmatpush.msra.mxu0 0.0
      %890 = vmatpush.msra.mxu0 0.0
      %891 = vmatpush.msra.mxu0 0.0
      %892 = vmatpush.msra.mxu0 0.0
      %893 = vmatpush.msra.mxu0 0.0
      %894 = vmatpush.msra.mxu0 0.0
      %895 = vmatpush.msra.mxu0 0.0
      %896 = vmatpush.msra.mxu0 0.0
      %897 = vmatpush.msra.mxu0 %v860
      %898 = vmatmul.f32.gmra.mxu0 %v856
      %v899 = vpop.f32.mrf.mxu0
      %v900 = vadd.f32 %v849, %v899
      %901 = vdwg.mxu0
      %v902 = vld [vmem:[%s728] sm:$0xff]
      %v903 = vld [vmem:[%s7] sm:$0xf]
      %905 = vset.pattern.permute.xlu0 0
      %906 = vperm.xlu0 %905, %v903
      %v907 = vpop.permute.xlu0 %906
      %v909 = vunpack.c.l.s4 839922192
      %v910 = vunpack.c.0.s8 %v909
      %v911 = vperm.slane %v907, %v910
      %v913 = vmul.f32 %v902, %v911
      %v914 = vld [vmem:[%s12] sm:$0xf]
      %916 = vset.pattern.permute.xlu0 0
      %917 = vperm.xlu0 %916, %v914
      %v918 = vpop.permute.xlu0 %917
      %v920 = vunpack.c.l.s4 839922192
      %v921 = vunpack.c.0.s8 %v920
      %v922 = vperm.slane %v918, %v921
      %v924 = vadd.f32 %v913, %v922
      %v925 = vmax.f32 %v924, 0.0
      %v926 = vld [vmem:[%s17] sm:$0xf]
      %928 = vst [vmem:[#allocation1] ss:$2 sm:$0xff] %v925
      %v929 = vld.sshfl [vmem:[#allocation1] sm:$0xff pattern:$0x75316420]
      %v930 = vld.sshfl [vmem:[#allocation1 + $0x8] sm:$0xff pattern:$0x75316420]
      %v932 = vsel %vm802, %v926, 0
      %v934 = vsel %vm806, %v929, 0
      %v936 = vsel %vm806, %v930, 0
      %938 = vmatpush.msra.mxu0 0.0
      %939 = vmatpush.msra.mxu0 0.0
      %940 = vmatpush.msra.mxu0 0.0
      %941 = vmatpush.msra.mxu0 0.0
      %942 = vmatpush.msra.mxu0 0.0
      %943 = vmatpush.msra.mxu0 0.0
      %944 = vmatpush.msra.mxu0 0.0
      %945 = vmatpush.msra.mxu0 0.0
      %946 = vmatpush.msra.mxu0 0.0
      %947 = vmatpush.msra.mxu0 0.0
      %948 = vmatpush.msra.mxu0 0.0
      %949 = vmatpush.msra.mxu0 0.0
      %950 = vmatpush.msra.mxu0 0.0
      %951 = vmatpush.msra.mxu0 0.0
      %952 = vmatpush.msra.mxu0 0.0
      %953 = vmatpush.msra.mxu0 %v934
      %954 = vmatmul.f32.gmra.mxu0 %v932
      %v955 = vpop.f32.mrf.mxu0
      %v956 = vadd.f32 0.0, %v955
      %957 = vdwg.mxu0
      %958 = vmatpush.msra.mxu0 0.0
      %959 = vmatpush.msra.mxu0 0.0
      %960 = vmatpush.msra.mxu0 0.0
      %961 = vmatpush.msra.mxu0 0.0
      %962 = vmatpush.msra.mxu0 0.0
      %963 = vmatpush.msra.mxu0 0.0
      %964 = vmatpush.msra.mxu0 0.0
      %965 = vmatpush.msra.mxu0 0.0
      %966 = vmatpush.msra.mxu0 0.0
      %967 = vmatpush.msra.mxu0 0.0
      %968 = vmatpush.msra.mxu0 0.0
      %969 = vmatpush.msra.mxu0 0.0
      %970 = vmatpush.msra.mxu0 0.0
      %971 = vmatpush.msra.mxu0 0.0
      %972 = vmatpush.msra.mxu0 0.0
      %973 = vmatpush.msra.mxu0 %v936
      %974 = vmatmul.f32.gmra.mxu0 %v932
      %v975 = vpop.f32.mrf.mxu0
      %v976 = vadd.f32 0.0, %v975
      %977 = vdwg.mxu0
      %v978 = vadd.f32 %v880, %v956
      %v979 = vadd.f32 %v900, %v976
      %v980 = vld [vmem:[%s734] sm:$0xff]
      %v981 = vld [vmem:[%s8] sm:$0xf]
      %983 = vset.pattern.permute.xlu0 0
      %984 = vperm.xlu0 %983, %v981
      %v985 = vpop.permute.xlu0 %984
      %v987 = vunpack.c.l.s4 839922192
      %v988 = vunpack.c.0.s8 %v987
      %v989 = vperm.slane %v985, %v988
      %v991 = vmul.f32 %v980, %v989
      %v992 = vld [vmem:[%s13] sm:$0xf]
      %994 = vset.pattern.permute.xlu0 0
      %995 = vperm.xlu0 %994, %v992
      %v996 = vpop.permute.xlu0 %995
      %v998 = vunpack.c.l.s4 839922192
      %v999 = vunpack.c.0.s8 %v998
      %v1000 = vperm.slane %v996, %v999
      %v1002 = vadd.f32 %v991, %v1000
      %v1003 = vmax.f32 %v1002, 0.0
      %v1004 = vld [vmem:[%s18] sm:$0xf]
      %1006 = vst [vmem:[#allocation1] ss:$2 sm:$0xff] %v1003
      %v1007 = vld.sshfl [vmem:[#allocation1] sm:$0xff pattern:$0x75316420]
      %v1008 = vld.sshfl [vmem:[#allocation1 + $0x8] sm:$0xff pattern:$0x75316420]
      %v1010 = vsel %vm802, %v1004, 0
      %v1012 = vsel %vm806, %v1007, 0
      %v1014 = vsel %vm806, %v1008, 0
      %1016 = vmatpush.msra.mxu0 0.0
      %1017 = vmatpush.msra.mxu0 0.0
      %1018 = vmatpush.msra.mxu0 0.0
      %1019 = vmatpush.msra.mxu0 0.0
      %1020 = vmatpush.msra.mxu0 0.0
      %1021 = vmatpush.msra.mxu0 0.0
      %1022 = vmatpush.msra.mxu0 0.0
      %1023 = vmatpush.msra.mxu0 0.0
      %1024 = vmatpush.msra.mxu0 0.0
      %1025 = vmatpush.msra.mxu0 0.0
      %1026 = vmatpush.msra.mxu0 0.0
      %1027 = vmatpush.msra.mxu0 0.0
      %1028 = vmatpush.msra.mxu0 0.0
      %1029 = vmatpush.msra.mxu0 0.0
      %1030 = vmatpush.msra.mxu0 0.0
      %1031 = vmatpush.msra.mxu0 %v1012
      %1032 = vmatmul.f32.gmra.mxu0 %v1010
      %v1033 = vpop.f32.mrf.mxu0
      %v1034 = vadd.f32 0.0, %v1033
      %1035 = vdwg.mxu0
      %1036 = vmatpush.msra.mxu0 0.0
      %1037 = vmatpush.msra.mxu0 0.0
      %1038 = vmatpush.msra.mxu0 0.0
      %1039 = vmatpush.msra.mxu0 0.0
      %1040 = vmatpush.msra.mxu0 0.0
      %1041 = vmatpush.msra.mxu0 0.0
      %1042 = vmatpush.msra.mxu0 0.0
      %1043 = vmatpush.msra.mxu0 0.0
      %1044 = vmatpush.msra.mxu0 0.0
      %1045 = vmatpush.msra.mxu0 0.0
      %1046 = vmatpush.msra.mxu0 0.0
      %1047 = vmatpush.msra.mxu0 0.0
      %1048 = vmatpush.msra.mxu0 0.0
      %1049 = vmatpush.msra.mxu0 0.0
      %1050 = vmatpush.msra.mxu0 0.0
      %1051 = vmatpush.msra.mxu0 %v1014
      %1052 = vmatmul.f32.gmra.mxu0 %v1010
      %v1053 = vpop.f32.mrf.mxu0
      %v1054 = vadd.f32 0.0, %v1053
      %1055 = vdwg.mxu0
      %v1056 = vadd.f32 %v978, %v1034
      %v1057 = vadd.f32 %v979, %v1054
      %v1058 = vld [vmem:[%s740] sm:$0xff]
      %v1059 = vld [vmem:[%s9] sm:$0xf]
      %1061 = vset.pattern.permute.xlu0 0
      %1062 = vperm.xlu0 %1061, %v1059
      %v1063 = vpop.permute.xlu0 %1062
      %v1065 = vunpack.c.l.s4 839922192
      %v1066 = vunpack.c.0.s8 %v1065
      %v1067 = vperm.slane %v1063, %v1066
      %v1069 = vmul.f32 %v1058, %v1067
      %v1070 = vld [vmem:[%s14] sm:$0xf]
      %1072 = vset.pattern.permute.xlu0 0
      %1073 = vperm.xlu0 %1072, %v1070
      %v1074 = vpop.permute.xlu0 %1073
      %v1076 = vunpack.c.l.s4 839922192
      %v1077 = vunpack.c.0.s8 %v1076
      %v1078 = vperm.slane %v1074, %v1077
      %v1080 = vadd.f32 %v1069, %v1078
      %v1081 = vmax.f32 %v1080, 0.0
      %v1082 = vld [vmem:[%s19] sm:$0xf]
      %1084 = vst [vmem:[#allocation1] ss:$2 sm:$0xff] %v1081
      %v1085 = vld.sshfl [vmem:[#allocation1] sm:$0xff pattern:$0x75316420]
      %v1086 = vld.sshfl [vmem:[#allocation1 + $0x8] sm:$0xff pattern:$0x75316420]
      %v1088 = vsel %vm802, %v1082, 0
      %v1090 = vsel %vm806, %v1085, 0
      %v1092 = vsel %vm806, %v1086, 0
      %1094 = vmatpush.msra.mxu0 0.0
      %1095 = vmatpush.msra.mxu0 0.0
      %1096 = vmatpush.msra.mxu0 0.0
      %1097 = vmatpush.msra.mxu0 0.0
      %1098 = vmatpush.msra.mxu0 0.0
      %1099 = vmatpush.msra.mxu0 0.0
      %1100 = vmatpush.msra.mxu0 0.0
      %1101 = vmatpush.msra.mxu0 0.0
      %1102 = vmatpush.msra.mxu0 0.0
      %1103 = vmatpush.msra.mxu0 0.0
      %1104 = vmatpush.msra.mxu0 0.0
      %1105 = vmatpush.msra.mxu0 0.0
      %1106 = vmatpush.msra.mxu0 0.0
      %1107 = vmatpush.msra.mxu0 0.0
      %1108 = vmatpush.msra.mxu0 0.0
      %1109 = vmatpush.msra.mxu0 %v1090
      %1110 = vmatmul.f32.gmra.mxu0 %v1088
      %v1111 = vpop.f32.mrf.mxu0
      %v1112 = vadd.f32 0.0, %v1111
      %1113 = vdwg.mxu0
      %1114 = vmatpush.msra.mxu0 0.0
      %1115 = vmatpush.msra.mxu0 0.0
      %1116 = vmatpush.msra.mxu0 0.0
      %1117 = vmatpush.msra.mxu0 0.0
      %1118 = vmatpush.msra.mxu0 0.0
      %1119 = vmatpush.msra.mxu0 0.0
      %1120 = vmatpush.msra.mxu0 0.0
      %1121 = vmatpush.msra.mxu0 0.0
      %1122 = vmatpush.msra.mxu0 0.0
      %1123 = vmatpush.msra.mxu0 0.0
      %1124 = vmatpush.msra.mxu0 0.0
      %1125 = vmatpush.msra.mxu0 0.0
      %1126 = vmatpush.msra.mxu0 0.0
      %1127 = vmatpush.msra.mxu0 0.0
      %1128 = vmatpush.msra.mxu0 0.0
      %1129 = vmatpush.msra.mxu0 %v1092
      %1130 = vmatmul.f32.gmra.mxu0 %v1088
      %v1131 = vpop.f32.mrf.mxu0
      %v1132 = vadd.f32 0.0, %v1131
      %1133 = vdwg.mxu0
      %v1134 = vadd.f32 %v1056, %v1112
      %v1135 = vadd.f32 %v1057, %v1132
      %v1136 = vld [vmem:[%s20] sm:$0xf]
      %1138 = vset.pattern.permute.xlu0 0
      %1139 = vperm.xlu0 %1138, %v1136
      %v1140 = vpop.permute.xlu0 %1139
      %v1142 = vadd.f32 %v1134, %v1140
      %v1143 = vadd.f32 %v1135, %v1140
      %1145 = vst [vmem:[#allocation1] ss:$2 sm:$0xff] %v748
      %v1146 = vld.sshfl [vmem:[#allocation1] sm:$0xff pattern:$0x75316420]
      %v1147 = vld.sshfl [vmem:[#allocation1 + $0x8] sm:$0xff pattern:$0x75316420]
      %v1150 = vadd.f32 %v1142, %v1146
      %v1151 = vadd.f32 %v1143, %v1147
      %v1154 = vrot.slane %v1151, 4
      %v1155 = vsel %vm806, %v1150, %v1154
      %1157 = vst [vmem:[%s746] sm:$0xff] %v1155
      %s1158 = smul.u32 2, %s32
      %p1159 = scmp.lt.s32.totalorder %s1158, 3
      %s1160 = scalar_select %p1159, %s1158, 3
      %s1161 = smul.addr %s1160, 4
      %s1162 = scalar_lea.vmem %s21, %s1161
      // Predicated region
      $region105: #{encoder_block_forward.9} parent=103 // pred_check
        %p1163 = pneg %p516
      $region106: #{encoder_block_forward.9} parent=103 // pred_check_branch
        %1165 = sbr.rel (%p1163) target = $region108
      $region107: #{encoder_block_forward.9} parent=103 // pred_region
        %s1166 = smul.u32 2, %s32
      $region108: #{encoder_block_forward.9} parent=103 // pred_fallthru
        _
    $region104: #{encoder_block_forward.9} parent=5 // pred_fallthru
      _
    %p1167 = scmp.le.s32.totalorder 2, %s27
    // Predicated region
    $region109: #{encoder_block_forward.9} parent=5 // pred_check
      %p1168 = pneg %p1167
    $region110: #{encoder_block_forward.9} parent=5 // pred_check_branch
      %1170 = sbr.rel (%p1168) target = $region112
    $region111: #{encoder_block_forward.9} parent=5 // pred_region
      %s1171 = ssub.s32 %s27, 2
      // Predicated region
      $region113: #{encoder_block_forward.9} parent=111 // pred_check
        %p1172 = pneg %p522
      $region114: #{encoder_block_forward.9} parent=111 // pred_check_branch
        %1174 = sbr.rel (%p1172) target = $region116
      $region115: #{encoder_block_forward.9} parent=111 // pred_region
        %s1175 = smul.u32 2, %s33
        %p1176 = scmp.lt.s32.totalorder %s1175, 3
        %s1177 = scalar_select %p1176, %s1175, 3
        %s1178 = smul.addr %s1177, 4
        %s1179 = scalar_lea.vmem %s21, %s1178
      $region116: #{encoder_block_forward.9} parent=111 // pred_fallthru
        _
    $region112: #{encoder_block_forward.9} parent=5 // pred_fallthru
      _
  $region6: #{encoder_block_forward.9} parent=0 // loop_footer
    %s31 = sadd.s32 1, %s27
  $region7: #{encoder_block_forward.9} parent=0 // loop_footer_branch
    %26 = sbr.rel target = $region3
  $region8: #{encoder_block_forward.9} parent=0 // loop_exit
    _

</llo_original>
